<compile_context>
chip_gen: v7x
topology: tpu7x:2x2x1
jax: 0.10.0
libtpu: 0.0.40
codegen_flags: <defaults>
</compile_context>

<pallas_src>
import jax
import jax.numpy as jnp
from jax.experimental import pallas as pl
from jax.experimental.pallas import tpu as pltpu


def _decoder_attention_kernel(
    # per-batch-tile inputs
    x_ref, h0_ref, c0_ref, enc_ref, mask_ref, hpar_ref,
    # LSTM params (fused gates, order i, f, g, o like PyTorch)
    wih_ref, whh_ref, blstm_ref,
    # attention params
    whid_ref, bhid_ref, wmem_ref, bmem_ref, vw_ref,
    # output head + pointer switcher params
    wg_ref, bg_ref, wo_ref, bo_ref, ws_ref, scal_ref,
    # outputs
    wt_ref, attn_ref, h_ref, c_ref):

  f32 = jnp.float32
  TB, L, H = enc_ref.shape

  def mm(a, w):
    return jnp.dot(a, w, preferred_element_type=f32)

  x = x_ref[...]        # (TB, E)
  h0 = h0_ref[...]      # (TB, H)
  c0 = c0_ref[...]      # (TB, H)

  # ---- single-step LSTM cell: two fused gate GEMMs -----------------------
  gates = mm(x, wih_ref[...]) + mm(h0, whh_ref[...]) + blstm_ref[...]  # (TB,4H)
  i_g = jax.nn.sigmoid(gates[:, 0 * H:1 * H])
  f_g = jax.nn.sigmoid(gates[:, 1 * H:2 * H])
  g_g = jnp.tanh(gates[:, 2 * H:3 * H])
  o_g = jax.nn.sigmoid(gates[:, 3 * H:4 * H])
  c = f_g * c0 + i_g * g_g
  h = o_g * jnp.tanh(c)
  h_ref[...] = h
  c_ref[...] = c

  # ---- additive attention over encoder memory (lane-major scores) --------
  enc = enc_ref[...]                                      # (TB, L, H)
  enc2 = enc.reshape(TB * L, H)                           # tile-aligned merge (L % 8 == 0)
  scores_h = mm(h, whid_ref[...]) + bhid_ref[...]         # (TB, H)
  scores_m = (mm(enc2, wmem_ref[...]) + bmem_ref[...]).reshape(TB, L, H)
  sc = jnp.tanh(scores_h[:, None, :] + scores_m)          # (TB, L, H)

  # v-projection -> (TB, 1, L) with L on the lane axis (flash-style einsum)
  vw_b = jnp.broadcast_to(vw_ref[...].reshape(1, 1, H), (TB, 1, H))
  scores = jnp.einsum('bqh,blh->bql', vw_b, sc,
                      preferred_element_type=f32) + scal_ref[0]
  mask = mask_ref[...]                                    # (TB, 1, L), 1.0 == masked
  scores = jnp.where(mask > 0.5, f32(-1e20), scores)

  m = jnp.max(scores, axis=-1, keepdims=True)             # (TB, 1, 1)
  e = jnp.exp(scores - m)
  s = jnp.sum(e, axis=-1, keepdims=True)                  # (TB, 1, 1)
  attn = e / s                                            # softmax,     (TB, 1, L)
  log_attn = (scores - m) - jnp.log(s)                    # log_softmax, (TB, 1, L)
  context = jnp.einsum('bql,blh->bqh', attn, enc,
                       preferred_element_type=f32).reshape(TB, H)

  # ---- output head --------------------------------------------------------
  hpar = hpar_ref[...]                                    # (TB, H)
  g_out = jnp.tanh(mm(context, wg_ref[0]) + mm(h, wg_ref[1])
                   + mm(hpar, wg_ref[2]) + bg_ref[...])   # (TB, H)
  logits = mm(g_out, wo_ref[...]) + bo_ref[...]           # (TB, V)
  lm = jnp.max(logits, axis=-1, keepdims=True)
  w_t = (logits - lm) - jnp.log(
      jnp.sum(jnp.exp(logits - lm), axis=-1, keepdims=True))

  # ---- pointer switcher: 1-wide matmuls -> VPU multiply + lane reduce ----
  w_s = (jnp.sum(context * ws_ref[0:1, :], axis=-1, keepdims=True)
         + jnp.sum(h * ws_ref[1:2, :], axis=-1, keepdims=True)
         + scal_ref[1])                                    # (TB, 1)
  wt_ref[...] = jax.nn.log_sigmoid(w_s) + w_t              # (TB, V) lane-dense
  attn_ref[...] = jax.nn.log_sigmoid(-w_s)[:, None, :] + log_attn   # (TB, 1, L)


def _round_up(x, m):
  return ((x + m - 1) // m) * m


def decoder_attention_forward(params, n_ids, t_ids, hc, enc_out, mask, h_parent,
                              *, batch_tile=256, vmem_limit_bytes=None):
  h0, c0 = hc                      # (1, B, H) each (PyTorch LSTM state layout)
  B = n_ids.shape[0]
  L = enc_out.shape[1]
  H = params["whid"].shape[0]
  V = params["wo"].shape[1]
  E = params["wih"].shape[0]

  TB = max(8, min(int(batch_tile), _round_up(B, 8)))
  Bp = _round_up(B, TB)
  Lp = _round_up(max(L, 1), 8)

  # glue: embedding lookups + concat (dropout == 0 -> plain embedding rows)
  n_emb = jnp.take(params["embN"], n_ids, axis=0)
  t_emb = jnp.take(params["embT"], t_ids, axis=0)
  x = jnp.concatenate([n_emb, t_emb], axis=1).astype(jnp.float32)   # (B, E)

  pad_b = lambda a: jnp.pad(a, ((0, Bp - B),) + ((0, 0),) * (a.ndim - 1))
  x_p = pad_b(x)
  h0_p = pad_b(h0[0].astype(jnp.float32))
  c0_p = pad_b(c0[0].astype(jnp.float32))
  hpar_p = pad_b(h_parent.astype(jnp.float32))
  enc_p = jnp.pad(enc_out.astype(jnp.float32),
                  ((0, Bp - B), (0, Lp - L), (0, 0)))
  mask_f = mask.astype(jnp.float32)
  mask_f = jnp.pad(mask_f, ((0, Bp - B), (0, 0)))                        # pad rows: unmasked
  mask_f = jnp.pad(mask_f, ((0, 0), (0, Lp - L)), constant_values=1.0)   # pad L:   masked
  mask_q = mask_f.reshape(Bp, 1, Lp)

  row2 = lambda i: (i, 0)
  row3 = lambda i: (i, 0, 0)
  w2 = lambda shape: pl.BlockSpec(shape, lambda i: (0, 0))
  w3 = lambda shape: pl.BlockSpec(shape, lambda i: (0, 0, 0))

  in_specs = [
      pl.BlockSpec((TB, E), row2),            # x
      pl.BlockSpec((TB, H), row2),            # h0
      pl.BlockSpec((TB, H), row2),            # c0
      pl.BlockSpec((TB, Lp, H), row3),        # enc_out
      pl.BlockSpec((TB, 1, Lp), row3),        # mask (lane-major)
      pl.BlockSpec((TB, H), row2),            # h_parent
      w2((E, 4 * H)),                         # fused LSTM W_ih
      w2((H, 4 * H)),                         # fused LSTM W_hh
      w2((1, 4 * H)),                         # fused LSTM bias (b_ih + b_hh)
      w2((H, H)), w2((1, H)),                 # W_hidden
      w2((H, H)), w2((1, H)),                 # W_mem2hidden
      w2((1, H)),                             # v (row form)
      w3((3, H, H)), w2((1, H)),              # w_global (split by input chunk)
      w2((H, V)), w2((1, V)),                 # w_out
      w2((2, H)),                             # w_switcher (row form)
      pl.BlockSpec(memory_space=pltpu.MemorySpace.SMEM),   # [v.bias, w_switcher.bias]
  ]
  out_specs = (
      pl.BlockSpec((TB, V), row2),            # lane-dense log p(token)
      pl.BlockSpec((TB, 1, Lp), row3),        # lane-dense log p(copy position)
      pl.BlockSpec((TB, H), row2),
      pl.BlockSpec((TB, H), row2),
  )
  out_shape = (
      jax.ShapeDtypeStruct((Bp, V), jnp.float32),
      jax.ShapeDtypeStruct((Bp, 1, Lp), jnp.float32),
      jax.ShapeDtypeStruct((Bp, H), jnp.float32),
      jax.ShapeDtypeStruct((Bp, H), jnp.float32),
  )

  cp_kwargs = dict(dimension_semantics=("parallel",))   # megacore-shardable on v7x
  if vmem_limit_bytes is not None:
    cp_kwargs["vmem_limit_bytes"] = int(vmem_limit_bytes)

  wt, log_attn3, h, c = pl.pallas_call(
      _decoder_attention_kernel,
      grid=(Bp // TB,),
      in_specs=in_specs,
      out_specs=out_specs,
      out_shape=out_shape,
      compiler_params=pltpu.CompilerParams(**cp_kwargs),
  )(x_p, h0_p, c0_p, enc_p, mask_q, hpar_p,
    params["wih"], params["whh"], params["b_lstm"],
    params["whid"], params["bhid"], params["wmem"], params["bmem"], params["vw"],
    params["wg"], params["bg"], params["wo"], params["bo"],
    params["ws"], params["scal"])

  out = jnp.concatenate([wt[:B], log_attn3[:B, 0, :L]], axis=1)   # (B, V + L)
  return out, (h[:B][None], c[:B][None])


def init_params(key, H, embN, embT, vocabN, vocabT_in, vocabT_out):
  E = embN + embT
  ks = jax.random.split(key, 18)
  u = lambda k, shape: jax.random.uniform(k, shape, jnp.float32, -0.1, 0.1)

  # PyTorch-shaped parameters
  embN_w = u(ks[0], (vocabN, embN))
  embT_w = u(ks[1], (vocabT_in, embT))
  w_ih = u(ks[2], (4 * H, E)); w_hh = u(ks[3], (4 * H, H))
  b_ih = u(ks[4], (4 * H,));   b_hh = u(ks[5], (4 * H,))
  whid_w = u(ks[6], (H, H));   whid_b = u(ks[7], (H,))
  wmem_w = u(ks[8], (H, H));   wmem_b = u(ks[9], (H,))
  v_w = u(ks[10], (1, H));     v_b = u(ks[11], (1,))
  wg_w = u(ks[12], (H, 3 * H)); wg_b = u(ks[13], (H,))
  wo_w = u(ks[14], (vocabT_out, H)); wo_b = u(ks[15], (vocabT_out,))
  ws_w = u(ks[16], (1, 2 * H)); ws_b = u(ks[17], (1,))

  # repack for the kernel: (in, out) layout, fused LSTM gates, row-form v/ws
  return dict(
      embN=embN_w, embT=embT_w,
      wih=w_ih.T,                                   # (E, 4H), gates i,f,g,o
      whh=w_hh.T,                                   # (H, 4H)
      b_lstm=(b_ih + b_hh).reshape(1, 4 * H),
      whid=whid_w.T, bhid=whid_b.reshape(1, H),
      wmem=wmem_w.T, bmem=wmem_b.reshape(1, H),
      vw=v_w,                                       # (1, H) row
      wg=jnp.stack([wg_w[:, 0:H].T, wg_w[:, H:2 * H].T, wg_w[:, 2 * H:3 * H].T]),
      bg=wg_b.reshape(1, H),
      wo=wo_w.T, bo=wo_b.reshape(1, vocabT_out),
      ws=jnp.stack([ws_w[0, 0:H], ws_w[0, H:2 * H]]),      # (2, H) rows
      scal=jnp.stack([v_b[0], ws_b[0]]).astype(jnp.float32),  # SMEM scalars
  )


def reference_forward(params, n_ids, t_ids, hc, enc_out, mask, h_parent):
  """Pure-JAX mirror of the PyTorch forward (for verification)."""
  h0, c0 = hc
  h0, c0 = h0[0], c0[0]
  H = params["whid"].shape[0]
  n_emb = jnp.take(params["embN"], n_ids, axis=0)
  t_emb = jnp.take(params["embT"], t_ids, axis=0)
  x = jnp.concatenate([n_emb, t_emb], axis=1)

  gates = x @ params["wih"] + h0 @ params["whh"] + params["b_lstm"]
  i = jax.nn.sigmoid(gates[:, 0:H]); f = jax.nn.sigmoid(gates[:, H:2 * H])
  g = jnp.tanh(gates[:, 2 * H:3 * H]); o = jax.nn.sigmoid(gates[:, 3 * H:4 * H])
  c = f * c0 + i * g
  h = o * jnp.tanh(c)

  sc = jnp.tanh((h @ params["whid"] + params["bhid"])[:, None, :]
                + enc_out @ params["wmem"] + params["bmem"])
  scores = jnp.einsum("blh,h->bl", sc, params["vw"][0]) + params["scal"][0]
  scores = jnp.where(mask, -1e20, scores)
  attn = jax.nn.softmax(scores, axis=1)
  context = jnp.einsum("bl,blh->bh", attn, enc_out)
  g_out = jnp.tanh(context @ params["wg"][0] + h @ params["wg"][1]
                   + h_parent @ params["wg"][2] + params["bg"])
  logits = g_out @ params["wo"] + params["bo"]
  w_t = jax.nn.log_softmax(logits, axis=1)
  log_attn = jax.nn.log_softmax(scores, axis=1)
  w_s = (context @ params["ws"][0][:, None] + h @ params["ws"][1][:, None]
         + params["scal"][1])
  out = jnp.concatenate([jax.nn.log_sigmoid(w_s) + w_t,
                         jax.nn.log_sigmoid(-w_s) + log_attn], axis=1)
  return out, (h[None], c[None])


if __name__ == "__main__":
  B, H, embN, embT = 2, 32, 16, 16
  vocabN, vocabT_in, vocabT_out = 30, 50, 40
  L = 8

  key = jax.random.PRNGKey(0)
  kp, k1, k2, k3, k4, k5, k6 = jax.random.split(key, 7)
  params = init_params(kp, H, embN, embT, vocabN, vocabT_in, vocabT_out)

  n_ids = jax.random.randint(k1, (B,), 0, vocabN)
  t_ids = jax.random.randint(k2, (B,), 0, vocabT_in)
  h0 = jax.random.normal(k3, (1, B, H), jnp.float32) * 0.1
  c0 = jax.random.normal(k4, (1, B, H), jnp.float32) * 0.1
  enc_out = jax.random.normal(k5, (B, L, H), jnp.float32) * 0.1
  h_parent = jax.random.normal(k6, (B, H), jnp.float32) * 0.1
  mask = jnp.arange(L)[None, :] >= jnp.array([6, L])[:, None]    # (B, L) bool

  out, (h, c) = decoder_attention_forward(params, n_ids, t_ids, (h0, c0),
                                          enc_out, mask, h_parent)
  jax.block_until_ready((out, h, c))

  ref_out, (ref_h, ref_c) = reference_forward(params, n_ids, t_ids, (h0, c0),
                                              enc_out, mask, h_parent)
  assert out.shape == (B, vocabT_out + L)
  assert jnp.allclose(out, ref_out, atol=1e-4, rtol=1e-4)
  assert jnp.allclose(h, ref_h, atol=1e-5, rtol=1e-5)
  assert jnp.allclose(c, ref_c, atol=1e-5, rtol=1e-5)
  print("KERNEL_OK")
</pallas_src>

<mosaic_0001>
module attributes {stable_mosaic.version = 11 : i64} {
  func.func @_decoder_attention_kernel(%arg0: i32, %arg1: memref<8x32xf32, #tpu.memory_space<vmem>>, %arg2: memref<8x32xf32, #tpu.memory_space<vmem>>, %arg3: memref<8x32xf32, #tpu.memory_space<vmem>>, %arg4: memref<8x8x32xf32, #tpu.memory_space<vmem>>, %arg5: memref<8x1x8xf32, #tpu.memory_space<vmem>>, %arg6: memref<8x32xf32, #tpu.memory_space<vmem>>, %arg7: memref<32x128xf32, #tpu.memory_space<vmem>>, %arg8: memref<32x128xf32, #tpu.memory_space<vmem>>, %arg9: memref<1x128xf32, #tpu.memory_space<vmem>>, %arg10: memref<32x32xf32, #tpu.memory_space<vmem>>, %arg11: memref<1x32xf32, #tpu.memory_space<vmem>>, %arg12: memref<32x32xf32, #tpu.memory_space<vmem>>, %arg13: memref<1x32xf32, #tpu.memory_space<vmem>>, %arg14: memref<1x32xf32, #tpu.memory_space<vmem>>, %arg15: memref<3x32x32xf32, #tpu.memory_space<vmem>>, %arg16: memref<1x32xf32, #tpu.memory_space<vmem>>, %arg17: memref<32x40xf32, #tpu.memory_space<vmem>>, %arg18: memref<1x40xf32, #tpu.memory_space<vmem>>, %arg19: memref<2x32xf32, #tpu.memory_space<vmem>>, %arg20: memref<2xf32, #tpu.memory_space<smem>>, %arg21: memref<8x40xf32, #tpu.memory_space<vmem>>, %arg22: memref<8x1x8xf32, #tpu.memory_space<vmem>>, %arg23: memref<8x32xf32, #tpu.memory_space<vmem>>, %arg24: memref<8x32xf32, #tpu.memory_space<vmem>>) attributes {dimension_semantics = [#tpu.dimension_semantics<parallel>], iteration_bounds = array<i64: 1>, scalar_prefetch = 0 : i64, scratch_operands = 0 : i64, tpu.core_type = #tpu.core_type<tc>, window_params = [{transform_indices = @transform_0, window_bounds = array<i64: 8, 32>}, {transform_indices = @transform_1, window_bounds = array<i64: 8, 32>}, {transform_indices = @transform_2, window_bounds = array<i64: 8, 32>}, {transform_indices = @transform_3, window_bounds = array<i64: 8, 8, 32>}, {transform_indices = @transform_4, window_bounds = array<i64: 8, 1, 8>}, {transform_indices = @transform_5, window_bounds = array<i64: 8, 32>}, {pipeline_mode = #tpu.pipeline_mode<synchronous>, transform_indices = @transform_6, window_bounds = array<i64: 32, 128>}, {pipeline_mode = #tpu.pipeline_mode<synchronous>, transform_indices = @transform_7, window_bounds = array<i64: 32, 128>}, {pipeline_mode = #tpu.pipeline_mode<synchronous>, transform_indices = @transform_8, window_bounds = array<i64: 1, 128>}, {pipeline_mode = #tpu.pipeline_mode<synchronous>, transform_indices = @transform_9, window_bounds = array<i64: 32, 32>}, {pipeline_mode = #tpu.pipeline_mode<synchronous>, transform_indices = @transform_10, window_bounds = array<i64: 1, 32>}, {pipeline_mode = #tpu.pipeline_mode<synchronous>, transform_indices = @transform_11, window_bounds = array<i64: 32, 32>}, {pipeline_mode = #tpu.pipeline_mode<synchronous>, transform_indices = @transform_12, window_bounds = array<i64: 1, 32>}, {pipeline_mode = #tpu.pipeline_mode<synchronous>, transform_indices = @transform_13, window_bounds = array<i64: 1, 32>}, {pipeline_mode = #tpu.pipeline_mode<synchronous>, transform_indices = @transform_14, window_bounds = array<i64: 3, 32, 32>}, {pipeline_mode = #tpu.pipeline_mode<synchronous>, transform_indices = @transform_15, window_bounds = array<i64: 1, 32>}, {pipeline_mode = #tpu.pipeline_mode<synchronous>, transform_indices = @transform_16, window_bounds = array<i64: 32, 40>}, {pipeline_mode = #tpu.pipeline_mode<synchronous>, transform_indices = @transform_17, window_bounds = array<i64: 1, 40>}, {pipeline_mode = #tpu.pipeline_mode<synchronous>, transform_indices = @transform_18, window_bounds = array<i64: 2, 32>}, {transform_indices = @transform_19, window_bounds = array<i64: 2>}, {transform_indices = @transform_20, window_bounds = array<i64: 8, 40>}, {transform_indices = @transform_21, window_bounds = array<i64: 8, 1, 8>}, {transform_indices = @transform_22, window_bounds = array<i64: 8, 32>}, {transform_indices = @transform_23, window_bounds = array<i64: 8, 32>}]} {
    %c0 = arith.constant 0 : index
    %c0_0 = arith.constant 0 : index
    %0 = vector.load %arg1[%c0, %c0_0] : memref<8x32xf32, #tpu.memory_space<vmem>>, vector<8x32xf32>
    %c0_1 = arith.constant 0 : index
    %c0_2 = arith.constant 0 : index
    %1 = vector.load %arg2[%c0_1, %c0_2] : memref<8x32xf32, #tpu.memory_space<vmem>>, vector<8x32xf32>
    %c0_3 = arith.constant 0 : index
    %c0_4 = arith.constant 0 : index
    %2 = vector.load %arg3[%c0_3, %c0_4] : memref<8x32xf32, #tpu.memory_space<vmem>>, vector<8x32xf32>
    %c0_5 = arith.constant 0 : index
    %c0_6 = arith.constant 0 : index
    %3 = vector.load %arg7[%c0_5, %c0_6] : memref<32x128xf32, #tpu.memory_space<vmem>>, vector<32x128xf32>
    %cst = arith.constant dense<0.000000e+00> : vector<8x128xf32>
    %4 = tpu.matmul %0, %3, %cst {dimension_numbers = #tpu.dot_dimension_numbers<[1], [0], [0], [1], [0, 0, 1, 1], [], []>} : vector<8x32xf32>, vector<32x128xf32>, vector<8x128xf32> -> vector<8x128xf32>
    %c0_7 = arith.constant 0 : index
    %c0_8 = arith.constant 0 : index
    %5 = vector.load %arg8[%c0_7, %c0_8] : memref<32x128xf32, #tpu.memory_space<vmem>>, vector<32x128xf32>
    %cst_9 = arith.constant dense<0.000000e+00> : vector<8x128xf32>
    %6 = tpu.matmul %1, %5, %cst_9 {dimension_numbers = #tpu.dot_dimension_numbers<[1], [0], [0], [1], [0, 0, 1, 1], [], []>} : vector<8x32xf32>, vector<32x128xf32>, vector<8x128xf32> -> vector<8x128xf32>
    %7 = arith.addf %4, %6 : vector<8x128xf32>
    %c0_10 = arith.constant 0 : index
    %c0_11 = arith.constant 0 : index
    %8 = vector.load %arg9[%c0_10, %c0_11] : memref<1x128xf32, #tpu.memory_space<vmem>>, vector<1x128xf32>
    %9 = vector.broadcast %8 : vector<1x128xf32> to vector<8x128xf32>
    %10 = arith.addf %7, %9 : vector<8x128xf32>
    %11 = vector.extract_strided_slice %10 {offsets = [0, 0], sizes = [8, 32], strides = [1, 1]} : vector<8x128xf32> to vector<8x32xf32>
    %12 = arith.negf %11 : vector<8x32xf32>
    %13 = math.exp %12 : vector<8x32xf32>
    %cst_12 = arith.constant 1.000000e+00 : f32
    %14 = vector.broadcast %cst_12 : f32 to vector<8x32xf32>
    %15 = arith.addf %14, %13 : vector<8x32xf32>
    %16 = arith.divf %14, %15 : vector<8x32xf32>
    %17 = vector.extract_strided_slice %10 {offsets = [0, 32], sizes = [8, 32], strides = [1, 1]} : vector<8x128xf32> to vector<8x32xf32>
    %18 = arith.negf %17 : vector<8x32xf32>
    %19 = math.exp %18 : vector<8x32xf32>
    %cst_13 = arith.constant 1.000000e+00 : f32
    %20 = vector.broadcast %cst_13 : f32 to vector<8x32xf32>
    %21 = arith.addf %20, %19 : vector<8x32xf32>
    %22 = arith.divf %20, %21 : vector<8x32xf32>
    %23 = vector.extract_strided_slice %10 {offsets = [0, 64], sizes = [8, 32], strides = [1, 1]} : vector<8x128xf32> to vector<8x32xf32>
    %24 = math.tanh %23 : vector<8x32xf32>
    %25 = vector.extract_strided_slice %10 {offsets = [0, 96], sizes = [8, 32], strides = [1, 1]} : vector<8x128xf32> to vector<8x32xf32>
    %26 = arith.negf %25 : vector<8x32xf32>
    %27 = math.exp %26 : vector<8x32xf32>
    %cst_14 = arith.constant 1.000000e+00 : f32
    %28 = vector.broadcast %cst_14 : f32 to vector<8x32xf32>
    %29 = arith.addf %28, %27 : vector<8x32xf32>
    %30 = arith.divf %28, %29 : vector<8x32xf32>
    %31 = arith.mulf %22, %2 : vector<8x32xf32>
    %32 = arith.mulf %16, %24 : vector<8x32xf32>
    %33 = arith.addf %31, %32 : vector<8x32xf32>
    %34 = math.tanh %33 : vector<8x32xf32>
    %35 = arith.mulf %30, %34 : vector<8x32xf32>
    %c0_15 = arith.constant 0 : index
    %c0_16 = arith.constant 0 : index
    %36 = vector.load %arg23[%c0_15, %c0_16] : memref<8x32xf32, #tpu.memory_space<vmem>>, vector<8x32xf32>
    tpu.vector_store %arg23[%c0_15, %c0_16], %35 {strides = array<i32>} : memref<8x32xf32, #tpu.memory_space<vmem>>, vector<8x32xf32>,
    %c0_17 = arith.constant 0 : index
    %c0_18 = arith.constant 0 : index
    %37 = vector.load %arg24[%c0_17, %c0_18] : memref<8x32xf32, #tpu.memory_space<vmem>>, vector<8x32xf32>
    tpu.vector_store %arg24[%c0_17, %c0_18], %33 {strides = array<i32>} : memref<8x32xf32, #tpu.memory_space<vmem>>, vector<8x32xf32>,
    %c0_19 = arith.constant 0 : index
    %c0_20 = arith.constant 0 : index
    %c0_21 = arith.constant 0 : index
    %38 = vector.load %arg4[%c0_19, %c0_20, %c0_21] : memref<8x8x32xf32, #tpu.memory_space<vmem>>, vector<8x8x32xf32>
    %39 = vector.shape_cast %38 : vector<8x8x32xf32> to vector<64x32xf32>
    %c0_22 = arith.constant 0 : index
    %c0_23 = arith.constant 0 : index
    %40 = vector.load %arg10[%c0_22, %c0_23] : memref<32x32xf32, #tpu.memory_space<vmem>>, vector<32x32xf32>
    %cst_24 = arith.constant dense<0.000000e+00> : vector<8x32xf32>
    %41 = tpu.matmul %35, %40, %cst_24 {dimension_numbers = #tpu.dot_dimension_numbers<[1], [0], [0], [1], [0, 0, 1, 1], [], []>} : vector<8x32xf32>, vector<32x32xf32>, vector<8x32xf32> -> vector<8x32xf32>
    %c0_25 = arith.constant 0 : index
    %c0_26 = arith.constant 0 : index
    %42 = vector.load %arg11[%c0_25, %c0_26] : memref<1x32xf32, #tpu.memory_space<vmem>>, vector<1x32xf32>
    %43 = vector.broadcast %42 : vector<1x32xf32> to vector<8x32xf32>
    %44 = arith.addf %41, %43 : vector<8x32xf32>
    %c0_27 = arith.constant 0 : index
    %c0_28 = arith.constant 0 : index
    %45 = vector.load %arg12[%c0_27, %c0_28] : memref<32x32xf32, #tpu.memory_space<vmem>>, vector<32x32xf32>
    %cst_29 = arith.constant dense<0.000000e+00> : vector<64x32xf32>
    %46 = tpu.matmul %39, %45, %cst_29 {dimension_numbers = #tpu.dot_dimension_numbers<[1], [0], [0], [1], [0, 0, 1, 1], [], []>} : vector<64x32xf32>, vector<32x32xf32>, vector<64x32xf32> -> vector<64x32xf32>
    %c0_30 = arith.constant 0 : index
    %c0_31 = arith.constant 0 : index
    %47 = vector.load %arg13[%c0_30, %c0_31] : memref<1x32xf32, #tpu.memory_space<vmem>>, vector<1x32xf32>
    %48 = vector.broadcast %47 : vector<1x32xf32> to vector<64x32xf32>
    %49 = arith.addf %46, %48 : vector<64x32xf32>
    %50 = vector.shape_cast %49 : vector<64x32xf32> to vector<8x8x32xf32>
    %51 = vector.shape_cast %44 : vector<8x32xf32> to vector<8x1x32xf32>
    %52 = vector.broadcast %51 : vector<8x1x32xf32> to vector<8x8x32xf32>
    %53 = arith.addf %52, %50 : vector<8x8x32xf32>
    %54 = math.tanh %53 : vector<8x8x32xf32>
    %c0_32 = arith.constant 0 : index
    %c0_33 = arith.constant 0 : index
    %55 = vector.load %arg14[%c0_32, %c0_33] : memref<1x32xf32, #tpu.memory_space<vmem>>, vector<1x32xf32>
    %56 = vector.shape_cast %55 : vector<1x32xf32> to vector<1x1x32xf32>
    %57 = vector.shape_cast %56 : vector<1x1x32xf32> to vector<1x1x32xf32>
    %58 = vector.broadcast %57 : vector<1x1x32xf32> to vector<8x1x32xf32>
    "tpu.trace_start"() <{level = 10 : i32, message = "bqh,blh->bql"}> : () -> ()
    %cst_34 = arith.constant dense<0.000000e+00> : vector<8x1x8xf32>
    %59 = tpu.matmul %58, %54, %cst_34 {dimension_numbers = #tpu.dot_dimension_numbers<[2], [2], [1], [1], [0, 0, 0, 1, 1, 1], [0], [0]>} : vector<8x1x32xf32>, vector<8x8x32xf32>, vector<8x1x8xf32> -> vector<8x1x8xf32>
    "tpu.trace_stop"() : () -> ()
    %c0_35 = arith.constant 0 : index
    %60 = memref.load %arg20[%c0_35] : memref<2xf32, #tpu.memory_space<smem>>
    %61 = vector.broadcast %60 : f32 to vector<8x1x8xf32>
    %62 = arith.addf %59, %61 : vector<8x1x8xf32>
    %c0_36 = arith.constant 0 : index
    %c0_37 = arith.constant 0 : index
    %c0_38 = arith.constant 0 : index
    %63 = vector.load %arg5[%c0_36, %c0_37, %c0_38] : memref<8x1x8xf32, #tpu.memory_space<vmem>>, vector<8x1x8xf32>
    %cst_39 = arith.constant 5.000000e-01 : f32
    %64 = vector.broadcast %cst_39 : f32 to vector<8x1x8xf32>
    %65 = arith.cmpf ogt, %63, %64 : vector<8x1x8xf32>
    %cst_40 = arith.constant -1.000000e+20 : f32
    %66 = vector.broadcast %cst_40 : f32 to vector<8x1x8xf32>
    %67 = arith.select %65, %66, %62 : vector<8x1x8xi1>, vector<8x1x8xf32>
    %cst_41 = arith.constant dense<0xFF800000> : vector<8x1xf32>
    %68 = vector.multi_reduction <maximumf>, %67, %cst_41 [2] : vector<8x1x8xf32> to vector<8x1xf32>
    %69 = vector.shape_cast %68 : vector<8x1xf32> to vector<8x1x1xf32>
    %70 = vector.broadcast %69 : vector<8x1x1xf32> to vector<8x1x8xf32>
    %71 = arith.subf %67, %70 : vector<8x1x8xf32>
    %72 = math.exp %71 : vector<8x1x8xf32>
    %cst_42 = arith.constant dense<0.000000e+00> : vector<8x1xf32>
    %73 = vector.multi_reduction <add>, %72, %cst_42 [2] : vector<8x1x8xf32> to vector<8x1xf32>
    %74 = vector.shape_cast %73 : vector<8x1xf32> to vector<8x1x1xf32>
    %75 = vector.broadcast %74 : vector<8x1x1xf32> to vector<8x1x8xf32>
    %76 = arith.divf %72, %75 : vector<8x1x8xf32>
    %77 = vector.broadcast %69 : vector<8x1x1xf32> to vector<8x1x8xf32>
    %78 = arith.subf %67, %77 : vector<8x1x8xf32>
    %79 = math.log %74 : vector<8x1x1xf32>
    %80 = vector.broadcast %79 : vector<8x1x1xf32> to vector<8x1x8xf32>
    %81 = arith.subf %78, %80 : vector<8x1x8xf32>
    "tpu.trace_start"() <{level = 10 : i32, message = "bql,blh->bqh"}> : () -> ()
    %cst_43 = arith.constant dense<0.000000e+00> : vector<8x1x32xf32>
    %82 = tpu.matmul %76, %38, %cst_43 {dimension_numbers = #tpu.dot_dimension_numbers<[2], [1], [1], [2], [0, 0, 0, 1, 1, 2], [0], [0]>} : vector<8x1x8xf32>, vector<8x8x32xf32>, vector<8x1x32xf32> -> vector<8x1x32xf32>
    "tpu.trace_stop"() : () -> ()
    %83 = vector.shape_cast %82 : vector<8x1x32xf32> to vector<8x32xf32>
    %c0_44 = arith.constant 0 : index
    %c0_45 = arith.constant 0 : index
    %84 = vector.load %arg6[%c0_44, %c0_45] : memref<8x32xf32, #tpu.memory_space<vmem>>, vector<8x32xf32>
    %c0_46 = arith.constant 0 : index
    %c0_47 = arith.constant 0 : index
    %c0_48 = arith.constant 0 : index
    %85 = vector.load %arg15[%c0_46, %c0_47, %c0_48] : memref<3x32x32xf32, #tpu.memory_space<vmem>>, vector<1x32x32xf32>
    %86 = vector.shape_cast %85 : vector<1x32x32xf32> to vector<32x32xf32>
    %cst_49 = arith.constant dense<0.000000e+00> : vector<8x32xf32>
    %87 = tpu.matmul %83, %86, %cst_49 {dimension_numbers = #tpu.dot_dimension_numbers<[1], [0], [0], [1], [0, 0, 1, 1], [], []>} : vector<8x32xf32>, vector<32x32xf32>, vector<8x32xf32> -> vector<8x32xf32>
    %c1 = arith.constant 1 : index
    %c0_50 = arith.constant 0 : index
    %c0_51 = arith.constant 0 : index
    %88 = vector.load %arg15[%c1, %c0_50, %c0_51] : memref<3x32x32xf32, #tpu.memory_space<vmem>>, vector<1x32x32xf32>
    %89 = vector.shape_cast %88 : vector<1x32x32xf32> to vector<32x32xf32>
    %cst_52 = arith.constant dense<0.000000e+00> : vector<8x32xf32>
    %90 = tpu.matmul %35, %89, %cst_52 {dimension_numbers = #tpu.dot_dimension_numbers<[1], [0], [0], [1], [0, 0, 1, 1], [], []>} : vector<8x32xf32>, vector<32x32xf32>, vector<8x32xf32> -> vector<8x32xf32>
    %91 = arith.addf %87, %90 : vector<8x32xf32>
    %c2 = arith.constant 2 : index
    %c0_53 = arith.constant 0 : index
    %c0_54 = arith.constant 0 : index
    %92 = vector.load %arg15[%c2, %c0_53, %c0_54] : memref<3x32x32xf32, #tpu.memory_space<vmem>>, vector<1x32x32xf32>
    %93 = vector.shape_cast %92 : vector<1x32x32xf32> to vector<32x32xf32>
    %cst_55 = arith.constant dense<0.000000e+00> : vector<8x32xf32>
    %94 = tpu.matmul %84, %93, %cst_55 {dimension_numbers = #tpu.dot_dimension_numbers<[1], [0], [0], [1], [0, 0, 1, 1], [], []>} : vector<8x32xf32>, vector<32x32xf32>, vector<8x32xf32> -> vector<8x32xf32>
    %95 = arith.addf %91, %94 : vector<8x32xf32>
    %c0_56 = arith.constant 0 : index
    %c0_57 = arith.constant 0 : index
    %96 = vector.load %arg16[%c0_56, %c0_57] : memref<1x32xf32, #tpu.memory_space<vmem>>, vector<1x32xf32>
    %97 = vector.broadcast %96 : vector<1x32xf32> to vector<8x32xf32>
    %98 = arith.addf %95, %97 : vector<8x32xf32>
    %99 = math.tanh %98 : vector<8x32xf32>
    %c0_58 = arith.constant 0 : index
    %c0_59 = arith.constant 0 : index
    %100 = vector.load %arg17[%c0_58, %c0_59] : memref<32x40xf32, #tpu.memory_space<vmem>>, vector<32x40xf32>
    %cst_60 = arith.constant dense<0.000000e+00> : vector<8x40xf32>
    %101 = tpu.matmul %99, %100, %cst_60 {dimension_numbers = #tpu.dot_dimension_numbers<[1], [0], [0], [1], [0, 0, 1, 1], [], []>} : vector<8x32xf32>, vector<32x40xf32>, vector<8x40xf32> -> vector<8x40xf32>
    %c0_61 = arith.constant 0 : index
    %c0_62 = arith.constant 0 : index
    %102 = vector.load %arg18[%c0_61, %c0_62] : memref<1x40xf32, #tpu.memory_space<vmem>>, vector<1x40xf32>
    %103 = vector.broadcast %102 : vector<1x40xf32> to vector<8x40xf32>
    %104 = arith.addf %101, %103 : vector<8x40xf32>
    %cst_63 = arith.constant dense<0xFF800000> : vector<8xf32>
    %105 = vector.multi_reduction <maximumf>, %104, %cst_63 [1] : vector<8x40xf32> to vector<8xf32>
    %106 = vector.shape_cast %105 : vector<8xf32> to vector<8x1xf32>
    %107 = vector.broadcast %106 : vector<8x1xf32> to vector<8x40xf32>
    %108 = arith.subf %104, %107 : vector<8x40xf32>
    %109 = vector.broadcast %106 : vector<8x1xf32> to vector<8x40xf32>
    %110 = arith.subf %104, %109 : vector<8x40xf32>
    %111 = math.exp %110 : vector<8x40xf32>
    %cst_64 = arith.constant dense<0.000000e+00> : vector<8xf32>
    %112 = vector.multi_reduction <add>, %111, %cst_64 [1] : vector<8x40xf32> to vector<8xf32>
    %113 = vector.shape_cast %112 : vector<8xf32> to vector<8x1xf32>
    %114 = math.log %113 : vector<8x1xf32>
    %115 = vector.broadcast %114 : vector<8x1xf32> to vector<8x40xf32>
    %116 = arith.subf %108, %115 : vector<8x40xf32>
    %c0_65 = arith.constant 0 : index
    %c0_66 = arith.constant 0 : index
    %117 = vector.load %arg19[%c0_65, %c0_66] : memref<2x32xf32, #tpu.memory_space<vmem>>, vector<1x32xf32>
    %118 = vector.broadcast %117 : vector<1x32xf32> to vector<8x32xf32>
    %119 = arith.mulf %83, %118 : vector<8x32xf32>
    %cst_67 = arith.constant dense<0.000000e+00> : vector<8xf32>
    %120 = vector.multi_reduction <add>, %119, %cst_67 [1] : vector<8x32xf32> to vector<8xf32>
    %121 = vector.shape_cast %120 : vector<8xf32> to vector<8x1xf32>
    %c1_68 = arith.constant 1 : index
    %c0_69 = arith.constant 0 : index
    %122 = vector.load %arg19[%c1_68, %c0_69] : memref<2x32xf32, #tpu.memory_space<vmem>>, vector<1x32xf32>
    %123 = vector.broadcast %122 : vector<1x32xf32> to vector<8x32xf32>
    %124 = arith.mulf %35, %123 : vector<8x32xf32>
    %cst_70 = arith.constant dense<0.000000e+00> : vector<8xf32>
    %125 = vector.multi_reduction <add>, %124, %cst_70 [1] : vector<8x32xf32> to vector<8xf32>
    %126 = vector.shape_cast %125 : vector<8xf32> to vector<8x1xf32>
    %127 = arith.addf %121, %126 : vector<8x1xf32>
    %c1_71 = arith.constant 1 : index
    %128 = memref.load %arg20[%c1_71] : memref<2xf32, #tpu.memory_space<smem>>
    %129 = vector.broadcast %128 : f32 to vector<8x1xf32>
    %130 = arith.addf %127, %129 : vector<8x1xf32>
    %cst_72 = arith.constant 0.000000e+00 : f32
    %131 = vector.broadcast %cst_72 : f32 to vector<8x1xf32>
    %132 = arith.subf %131, %130 : vector<8x1xf32>
    %cst_73 = arith.constant 0.000000e+00 : f32
    %133 = vector.broadcast %cst_73 : f32 to vector<8x1xf32>
    %134 = arith.maximumf %132, %133 : vector<8x1xf32>
    %135 = vector.broadcast %cst_73 : f32 to vector<8x1xf32>
    %136 = arith.subf %132, %135 : vector<8x1xf32>
    %137 = arith.cmpf one, %136, %136 : vector<8x1xf32>
    %138 = vector.broadcast %cst_73 : f32 to vector<8x1xf32>
    %139 = arith.addf %132, %138 : vector<8x1xf32>
    %140 = math.absf %136 : vector<8x1xf32>
    %cst_74 = arith.constant 0.000000e+00 : f32
    %141 = vector.broadcast %cst_74 : f32 to vector<8x1xf32>
    %142 = arith.subf %141, %140 : vector<8x1xf32>
    %143 = math.exp %142 : vector<8x1xf32>
    %144 = math.log1p %143 : vector<8x1xf32>
    %145 = arith.addf %134, %144 : vector<8x1xf32>
    %146 = arith.select %137, %139, %145 : vector<8x1xi1>, vector<8x1xf32>
    %cst_75 = arith.constant 0.000000e+00 : f32
    %147 = vector.broadcast %cst_75 : f32 to vector<8x1xf32>
    %148 = arith.subf %147, %146 : vector<8x1xf32>
    %149 = vector.broadcast %148 : vector<8x1xf32> to vector<8x40xf32>
    %150 = arith.addf %149, %116 : vector<8x40xf32>
    %c0_76 = arith.constant 0 : index
    %c0_77 = arith.constant 0 : index
    %151 = vector.load %arg21[%c0_76, %c0_77] : memref<8x40xf32, #tpu.memory_space<vmem>>, vector<8x40xf32>
    tpu.vector_store %arg21[%c0_76, %c0_77], %150 {strides = array<i32>} : memref<8x40xf32, #tpu.memory_space<vmem>>, vector<8x40xf32>,
    %cst_78 = arith.constant 0.000000e+00 : f32
    %152 = vector.broadcast %cst_78 : f32 to vector<8x1xf32>
    %153 = arith.subf %152, %130 : vector<8x1xf32>
    %cst_79 = arith.constant 0.000000e+00 : f32
    %154 = vector.broadcast %cst_79 : f32 to vector<8x1xf32>
    %155 = arith.subf %154, %153 : vector<8x1xf32>
    %cst_80 = arith.constant 0.000000e+00 : f32
    %156 = vector.broadcast %cst_80 : f32 to vector<8x1xf32>
    %157 = arith.maximumf %155, %156 : vector<8x1xf32>
    %158 = vector.broadcast %cst_80 : f32 to vector<8x1xf32>
    %159 = arith.subf %155, %158 : vector<8x1xf32>
    %160 = arith.cmpf one, %159, %159 : vector<8x1xf32>
    %161 = vector.broadcast %cst_80 : f32 to vector<8x1xf32>
    %162 = arith.addf %155, %161 : vector<8x1xf32>
    %163 = math.absf %159 : vector<8x1xf32>
    %cst_81 = arith.constant 0.000000e+00 : f32
    %164 = vector.broadcast %cst_81 : f32 to vector<8x1xf32>
    %165 = arith.subf %164, %163 : vector<8x1xf32>
    %166 = math.exp %165 : vector<8x1xf32>
    %167 = math.log1p %166 : vector<8x1xf32>
    %168 = arith.addf %157, %167 : vector<8x1xf32>
    %169 = arith.select %160, %162, %168 : vector<8x1xi1>, vector<8x1xf32>
    %cst_82 = arith.constant 0.000000e+00 : f32
    %170 = vector.broadcast %cst_82 : f32 to vector<8x1xf32>
    %171 = arith.subf %170, %169 : vector<8x1xf32>
    %172 = vector.shape_cast %171 : vector<8x1xf32> to vector<8x1x1xf32>
    %173 = vector.broadcast %172 : vector<8x1x1xf32> to vector<8x1x8xf32>
    %174 = arith.addf %173, %81 : vector<8x1x8xf32>
    %c0_83 = arith.constant 0 : index
    %c0_84 = arith.constant 0 : index
    %c0_85 = arith.constant 0 : index
    %175 = vector.load %arg22[%c0_83, %c0_84, %c0_85] : memref<8x1x8xf32, #tpu.memory_space<vmem>>, vector<8x1x8xf32>
    tpu.vector_store %arg22[%c0_83, %c0_84, %c0_85], %174 {strides = array<i32>} : memref<8x1x8xf32, #tpu.memory_space<vmem>>, vector<8x1x8xf32>,
    return
  }
  func.func @transform_0(%arg0: i32) -> (i32, i32) {
    %c0_i32 = arith.constant 0 : i32
    %c0_i32_0 = arith.constant 0 : i32
    return %arg0, %c0_i32 : i32, i32
  }
  func.func @transform_1(%arg0: i32) -> (i32, i32) {
    %c0_i32 = arith.constant 0 : i32
    %c0_i32_0 = arith.constant 0 : i32
    return %arg0, %c0_i32 : i32, i32
  }
  func.func @transform_2(%arg0: i32) -> (i32, i32) {
    %c0_i32 = arith.constant 0 : i32
    %c0_i32_0 = arith.constant 0 : i32
    return %arg0, %c0_i32 : i32, i32
  }
  func.func @transform_3(%arg0: i32) -> (i32, i32, i32) {
    %c0_i32 = arith.constant 0 : i32
    %c0_i32_0 = arith.constant 0 : i32
    %c0_i32_1 = arith.constant 0 : i32
    return %arg0, %c0_i32, %c0_i32_0 : i32, i32, i32
  }
  func.func @transform_4(%arg0: i32) -> (i32, i32, i32) {
    %c0_i32 = arith.constant 0 : i32
    %c0_i32_0 = arith.constant 0 : i32
    %c0_i32_1 = arith.constant 0 : i32
    return %arg0, %c0_i32, %c0_i32_0 : i32, i32, i32
  }
  func.func @transform_5(%arg0: i32) -> (i32, i32) {
    %c0_i32 = arith.constant 0 : i32
    %c0_i32_0 = arith.constant 0 : i32
    return %arg0, %c0_i32 : i32, i32
  }
  func.func @transform_6(%arg0: i32) -> (i32, i32) {
    %c0_i32 = arith.constant 0 : i32
    %c0_i32_0 = arith.constant 0 : i32
    %c0_i32_1 = arith.constant 0 : i32
    return %c0_i32, %c0_i32_0 : i32, i32
  }
  func.func @transform_7(%arg0: i32) -> (i32, i32) {
    %c0_i32 = arith.constant 0 : i32
    %c0_i32_0 = arith.constant 0 : i32
    %c0_i32_1 = arith.constant 0 : i32
    return %c0_i32, %c0_i32_0 : i32, i32
  }
  func.func @transform_8(%arg0: i32) -> (i32, i32) {
    %c0_i32 = arith.constant 0 : i32
    %c0_i32_0 = arith.constant 0 : i32
    %c0_i32_1 = arith.constant 0 : i32
    return %c0_i32, %c0_i32_0 : i32, i32
  }
  func.func @transform_9(%arg0: i32) -> (i32, i32) {
    %c0_i32 = arith.constant 0 : i32
    %c0_i32_0 = arith.constant 0 : i32
    %c0_i32_1 = arith.constant 0 : i32
    return %c0_i32, %c0_i32_0 : i32, i32
  }
  func.func @transform_10(%arg0: i32) -> (i32, i32) {
    %c0_i32 = arith.constant 0 : i32
    %c0_i32_0 = arith.constant 0 : i32
    %c0_i32_1 = arith.constant 0 : i32
    return %c0_i32, %c0_i32_0 : i32, i32
  }
  func.func @transform_11(%arg0: i32) -> (i32, i32) {
    %c0_i32 = arith.constant 0 : i32
    %c0_i32_0 = arith.constant 0 : i32
    %c0_i32_1 = arith.constant 0 : i32
    return %c0_i32, %c0_i32_0 : i32, i32
  }
  func.func @transform_12(%arg0: i32) -> (i32, i32) {
    %c0_i32 = arith.constant 0 : i32
    %c0_i32_0 = arith.constant 0 : i32
    %c0_i32_1 = arith.constant 0 : i32
    return %c0_i32, %c0_i32_0 : i32, i32
  }
  func.func @transform_13(%arg0: i32) -> (i32, i32) {
    %c0_i32 = arith.constant 0 : i32
    %c0_i32_0 = arith.constant 0 : i32
    %c0_i32_1 = arith.constant 0 : i32
    return %c0_i32, %c0_i32_0 : i32, i32
  }
  func.func @transform_14(%arg0: i32) -> (i32, i32, i32) {
    %c0_i32 = arith.constant 0 : i32
    %c0_i32_0 = arith.constant 0 : i32
    %c0_i32_1 = arith.constant 0 : i32
    %c0_i32_2 = arith.constant 0 : i32
    return %c0_i32, %c0_i32_0, %c0_i32_1 : i32, i32, i32
  }
  func.func @transform_15(%arg0: i32) -> (i32, i32) {
    %c0_i32 = arith.constant 0 : i32
    %c0_i32_0 = arith.constant 0 : i32
    %c0_i32_1 = arith.constant 0 : i32
    return %c0_i32, %c0_i32_0 : i32, i32
  }
  func.func @transform_16(%arg0: i32) -> (i32, i32) {
    %c0_i32 = arith.constant 0 : i32
    %c0_i32_0 = arith.constant 0 : i32
    %c0_i32_1 = arith.constant 0 : i32
    return %c0_i32, %c0_i32_0 : i32, i32
  }
  func.func @transform_17(%arg0: i32) -> (i32, i32) {
    %c0_i32 = arith.constant 0 : i32
    %c0_i32_0 = arith.constant 0 : i32
    %c0_i32_1 = arith.constant 0 : i32
    return %c0_i32, %c0_i32_0 : i32, i32
  }
  func.func @transform_18(%arg0: i32) -> (i32, i32) {
    %c0_i32 = arith.constant 0 : i32
    %c0_i32_0 = arith.constant 0 : i32
    %c0_i32_1 = arith.constant 0 : i32
    return %c0_i32, %c0_i32_0 : i32, i32
  }
  func.func @transform_19(%arg0: i32) -> i32 {
    %c0_i32 = arith.constant 0 : i32
    %c0_i32_0 = arith.constant 0 : i32
    return %c0_i32 : i32
  }
  func.func @transform_20(%arg0: i32) -> (i32, i32) {
    %c0_i32 = arith.constant 0 : i32
    %c0_i32_0 = arith.constant 0 : i32
    return %arg0, %c0_i32 : i32, i32
  }
  func.func @transform_21(%arg0: i32) -> (i32, i32, i32) {
    %c0_i32 = arith.constant 0 : i32
    %c0_i32_0 = arith.constant 0 : i32
    %c0_i32_1 = arith.constant 0 : i32
    return %arg0, %c0_i32, %c0_i32_0 : i32, i32, i32
  }
  func.func @transform_22(%arg0: i32) -> (i32, i32) {
    %c0_i32 = arith.constant 0 : i32
    %c0_i32_0 = arith.constant 0 : i32
    return %arg0, %c0_i32 : i32, i32
  }
  func.func @transform_23(%arg0: i32) -> (i32, i32) {
    %c0_i32 = arith.constant 0 : i32
    %c0_i32_0 = arith.constant 0 : i32
    return %arg0, %c0_i32 : i32, i32
  }
}

</mosaic_0001>

<llo_original>
// kernel: tpu_custom_call.1
$region0: #{tpu_custom_call.1}
  #allocation0 [shape = 'u32[]', space=smem, size = 0x4, offset = 0x4, fixed_abs, tag = 'smem constant byte address 0x4 - core index']
  #allocation1 [shape = 'u32[144,128]{1,0:T(1,128)}', space=vmem, size = 0x12000, scoped, tag = 'internal scratch']
  %s0 = inlined_call_operand.hbm [shape: f32[8,32], index: 0, kind: input, shape index: {}]
  %s1 = inlined_call_operand.hbm [shape: f32[8,32], index: 1, kind: input, shape index: {}]
  %s2 = inlined_call_operand.hbm [shape: f32[8,32], index: 2, kind: input, shape index: {}]
  %s3 = inlined_call_operand.hbm [shape: f32[8,8,32], index: 3, kind: input, shape index: {}]
  %s4 = inlined_call_operand.hbm [shape: f32[8,1,8], index: 4, kind: input, shape index: {}]
  %s5 = inlined_call_operand.hbm [shape: f32[8,32], index: 5, kind: input, shape index: {}]
  %s6 = inlined_call_operand.hbm [shape: f32[32,128], index: 6, kind: input, shape index: {}]
  %s7 = inlined_call_operand.hbm [shape: f32[32,128], index: 7, kind: input, shape index: {}]
  %s8 = inlined_call_operand.hbm [shape: f32[1,128], index: 8, kind: input, shape index: {}]
  %s9 = inlined_call_operand.vmem [shape: f32[32,32], index: 9, kind: input, shape index: {}]
  %s10 = inlined_call_operand.vmem [shape: f32[1,32], index: 10, kind: input, shape index: {}]
  %s11 = inlined_call_operand.hbm [shape: f32[32,32], index: 11, kind: input, shape index: {}]
  %s12 = inlined_call_operand.vmem [shape: f32[1,32], index: 12, kind: input, shape index: {}]
  %s13 = inlined_call_operand.vmem [shape: f32[1,32], index: 13, kind: input, shape index: {}]
  %s14 = inlined_call_operand.hbm [shape: f32[3,32,32], index: 14, kind: input, shape index: {}]
  %s15 = inlined_call_operand.vmem [shape: f32[1,32], index: 15, kind: input, shape index: {}]
  %s16 = inlined_call_operand.hbm [shape: f32[32,40], index: 16, kind: input, shape index: {}]
  %s17 = inlined_call_operand.vmem [shape: f32[1,40], index: 17, kind: input, shape index: {}]
  %s18 = inlined_call_operand.vmem [shape: f32[2,32], index: 18, kind: input, shape index: {}]
  %s19 = inlined_call_operand.vmem [shape: f32[2], index: 19, kind: input, shape index: {}]
  %s20 = inlined_call_operand.hbm [shape: f32[8,40], index: 20, kind: output, shape index: {0}]
  %s21 = inlined_call_operand.hbm [shape: f32[8,1,8], index: 21, kind: output, shape index: {1}]
  %s22 = inlined_call_operand.hbm [shape: f32[8,32], index: 22, kind: output, shape index: {2}]
  %s23 = inlined_call_operand.hbm [shape: f32[8,32], index: 23, kind: output, shape index: {3}]
  %24 = xla_tuple %s20, %s21, %s22, %s23
  %s25 = sld [smem:[#allocation0]]
  $region166: #{tpu_custom_call.1} parent=0
    _
  %s27 = ssub.s32 1, %s25
  %s28 = scalar_select 0, %s27, %s25
  $region1: #{tpu_custom_call.1} parent=0
    #allocation2 [shape = 'u8[4096]{0}', space=vmem, size = 0x1000, scoped, tag = 'input window, operand 0, single buffered']
    #allocation3 [shape = 's32[1]{0}', space=sflag, size = 0x4, scoped, tag = 'scoped memory for tpu_custom_call.1']
    #allocation4 [shape = 's32[1]{0}', space=sflag, size = 0x4, scoped, tag = 'scoped memory for tpu_custom_call.1']
    #allocation5 [shape = 's32[1]{0}', space=sflag, size = 0x4, scoped, tag = 'scoped memory for tpu_custom_call.1']
    #allocation6 [shape = 'u8[4096]{0}', space=vmem, size = 0x1000, scoped, tag = 'input window, operand 1, single buffered']
    #allocation7 [shape = 's32[1]{0}', space=sflag, size = 0x4, scoped, tag = 'scoped memory for tpu_custom_call.1']
    #allocation8 [shape = 'u8[4096]{0}', space=vmem, size = 0x1000, scoped, tag = 'input window, operand 2, single buffered']
    #allocation9 [shape = 'u8[32768]{0}', space=vmem, size = 0x8000, scoped, tag = 'input window, operand 3, single buffered']
    #allocation10 [shape = 's32[1]{0}', space=sflag, size = 0x4, scoped, tag = 'scoped memory for tpu_custom_call.1']
    #allocation11 [shape = 'u8[4096]{0}', space=vmem, size = 0x1000, scoped, tag = 'input window, operand 4, single buffered']
    #allocation12 [shape = 'u8[4096]{0}', space=vmem, size = 0x1000, scoped, tag = 'input window, operand 5, single buffered']
    #allocation13 [shape = 's32[1]{0}', space=sflag, size = 0x4, scoped, tag = 'scoped memory for tpu_custom_call.1']
    #allocation14 [shape = 'u8[16384]{0}', space=vmem, size = 0x4000, scoped, tag = 'input window, operand 6, single buffered']
    #allocation15 [shape = 'u8[16384]{0}', space=vmem, size = 0x4000, scoped, tag = 'input window, operand 7, single buffered']
    #allocation16 [shape = 's32[1]{0}', space=sflag, size = 0x4, scoped, tag = 'scoped memory for tpu_custom_call.1']
    #allocation17 [shape = 'u8[512]{0}', space=vmem, size = 0x400, scoped, tag = 'input window, operand 8, single buffered']
    #allocation18 [shape = 'u8[16384]{0}', space=vmem, size = 0x4000, scoped, tag = 'input window, operand 11, single buffered']
    #allocation19 [shape = 's32[1]{0}', space=sflag, size = 0x4, scoped, tag = 'scoped memory for tpu_custom_call.1']
    #allocation20 [shape = 'u8[49152]{0}', space=vmem, size = 0xc000, scoped, tag = 'input window, operand 14, single buffered']
    #allocation21 [shape = 'u8[16384]{0}', space=vmem, size = 0x4000, scoped, tag = 'input window, operand 16, single buffered']
    #allocation22 [shape = 's32[1]{0}', space=sflag, size = 0x4, scoped, tag = 'scoped memory for tpu_custom_call.1']
    #allocation23 [shape = 'u8[512]{0}', space=smem, size = 0x200, scoped, tag = 'input window, operand 19, single buffered']
    #allocation24 [shape = 'u8[4096]{0}', space=vmem, size = 0x1000, scoped, tag = 'output window, operand 0, single buffered']
    #allocation25 [shape = 'u8[4096]{0}', space=vmem, size = 0x1000, scoped, tag = 'output window, operand 1, single buffered']
    #allocation26 [shape = 's32[1]{0}', space=sflag, size = 0x4, scoped, tag = 'scoped memory for tpu_custom_call.1']
    #allocation27 [shape = 'u8[4096]{0}', space=vmem, size = 0x1000, scoped, tag = 'output window, operand 2, single buffered']
    #allocation28 [shape = 'u8[4096]{0}', space=vmem, size = 0x1000, scoped, tag = 'output window, operand 3, single buffered']
    #allocation29 [shape = 's32[1]{0}', space=sflag, size = 0x4, scoped, tag = 'scoped memory for tpu_custom_call.1']
    %29 = vsyncpa [#allocation3], 0
    %30 = vsyncpa [#allocation7], 0
    %31 = vsyncpa [#allocation10], 0
    %32 = vsyncpa [#allocation13], 0
    %33 = vsyncpa [#allocation16], 0
    %34 = vsyncpa [#allocation19], 0
    %35 = vsyncpa [#allocation22], 0
    %36 = vsyncpa [#allocation5], 0
    %37 = vsyncpa [#allocation4], 0
    %38 = vsyncpa [#allocation26], 0
    %39 = vsyncpa [#allocation29], 0
    // Predicated region
    $region2: #{tpu_custom_call.1} parent=1 // pred_check
      _
    $region3: #{tpu_custom_call.1} parent=1 // pred_check_branch
      %41 = sbr.rel (0) target = $region5
    $region4: #{tpu_custom_call.1} parent=1 // pred_region
      %s43 = ssub.s32 128, 128
      %44 = vsyncadd [#allocation3], %s43
      %s46 = sshll.u32 [#allocation2], 4
      %s47 = int_to_ptr.vmem [resolvable:$true] %s46
      %49 = dma.hbm_to_vmem [thread:$0]  %s0, 128, %s47, [#allocation3]
    $region5: #{tpu_custom_call.1} parent=1 // pred_fallthru
      _
    // Predicated region
    $region6: #{tpu_custom_call.1} parent=1 // pred_check
      _
    $region7: #{tpu_custom_call.1} parent=1 // pred_check_branch
      %51 = sbr.rel (0) target = $region9
    $region8: #{tpu_custom_call.1} parent=1 // pred_region
      %s53 = ssub.s32 128, 128
      %54 = vsyncadd [#allocation7], %s53
      %s56 = sshll.u32 [#allocation6], 4
      %s57 = int_to_ptr.vmem [resolvable:$true] %s56
      %59 = dma.hbm_to_vmem [thread:$0]  %s1, 128, %s57, [#allocation7]
    $region9: #{tpu_custom_call.1} parent=1 // pred_fallthru
      _
    // Predicated region
    $region10: #{tpu_custom_call.1} parent=1 // pred_check
      _
    $region11: #{tpu_custom_call.1} parent=1 // pred_check_branch
      %61 = sbr.rel (0) target = $region13
    $region12: #{tpu_custom_call.1} parent=1 // pred_region
      %s63 = ssub.s32 128, 128
      %64 = vsyncadd [#allocation7], %s63
      %s66 = sshll.u32 [#allocation8], 4
      %s67 = int_to_ptr.vmem [resolvable:$true] %s66
      %69 = dma.hbm_to_vmem [thread:$0]  %s2, 128, %s67, [#allocation7]
    $region13: #{tpu_custom_call.1} parent=1 // pred_fallthru
      _
    // Predicated region
    $region14: #{tpu_custom_call.1} parent=1 // pred_check
      _
    $region15: #{tpu_custom_call.1} parent=1 // pred_check_branch
      %71 = sbr.rel (0) target = $region17
    $region16: #{tpu_custom_call.1} parent=1 // pred_region
      %s73 = ssub.s32 1024, 1024
      %74 = vsyncadd [#allocation10], %s73
      %s75 = sshll.u32 [#allocation9], 4
      %s76 = int_to_ptr.vmem [resolvable:$true] %s75
      %81 = dma.hbm_to_vmem [thread:$0]  %s3, 1024, %s76, [#allocation10], 128, 128, 8
    $region17: #{tpu_custom_call.1} parent=1 // pred_fallthru
      _
    // Predicated region
    $region18: #{tpu_custom_call.1} parent=1 // pred_check
      _
    $region19: #{tpu_custom_call.1} parent=1 // pred_check_branch
      %83 = sbr.rel (0) target = $region21
    $region20: #{tpu_custom_call.1} parent=1 // pred_region
      %s85 = ssub.s32 128, 128
      %86 = vsyncadd [#allocation10], %s85
      %s87 = sshll.u32 [#allocation11], 4
      %s88 = int_to_ptr.vmem [resolvable:$true] %s87
      %93 = dma.hbm_to_vmem [thread:$0]  %s4, 128, %s88, [#allocation10], 16, 16, 1
    $region21: #{tpu_custom_call.1} parent=1 // pred_fallthru
      _
    // Predicated region
    $region22: #{tpu_custom_call.1} parent=1 // pred_check
      _
    $region23: #{tpu_custom_call.1} parent=1 // pred_check_branch
      %95 = sbr.rel (0) target = $region25
    $region24: #{tpu_custom_call.1} parent=1 // pred_region
      %s97 = ssub.s32 128, 128
      %98 = vsyncadd [#allocation13], %s97
      %s100 = sshll.u32 [#allocation12], 4
      %s101 = int_to_ptr.vmem [resolvable:$true] %s100
      %103 = dma.hbm_to_vmem [thread:$0]  %s5, 128, %s101, [#allocation13]
    $region25: #{tpu_custom_call.1} parent=1 // pred_fallthru
      _
    // Predicated region
    $region26: #{tpu_custom_call.1} parent=1 // pred_check
      _
    $region27: #{tpu_custom_call.1} parent=1 // pred_check_branch
      %105 = sbr.rel (0) target = $region29
    $region28: #{tpu_custom_call.1} parent=1 // pred_region
      %s107 = ssub.s32 512, 512
      %108 = vsyncadd [#allocation13], %s107
      %s109 = sshll.u32 [#allocation14], 4
      %s110 = int_to_ptr.vmem [resolvable:$true] %s109
      %115 = dma.hbm_to_vmem [thread:$0]  %s6, 512, %s110, [#allocation13], 128, 128, 8
    $region29: #{tpu_custom_call.1} parent=1 // pred_fallthru
      _
    // Predicated region
    $region30: #{tpu_custom_call.1} parent=1 // pred_check
      _
    $region31: #{tpu_custom_call.1} parent=1 // pred_check_branch
      %117 = sbr.rel (0) target = $region33
    $region32: #{tpu_custom_call.1} parent=1 // pred_region
      %s119 = ssub.s32 512, 512
      %120 = vsyncadd [#allocation16], %s119
      %s121 = sshll.u32 [#allocation15], 4
      %s122 = int_to_ptr.vmem [resolvable:$true] %s121
      %127 = dma.hbm_to_vmem [thread:$0]  %s7, 512, %s122, [#allocation16], 128, 128, 8
    $region33: #{tpu_custom_call.1} parent=1 // pred_fallthru
      _
    // Predicated region
    $region34: #{tpu_custom_call.1} parent=1 // pred_check
      _
    $region35: #{tpu_custom_call.1} parent=1 // pred_check_branch
      %129 = sbr.rel (0) target = $region37
    $region36: #{tpu_custom_call.1} parent=1 // pred_region
      %s131 = ssub.s32 16, 16
      %132 = vsyncadd [#allocation16], %s131
      %s134 = sshll.u32 [#allocation17], 4
      %s135 = int_to_ptr.vmem [resolvable:$true] %s134
      %137 = dma.hbm_to_vmem [thread:$0]  %s8, 16, %s135, [#allocation16]
    $region37: #{tpu_custom_call.1} parent=1 // pred_fallthru
      _
    // Predicated region
    $region38: #{tpu_custom_call.1} parent=1 // pred_check
      _
    $region39: #{tpu_custom_call.1} parent=1 // pred_check_branch
      %139 = sbr.rel (0) target = $region41
    $region40: #{tpu_custom_call.1} parent=1 // pred_region
      _
    $region41: #{tpu_custom_call.1} parent=1 // pred_fallthru
      _
    // Predicated region
    $region42: #{tpu_custom_call.1} parent=1 // pred_check
      _
    $region43: #{tpu_custom_call.1} parent=1 // pred_check_branch
      %141 = sbr.rel (0) target = $region45
    $region44: #{tpu_custom_call.1} parent=1 // pred_region
      _
    $region45: #{tpu_custom_call.1} parent=1 // pred_fallthru
      _
    // Predicated region
    $region46: #{tpu_custom_call.1} parent=1 // pred_check
      _
    $region47: #{tpu_custom_call.1} parent=1 // pred_check_branch
      %143 = sbr.rel (0) target = $region49
    $region48: #{tpu_custom_call.1} parent=1 // pred_region
      %s145 = ssub.s32 512, 512
      %146 = vsyncadd [#allocation19], %s145
      %s147 = sshll.u32 [#allocation18], 4
      %s148 = int_to_ptr.vmem [resolvable:$true] %s147
      %153 = dma.hbm_to_vmem [thread:$0]  %s11, 512, %s148, [#allocation19], 128, 128, 8
    $region49: #{tpu_custom_call.1} parent=1 // pred_fallthru
      _
    // Predicated region
    $region50: #{tpu_custom_call.1} parent=1 // pred_check
      _
    $region51: #{tpu_custom_call.1} parent=1 // pred_check_branch
      %155 = sbr.rel (0) target = $region53
    $region52: #{tpu_custom_call.1} parent=1 // pred_region
      _
    $region53: #{tpu_custom_call.1} parent=1 // pred_fallthru
      _
    // Predicated region
    $region54: #{tpu_custom_call.1} parent=1 // pred_check
      _
    $region55: #{tpu_custom_call.1} parent=1 // pred_check_branch
      %157 = sbr.rel (0) target = $region57
    $region56: #{tpu_custom_call.1} parent=1 // pred_region
      _
    $region57: #{tpu_custom_call.1} parent=1 // pred_fallthru
      _
    // Predicated region
    $region58: #{tpu_custom_call.1} parent=1 // pred_check
      _
    $region59: #{tpu_custom_call.1} parent=1 // pred_check_branch
      %159 = sbr.rel (0) target = $region61
    $region60: #{tpu_custom_call.1} parent=1 // pred_region
      %s161 = ssub.s32 1536, 1536
      %162 = vsyncadd [#allocation19], %s161
      %s163 = sshll.u32 [#allocation20], 4
      %s164 = int_to_ptr.vmem [resolvable:$true] %s163
      %169 = dma.hbm_to_vmem [thread:$0]  %s14, 1536, %s164, [#allocation19], 128, 128, 8
    $region61: #{tpu_custom_call.1} parent=1 // pred_fallthru
      _
    // Predicated region
    $region62: #{tpu_custom_call.1} parent=1 // pred_check
      _
    $region63: #{tpu_custom_call.1} parent=1 // pred_check_branch
      %171 = sbr.rel (0) target = $region65
    $region64: #{tpu_custom_call.1} parent=1 // pred_region
      _
    $region65: #{tpu_custom_call.1} parent=1 // pred_fallthru
      _
    // Predicated region
    $region66: #{tpu_custom_call.1} parent=1 // pred_check
      _
    $region67: #{tpu_custom_call.1} parent=1 // pred_check_branch
      %173 = sbr.rel (0) target = $region69
    $region68: #{tpu_custom_call.1} parent=1 // pred_region
      %s175 = ssub.s32 512, 512
      %176 = vsyncadd [#allocation22], %s175
      %s177 = sshll.u32 [#allocation21], 4
      %s178 = int_to_ptr.vmem [resolvable:$true] %s177
      %183 = dma.hbm_to_vmem [thread:$0]  %s16, 512, %s178, [#allocation22], 128, 128, 8
    $region69: #{tpu_custom_call.1} parent=1 // pred_fallthru
      _
    // Predicated region
    $region70: #{tpu_custom_call.1} parent=1 // pred_check
      _
    $region71: #{tpu_custom_call.1} parent=1 // pred_check_branch
      %185 = sbr.rel (0) target = $region73
    $region72: #{tpu_custom_call.1} parent=1 // pred_region
      _
    $region73: #{tpu_custom_call.1} parent=1 // pred_fallthru
      _
    // Predicated region
    $region74: #{tpu_custom_call.1} parent=1 // pred_check
      _
    $region75: #{tpu_custom_call.1} parent=1 // pred_check_branch
      %187 = sbr.rel (0) target = $region77
    $region76: #{tpu_custom_call.1} parent=1 // pred_region
      _
    $region77: #{tpu_custom_call.1} parent=1 // pred_fallthru
      _
    // Predicated region
    $region78: #{tpu_custom_call.1} parent=1 // pred_check
      _
    $region79: #{tpu_custom_call.1} parent=1 // pred_check_branch
      %189 = sbr.rel (0) target = $region81
    $region80: #{tpu_custom_call.1} parent=1 // pred_region
      %s191 = ssub.s32 16, 16
      %192 = vsyncadd [#allocation5], %s191
      %s194 = sshll.u32 %s19, 4
      %s195 = int_to_ptr.vmem [resolvable:$true] %s194
      %197 = dma.vmem_to_smem %s195, 16, [#allocation23], [#allocation5]
    $region81: #{tpu_custom_call.1} parent=1 // pred_fallthru
      _
    // Predicated region
    $region82: #{tpu_custom_call.1} parent=1 // pred_check
      _
    $region83: #{tpu_custom_call.1} parent=1 // pred_check_branch
      %199 = sbr.rel (0) target = $region85
    $region84: #{tpu_custom_call.1} parent=1 // pred_region
      %200 = dma.done [#allocation3], 128
    $region85: #{tpu_custom_call.1} parent=1 // pred_fallthru
      _
    // Predicated region
    $region86: #{tpu_custom_call.1} parent=1 // pred_check
      _
    $region87: #{tpu_custom_call.1} parent=1 // pred_check_branch
      %202 = sbr.rel (0) target = $region89
    $region88: #{tpu_custom_call.1} parent=1 // pred_region
      %203 = dma.done [#allocation7], 128
    $region89: #{tpu_custom_call.1} parent=1 // pred_fallthru
      _
    // Predicated region
    $region90: #{tpu_custom_call.1} parent=1 // pred_check
      _
    $region91: #{tpu_custom_call.1} parent=1 // pred_check_branch
      %205 = sbr.rel (0) target = $region93
    $region92: #{tpu_custom_call.1} parent=1 // pred_region
      %206 = dma.done [#allocation7], 128
    $region93: #{tpu_custom_call.1} parent=1 // pred_fallthru
      _
    // Predicated region
    $region94: #{tpu_custom_call.1} parent=1 // pred_check
      _
    $region95: #{tpu_custom_call.1} parent=1 // pred_check_branch
      %208 = sbr.rel (0) target = $region97
    $region96: #{tpu_custom_call.1} parent=1 // pred_region
      %209 = dma.done [#allocation10], 1024
    $region97: #{tpu_custom_call.1} parent=1 // pred_fallthru
      _
    // Predicated region
    $region98: #{tpu_custom_call.1} parent=1 // pred_check
      _
    $region99: #{tpu_custom_call.1} parent=1 // pred_check_branch
      %211 = sbr.rel (0) target = $region101
    $region100: #{tpu_custom_call.1} parent=1 // pred_region
      %212 = dma.done [#allocation10], 128
    $region101: #{tpu_custom_call.1} parent=1 // pred_fallthru
      _
    // Predicated region
    $region102: #{tpu_custom_call.1} parent=1 // pred_check
      _
    $region103: #{tpu_custom_call.1} parent=1 // pred_check_branch
      %214 = sbr.rel (0) target = $region105
    $region104: #{tpu_custom_call.1} parent=1 // pred_region
      %215 = dma.done [#allocation13], 128
    $region105: #{tpu_custom_call.1} parent=1 // pred_fallthru
      _
    // Predicated region
    $region106: #{tpu_custom_call.1} parent=1 // pred_check
      _
    $region107: #{tpu_custom_call.1} parent=1 // pred_check_branch
      %217 = sbr.rel (0) target = $region109
    $region108: #{tpu_custom_call.1} parent=1 // pred_region
      %218 = dma.done [#allocation13], 512
    $region109: #{tpu_custom_call.1} parent=1 // pred_fallthru
      _
    // Predicated region
    $region110: #{tpu_custom_call.1} parent=1 // pred_check
      _
    $region111: #{tpu_custom_call.1} parent=1 // pred_check_branch
      %220 = sbr.rel (0) target = $region113
    $region112: #{tpu_custom_call.1} parent=1 // pred_region
      %221 = dma.done [#allocation16], 512
    $region113: #{tpu_custom_call.1} parent=1 // pred_fallthru
      _
    // Predicated region
    $region114: #{tpu_custom_call.1} parent=1 // pred_check
      _
    $region115: #{tpu_custom_call.1} parent=1 // pred_check_branch
      %223 = sbr.rel (0) target = $region117
    $region116: #{tpu_custom_call.1} parent=1 // pred_region
      %224 = dma.done [#allocation16], 16
    $region117: #{tpu_custom_call.1} parent=1 // pred_fallthru
      _
    // Predicated region
    $region118: #{tpu_custom_call.1} parent=1 // pred_check
      _
    $region119: #{tpu_custom_call.1} parent=1 // pred_check_branch
      %226 = sbr.rel (0) target = $region121
    $region120: #{tpu_custom_call.1} parent=1 // pred_region
      %227 = dma.done [#allocation19], 512
    $region121: #{tpu_custom_call.1} parent=1 // pred_fallthru
      _
    // Predicated region
    $region122: #{tpu_custom_call.1} parent=1 // pred_check
      _
    $region123: #{tpu_custom_call.1} parent=1 // pred_check_branch
      %229 = sbr.rel (0) target = $region125
    $region124: #{tpu_custom_call.1} parent=1 // pred_region
      %230 = dma.done [#allocation19], 1536
    $region125: #{tpu_custom_call.1} parent=1 // pred_fallthru
      _
    // Predicated region
    $region126: #{tpu_custom_call.1} parent=1 // pred_check
      _
    $region127: #{tpu_custom_call.1} parent=1 // pred_check_branch
      %232 = sbr.rel (0) target = $region129
    $region128: #{tpu_custom_call.1} parent=1 // pred_region
      %233 = dma.done [#allocation22], 512
    $region129: #{tpu_custom_call.1} parent=1 // pred_fallthru
      _
    // Predicated region
    $region130: #{tpu_custom_call.1} parent=1 // pred_check
      _
    $region131: #{tpu_custom_call.1} parent=1 // pred_check_branch
      %235 = sbr.rel (0) target = $region133
    $region132: #{tpu_custom_call.1} parent=1 // pred_region
      %236 = dma.done [#allocation5], 16
    $region133: #{tpu_custom_call.1} parent=1 // pred_fallthru
      _
    %237 = sfence
    %v238 = vld [vmem:[#allocation2] sm:$0xff]
    %v239 = vld [vmem:[#allocation6] sm:$0xff]
    %v240 = vld [vmem:[#allocation8] sm:$0xff]
    %v241 = vld [vmem:[#allocation14] sm:$0xff]
    %v242 = vld [vmem:[#allocation14 + $0x8] sm:$0xff]
    %v243 = vld [vmem:[#allocation14 + $0x10] sm:$0xff]
    %v244 = vld [vmem:[#allocation14 + $0x18] sm:$0xff]
    %v245 = vld [vmem:[#allocation15] sm:$0xff]
    %v246 = vld [vmem:[#allocation15 + $0x8] sm:$0xff]
    %v247 = vld [vmem:[#allocation15 + $0x10] sm:$0xff]
    %v248 = vld [vmem:[#allocation15 + $0x18] sm:$0xff]
    %vm249 = vcmask 261120
    %v251 = vsel %vm249, %v239, 0
    %253 = vmatprep.subr.mxu0 0.0
    %254 = vmatpush1.msra.mxu0 %v245
    %255 = vmatprep.subr.mxu0 0.0
    %256 = vmatpush1.msra.mxu0 %v246
    %257 = vmatprep.subr.mxu0 0.0
    %258 = vmatpush1.msra.mxu0 %v247
    %259 = vmatprep.subr.mxu0 0.0
    %260 = vmatpush1.msra.mxu0 %v248
    %261 = vmatprep.subr.mxu0 0.0
    %262 = vmatpush1.msra.mxu0 0.0
    %263 = vmatprep.subr.mxu0 0.0
    %264 = vmatpush1.msra.mxu0 0.0
    %265 = vmatprep.subr.mxu0 0.0
    %266 = vmatpush1.msra.mxu0 0.0
    %267 = vmatprep.subr.mxu0 0.0
    %268 = vmatpush1.msra.mxu0 0.0
    %269 = vmatprep.subr.mxu0 0.0
    %270 = vmatpush1.msra.mxu0 0.0
    %271 = vmatprep.subr.mxu0 0.0
    %272 = vmatpush1.msra.mxu0 0.0
    %273 = vmatprep.subr.mxu0 0.0
    %274 = vmatpush1.msra.mxu0 0.0
    %275 = vmatprep.subr.mxu0 0.0
    %276 = vmatpush1.msra.mxu0 0.0
    %277 = vmatprep.subr.mxu0 0.0
    %278 = vmatpush1.msra.mxu0 0.0
    %279 = vmatprep.subr.mxu0 0.0
    %280 = vmatpush1.msra.mxu0 0.0
    %281 = vmatprep.subr.mxu0 0.0
    %282 = vmatpush1.msra.mxu0 0.0
    %283 = vmatprep.subr.mxu0 0.0
    %284 = vmatpush1.msra.mxu0 0.0
    %285 = vmatprep.subr.mxu0 0.0
    %286 = vmatpush1.msra.mxu0 0.0
    %287 = vmatprep.subr.mxu0 0.0
    %288 = vmatpush1.msra.mxu0 0.0
    %289 = vmatprep.subr.mxu0 0.0
    %290 = vmatpush1.msra.mxu0 0.0
    %291 = vmatprep.subr.mxu0 0.0
    %292 = vmatpush1.msra.mxu0 0.0
    %293 = vmatprep.subr.mxu0 0.0
    %294 = vmatpush1.msra.mxu0 0.0
    %295 = vmatprep.subr.mxu0 0.0
    %296 = vmatpush1.msra.mxu0 0.0
    %297 = vmatprep.subr.mxu0 0.0
    %298 = vmatpush1.msra.mxu0 0.0
    %299 = vmatprep.subr.mxu0 0.0
    %300 = vmatpush1.msra.mxu0 0.0
    %301 = vmatprep.subr.mxu0 0.0
    %302 = vmatpush1.msra.mxu0 0.0
    %303 = vmatprep.subr.mxu0 0.0
    %304 = vmatpush1.msra.mxu0 0.0
    %305 = vmatprep.subr.mxu0 0.0
    %306 = vmatpush1.msra.mxu0 0.0
    %307 = vmatprep.subr.mxu0 0.0
    %308 = vmatpush1.msra.mxu0 0.0
    %309 = vmatprep.subr.mxu0 0.0
    %310 = vmatpush1.msra.mxu0 0.0
    %311 = vmatprep.subr.mxu0 0.0
    %312 = vmatpush1.msra.mxu0 0.0
    %313 = vmatprep.subr.mxu0 0.0
    %314 = vmatpush1.msra.mxu0 0.0
    %315 = vmatprep.subr.mxu0 0.0
    %316 = vmatpush1.msra.mxu0 0.0
    %317 = vmatprep.mubr.f32.mxu0 0.0
    %318 = vmatmul.mubr.f32.gmra.mrb[0].mxu0 %v251
    %v319 = vpop.f32.mrb[0].mxu0
    %v320 = vadd.f32 0.0, %v319
    %v321 = vpop.f32.mrb[0].mxu0
    %322 = vdwg.mxu0
    %v324 = vsel %vm249, %v238, 0
    %326 = vmatprep.subr.mxu0 0.0
    %327 = vmatpush1.msra.mxu0 %v241
    %328 = vmatprep.subr.mxu0 0.0
    %329 = vmatpush1.msra.mxu0 %v242
    %330 = vmatprep.subr.mxu0 0.0
    %331 = vmatpush1.msra.mxu0 %v243
    %332 = vmatprep.subr.mxu0 0.0
    %333 = vmatpush1.msra.mxu0 %v244
    %334 = vmatprep.subr.mxu0 0.0
    %335 = vmatpush1.msra.mxu0 0.0
    %336 = vmatprep.subr.mxu0 0.0
    %337 = vmatpush1.msra.mxu0 0.0
    %338 = vmatprep.subr.mxu0 0.0
    %339 = vmatpush1.msra.mxu0 0.0
    %340 = vmatprep.subr.mxu0 0.0
    %341 = vmatpush1.msra.mxu0 0.0
    %342 = vmatprep.subr.mxu0 0.0
    %343 = vmatpush1.msra.mxu0 0.0
    %344 = vmatprep.subr.mxu0 0.0
    %345 = vmatpush1.msra.mxu0 0.0
    %346 = vmatprep.subr.mxu0 0.0
    %347 = vmatpush1.msra.mxu0 0.0
    %348 = vmatprep.subr.mxu0 0.0
    %349 = vmatpush1.msra.mxu0 0.0
    %350 = vmatprep.subr.mxu0 0.0
    %351 = vmatpush1.msra.mxu0 0.0
    %352 = vmatprep.subr.mxu0 0.0
    %353 = vmatpush1.msra.mxu0 0.0
    %354 = vmatprep.subr.mxu0 0.0
    %355 = vmatpush1.msra.mxu0 0.0
    %356 = vmatprep.subr.mxu0 0.0
    %357 = vmatpush1.msra.mxu0 0.0
    %358 = vmatprep.subr.mxu0 0.0
    %359 = vmatpush1.msra.mxu0 0.0
    %360 = vmatprep.subr.mxu0 0.0
    %361 = vmatpush1.msra.mxu0 0.0
    %362 = vmatprep.subr.mxu0 0.0
    %363 = vmatpush1.msra.mxu0 0.0
    %364 = vmatprep.subr.mxu0 0.0
    %365 = vmatpush1.msra.mxu0 0.0
    %366 = vmatprep.subr.mxu0 0.0
    %367 = vmatpush1.msra.mxu0 0.0
    %368 = vmatprep.subr.mxu0 0.0
    %369 = vmatpush1.msra.mxu0 0.0
    %370 = vmatprep.subr.mxu0 0.0
    %371 = vmatpush1.msra.mxu0 0.0
    %372 = vmatprep.subr.mxu0 0.0
    %373 = vmatpush1.msra.mxu0 0.0
    %374 = vmatprep.subr.mxu0 0.0
    %375 = vmatpush1.msra.mxu0 0.0
    %376 = vmatprep.subr.mxu0 0.0
    %377 = vmatpush1.msra.mxu0 0.0
    %378 = vmatprep.subr.mxu0 0.0
    %379 = vmatpush1.msra.mxu0 0.0
    %380 = vmatprep.subr.mxu0 0.0
    %381 = vmatpush1.msra.mxu0 0.0
    %382 = vmatprep.subr.mxu0 0.0
    %383 = vmatpush1.msra.mxu0 0.0
    %384 = vmatprep.subr.mxu0 0.0
    %385 = vmatpush1.msra.mxu0 0.0
    %386 = vmatprep.subr.mxu0 0.0
    %387 = vmatpush1.msra.mxu0 0.0
    %388 = vmatprep.subr.mxu0 0.0
    %389 = vmatpush1.msra.mxu0 0.0
    %390 = vmatprep.mubr.f32.mxu0 0.0
    %391 = vmatmul.mubr.f32.gmra.mrb[0].mxu0 %v324
    %v392 = vpop.f32.mrb[0].mxu0
    %v393 = vadd.f32 %v320, %v392
    %v394 = vpop.f32.mrb[0].mxu0
    %395 = vdwg.mxu0
    %v396 = vld [vmem:[#allocation17] sm:$0x1]
    %v398 = vlaneseq
    %v399 = vshrl.u32 %v398, 7
    %v400 = vsub.s32 0, %v399
    %v401 = vrot.slane %v396, %v400
    %v403 = vadd.f32 %v393, %v401
    %v404 = vxor.u32 %v403, 2147483648
    %v405 = vmul.f32 %v404, 1.442695
    %v406 = vpow.pop %v405
    %v407 = vadd.f32 %v406, 1.0
    %v408 = vrcp.pop %v407
    %v409 = vmul.f32 1.0, %v408
    %v410 = vtanh.pop %v403
    %412 = vrot.lane.b32.xlu0 %v240, 32
    %v413 = vpop.permute.xlu0 %412
    %v415 = vmul.f32 %v409, %v413
    %417 = vrot.lane.b32.xlu0 %v410, 64
    %v418 = vpop.permute.xlu0 %417
    %v420 = vmul.f32 %v409, %v418
    %422 = vrot.lane.b32.xlu0 %v420, 32
    %v423 = vpop.permute.xlu0 %422
    %v425 = vadd.f32 %v415, %v423
    %v426 = vtanh.pop %v425
    %428 = vrot.lane.b32.xlu0 %v426, 64
    %v429 = vpop.permute.xlu0 %428
    %v431 = vmul.f32 %v409, %v429
    %433 = vrot.lane.b32.xlu0 %v431, 32
    %v434 = vpop.permute.xlu0 %433
    %436 = vst.msk [vmem:[#allocation27] sm:$0xff] %vm249, %v434
    %438 = vrot.lane.b32.xlu0 %v425, 96
    %v439 = vpop.permute.xlu0 %438
    %441 = vst.msk [vmem:[#allocation28] sm:$0xff] %vm249, %v439
    %v442 = vld [vmem:[#allocation9] sm:$0xff]
    %v443 = vld [vmem:[#allocation9 + $0x8] sm:$0xff]
    %v444 = vld [vmem:[#allocation9 + $0x10] sm:$0xff]
    %v445 = vld [vmem:[#allocation9 + $0x18] sm:$0xff]
    %v446 = vld [vmem:[#allocation9 + $0x20] sm:$0xff]
    %v447 = vld [vmem:[#allocation9 + $0x28] sm:$0xff]
    %v448 = vld [vmem:[#allocation9 + $0x30] sm:$0xff]
    %v449 = vld [vmem:[#allocation9 + $0x38] sm:$0xff]
    %v450 = vld [vmem:[%s9] sm:$0xff]
    %v451 = vld [vmem:[%s9 + $0x8] sm:$0xff]
    %v452 = vld [vmem:[%s9 + $0x10] sm:$0xff]
    %v453 = vld [vmem:[%s9 + $0x18] sm:$0xff]
    %v454 = vld [vmem:[%s10] sm:$0x1]
    %v456 = vlaneseq
    %v457 = vshrl.u32 %v456, 7
    %v458 = vsub.s32 0, %v457
    %v459 = vrot.slane %v454, %v458
    %v461 = vsel %vm249, %v434, 0
    %463 = vmatprep.subr.mxu0 0.0
    %464 = vmatpush1.msra.mxu0 %v450
    %465 = vmatprep.subr.mxu0 0.0
    %466 = vmatpush1.msra.mxu0 %v451
    %467 = vmatprep.subr.mxu0 0.0
    %468 = vmatpush1.msra.mxu0 %v452
    %469 = vmatprep.subr.mxu0 0.0
    %470 = vmatpush1.msra.mxu0 %v453
    %471 = vmatprep.subr.mxu0 0.0
    %472 = vmatpush1.msra.mxu0 0.0
    %473 = vmatprep.subr.mxu0 0.0
    %474 = vmatpush1.msra.mxu0 0.0
    %475 = vmatprep.subr.mxu0 0.0
    %476 = vmatpush1.msra.mxu0 0.0
    %477 = vmatprep.subr.mxu0 0.0
    %478 = vmatpush1.msra.mxu0 0.0
    %479 = vmatprep.subr.mxu0 0.0
    %480 = vmatpush1.msra.mxu0 0.0
    %481 = vmatprep.subr.mxu0 0.0
    %482 = vmatpush1.msra.mxu0 0.0
    %483 = vmatprep.subr.mxu0 0.0
    %484 = vmatpush1.msra.mxu0 0.0
    %485 = vmatprep.subr.mxu0 0.0
    %486 = vmatpush1.msra.mxu0 0.0
    %487 = vmatprep.subr.mxu0 0.0
    %488 = vmatpush1.msra.mxu0 0.0
    %489 = vmatprep.subr.mxu0 0.0
    %490 = vmatpush1.msra.mxu0 0.0
    %491 = vmatprep.subr.mxu0 0.0
    %492 = vmatpush1.msra.mxu0 0.0
    %493 = vmatprep.subr.mxu0 0.0
    %494 = vmatpush1.msra.mxu0 0.0
    %495 = vmatprep.subr.mxu0 0.0
    %496 = vmatpush1.msra.mxu0 0.0
    %497 = vmatprep.subr.mxu0 0.0
    %498 = vmatpush1.msra.mxu0 0.0
    %499 = vmatprep.subr.mxu0 0.0
    %500 = vmatpush1.msra.mxu0 0.0
    %501 = vmatprep.subr.mxu0 0.0
    %502 = vmatpush1.msra.mxu0 0.0
    %503 = vmatprep.subr.mxu0 0.0
    %504 = vmatpush1.msra.mxu0 0.0
    %505 = vmatprep.subr.mxu0 0.0
    %506 = vmatpush1.msra.mxu0 0.0
    %507 = vmatprep.subr.mxu0 0.0
    %508 = vmatpush1.msra.mxu0 0.0
    %509 = vmatprep.subr.mxu0 0.0
    %510 = vmatpush1.msra.mxu0 0.0
    %511 = vmatprep.subr.mxu0 0.0
    %512 = vmatpush1.msra.mxu0 0.0
    %513 = vmatprep.subr.mxu0 0.0
    %514 = vmatpush1.msra.mxu0 0.0
    %515 = vmatprep.subr.mxu0 0.0
    %516 = vmatpush1.msra.mxu0 0.0
    %517 = vmatprep.subr.mxu0 0.0
    %518 = vmatpush1.msra.mxu0 0.0
    %519 = vmatprep.subr.mxu0 0.0
    %520 = vmatpush1.msra.mxu0 0.0
    %521 = vmatprep.subr.mxu0 0.0
    %522 = vmatpush1.msra.mxu0 0.0
    %523 = vmatprep.subr.mxu0 0.0
    %524 = vmatpush1.msra.mxu0 0.0
    %525 = vmatprep.subr.mxu0 0.0
    %526 = vmatpush1.msra.mxu0 0.0
    %527 = vmatprep.mubr.f32.mxu0 0.0
    %528 = vmatmul.mubr.f32.gmra.mrb[0].mxu0 %v461
    %v529 = vpop.f32.mrb[0].mxu0
    %v530 = vadd.f32 %v459, %v529
    %v531 = vpop.f32.mrb[0].mxu0
    %532 = vdwg.mxu0
    %v533 = vld [vmem:[#allocation18] sm:$0xff]
    %v534 = vld [vmem:[#allocation18 + $0x8] sm:$0xff]
    %v535 = vld [vmem:[#allocation18 + $0x10] sm:$0xff]
    %v536 = vld [vmem:[#allocation18 + $0x18] sm:$0xff]
    %v537 = vld [vmem:[%s12] sm:$0x1]
    %v539 = vlaneseq
    %v540 = vshrl.u32 %v539, 7
    %v541 = vsub.s32 0, %v540
    %v542 = vrot.slane %v537, %v541
    %v545 = vsel %vm249, %v442, 0
    %v548 = vsel %vm249, %v443, 0
    %v551 = vsel %vm249, %v444, 0
    %v554 = vsel %vm249, %v445, 0
    %v557 = vsel %vm249, %v446, 0
    %v560 = vsel %vm249, %v447, 0
    %v563 = vsel %vm249, %v448, 0
    %v566 = vsel %vm249, %v449, 0
    %568 = vmatprep.subr.mxu0 0.0
    %569 = vmatpush1.msra.mxu0 %v533
    %570 = vmatprep.subr.mxu0 0.0
    %571 = vmatpush1.msra.mxu0 %v534
    %572 = vmatprep.subr.mxu0 0.0
    %573 = vmatpush1.msra.mxu0 %v535
    %574 = vmatprep.subr.mxu0 0.0
    %575 = vmatpush1.msra.mxu0 %v536
    %576 = vmatprep.subr.mxu0 0.0
    %577 = vmatpush1.msra.mxu0 0.0
    %578 = vmatprep.subr.mxu0 0.0
    %579 = vmatpush1.msra.mxu0 0.0
    %580 = vmatprep.subr.mxu0 0.0
    %581 = vmatpush1.msra.mxu0 0.0
    %582 = vmatprep.subr.mxu0 0.0
    %583 = vmatpush1.msra.mxu0 0.0
    %584 = vmatprep.subr.mxu0 0.0
    %585 = vmatpush1.msra.mxu0 0.0
    %586 = vmatprep.subr.mxu0 0.0
    %587 = vmatpush1.msra.mxu0 0.0
    %588 = vmatprep.subr.mxu0 0.0
    %589 = vmatpush1.msra.mxu0 0.0
    %590 = vmatprep.subr.mxu0 0.0
    %591 = vmatpush1.msra.mxu0 0.0
    %592 = vmatprep.subr.mxu0 0.0
    %593 = vmatpush1.msra.mxu0 0.0
    %594 = vmatprep.subr.mxu0 0.0
    %595 = vmatpush1.msra.mxu0 0.0
    %596 = vmatprep.subr.mxu0 0.0
    %597 = vmatpush1.msra.mxu0 0.0
    %598 = vmatprep.subr.mxu0 0.0
    %599 = vmatpush1.msra.mxu0 0.0
    %600 = vmatprep.subr.mxu0 0.0
    %601 = vmatpush1.msra.mxu0 0.0
    %602 = vmatprep.subr.mxu0 0.0
    %603 = vmatpush1.msra.mxu0 0.0
    %604 = vmatprep.subr.mxu0 0.0
    %605 = vmatpush1.msra.mxu0 0.0
    %606 = vmatprep.subr.mxu0 0.0
    %607 = vmatpush1.msra.mxu0 0.0
    %608 = vmatprep.subr.mxu0 0.0
    %609 = vmatpush1.msra.mxu0 0.0
    %610 = vmatprep.subr.mxu0 0.0
    %611 = vmatpush1.msra.mxu0 0.0
    %612 = vmatprep.subr.mxu0 0.0
    %613 = vmatpush1.msra.mxu0 0.0
    %614 = vmatprep.subr.mxu0 0.0
    %615 = vmatpush1.msra.mxu0 0.0
    %616 = vmatprep.subr.mxu0 0.0
    %617 = vmatpush1.msra.mxu0 0.0
    %618 = vmatprep.subr.mxu0 0.0
    %619 = vmatpush1.msra.mxu0 0.0
    %620 = vmatprep.subr.mxu0 0.0
    %621 = vmatpush1.msra.mxu0 0.0
    %622 = vmatprep.subr.mxu0 0.0
    %623 = vmatpush1.msra.mxu0 0.0
    %624 = vmatprep.subr.mxu0 0.0
    %625 = vmatpush1.msra.mxu0 0.0
    %626 = vmatprep.subr.mxu0 0.0
    %627 = vmatpush1.msra.mxu0 0.0
    %628 = vmatprep.subr.mxu0 0.0
    %629 = vmatpush1.msra.mxu0 0.0
    %630 = vmatprep.subr.mxu0 0.0
    %631 = vmatpush1.msra.mxu0 0.0
    %632 = vmatprep.mubr.f32.mxu0 0.0
    %633 = vmatmul.mubr.f32.gmra.mrb[0].mxu0 %v545
    %v634 = vpop.f32.mrb[0].mxu0
    %v635 = vadd.f32 %v542, %v634
    %v636 = vpop.f32.mrb[0].mxu0
    %637 = vmatprep.mubr.f32.mxu0 0.0
    %638 = vmatmul.mubr.f32.gmra.mrb[0].mxu0 %v548
    %v639 = vpop.f32.mrb[0].mxu0
    %v640 = vadd.f32 %v542, %v639
    %v641 = vpop.f32.mrb[0].mxu0
    %642 = vmatprep.mubr.f32.mxu0 0.0
    %643 = vmatmul.mubr.f32.gmra.mrb[0].mxu0 %v551
    %v644 = vpop.f32.mrb[0].mxu0
    %v645 = vadd.f32 %v542, %v644
    %v646 = vpop.f32.mrb[0].mxu0
    %647 = vmatprep.mubr.f32.mxu0 0.0
    %648 = vmatmul.mubr.f32.gmra.mrb[0].mxu0 %v554
    %v649 = vpop.f32.mrb[0].mxu0
    %v650 = vadd.f32 %v542, %v649
    %v651 = vpop.f32.mrb[0].mxu0
    %652 = vmatprep.mubr.f32.mxu0 0.0
    %653 = vmatmul.mubr.f32.gmra.mrb[0].mxu0 %v557
    %v654 = vpop.f32.mrb[0].mxu0
    %v655 = vadd.f32 %v542, %v654
    %v656 = vpop.f32.mrb[0].mxu0
    %657 = vmatprep.mubr.f32.mxu0 0.0
    %658 = vmatmul.mubr.f32.gmra.mrb[0].mxu0 %v560
    %v659 = vpop.f32.mrb[0].mxu0
    %v660 = vadd.f32 %v542, %v659
    %v661 = vpop.f32.mrb[0].mxu0
    %662 = vmatprep.mubr.f32.mxu0 0.0
    %663 = vmatmul.mubr.f32.gmra.mrb[0].mxu0 %v563
    %v664 = vpop.f32.mrb[0].mxu0
    %v665 = vadd.f32 %v542, %v664
    %v666 = vpop.f32.mrb[0].mxu0
    %667 = vmatprep.mubr.f32.mxu0 0.0
    %668 = vmatmul.mubr.f32.gmra.mrb[0].mxu0 %v566
    %v669 = vpop.f32.mrb[0].mxu0
    %v670 = vadd.f32 %v542, %v669
    %v671 = vpop.f32.mrb[0].mxu0
    %672 = vdwg.mxu0
    %v674 = vcombine.high %v530, %v530
    %v676 = vunpack.c.l.s4 1966171168
    %v677 = vunpack.c.0.s8 %v676
    %v678 = vlaneseq
    %v679 = vshrl.u32 %v678, 7
    %v680 = vsub.s32 %v677, %v679
    %v681 = vrot.slane %v530, %v680
    %v683 = vunpack.c.l.s4 1966171168
    %v684 = vunpack.c.0.s8 %v683
    %v685 = vlaneseq
    %v686 = vshrl.u32 %v685, 7
    %v687 = vsub.s32 %v684, %v686
    %v688 = vrot.slane %v674, %v687
    %v689 = vcombine.high %v681, %v681
    %v690 = vcombine.high %v688, %v688
    %v692 = vunpack.c.l.s4 1966171168
    %v693 = vunpack.c.0.s8 %v692
    %v694 = vlaneseq
    %v695 = vshrl.u32 %v694, 7
    %v696 = vsub.s32 %v693, %v695
    %v697 = vrot.slane %v681, %v696
    %v699 = vunpack.c.l.s4 1966171168
    %v700 = vunpack.c.0.s8 %v699
    %v701 = vlaneseq
    %v702 = vshrl.u32 %v701, 7
    %v703 = vsub.s32 %v700, %v702
    %v704 = vrot.slane %v688, %v703
    %v706 = vunpack.c.l.s4 1966171168
    %v707 = vunpack.c.0.s8 %v706
    %v708 = vlaneseq
    %v709 = vshrl.u32 %v708, 7
    %v710 = vsub.s32 %v707, %v709
    %v711 = vrot.slane %v689, %v710
    %v713 = vunpack.c.l.s4 1966171168
    %v714 = vunpack.c.0.s8 %v713
    %v715 = vlaneseq
    %v716 = vshrl.u32 %v715, 7
    %v717 = vsub.s32 %v714, %v716
    %v718 = vrot.slane %v690, %v717
    %v719 = vcombine.high %v697, %v697
    %v720 = vcombine.high %v704, %v704
    %v721 = vcombine.high %v711, %v711
    %v722 = vcombine.high %v718, %v718
    %v723 = vlaneseq
    %v724 = vshrl.u32 %v723, 7
    %v725 = vsub.s32 0, %v724
    %v726 = vrot.slane %v697, %v725
    %v727 = vlaneseq
    %v728 = vshrl.u32 %v727, 7
    %v729 = vsub.s32 0, %v728
    %v730 = vrot.slane %v711, %v729
    %v731 = vlaneseq
    %v732 = vshrl.u32 %v731, 7
    %v733 = vsub.s32 0, %v732
    %v734 = vrot.slane %v719, %v733
    %v735 = vlaneseq
    %v736 = vshrl.u32 %v735, 7
    %v737 = vsub.s32 0, %v736
    %v738 = vrot.slane %v721, %v737
    %v739 = vlaneseq
    %v740 = vshrl.u32 %v739, 7
    %v741 = vsub.s32 0, %v740
    %v742 = vrot.slane %v704, %v741
    %v743 = vlaneseq
    %v744 = vshrl.u32 %v743, 7
    %v745 = vsub.s32 0, %v744
    %v746 = vrot.slane %v718, %v745
    %v747 = vlaneseq
    %v748 = vshrl.u32 %v747, 7
    %v749 = vsub.s32 0, %v748
    %v750 = vrot.slane %v720, %v749
    %v751 = vlaneseq
    %v752 = vshrl.u32 %v751, 7
    %v753 = vsub.s32 0, %v752
    %v754 = vrot.slane %v722, %v753
    %v763 = vadd.f32 %v726, %v635
    %v764 = vadd.f32 %v730, %v640
    %v765 = vadd.f32 %v734, %v645
    %v766 = vadd.f32 %v738, %v650
    %v767 = vadd.f32 %v742, %v655
    %v768 = vadd.f32 %v746, %v660
    %v769 = vadd.f32 %v750, %v665
    %v770 = vadd.f32 %v754, %v670
    %v771 = vtanh.pop %v763
    %v772 = vtanh.pop %v764
    %v773 = vtanh.pop %v765
    %v774 = vtanh.pop %v766
    %v775 = vtanh.pop %v767
    %v776 = vtanh.pop %v768
    %v777 = vtanh.pop %v769
    %v778 = vtanh.pop %v770
    %v779 = vld [vmem:[%s13] sm:$0x1]
    %s780 = sld [smem:[#allocation23]]
    %v781 = vstv %s780
    %v783 = vsel %vm249, %v779, 0
    %v786 = vsel %vm249, %v771, 0
    %788 = vmatprep.subr.mxu0 0.0
    %789 = vmatpush1.xpose.msra.mxu0 %v786
    %790 = vmatprep.subr.mxu0 0.0
    %791 = vmatpush1.xpose.msra.mxu0 0.0
    %792 = vmatprep.subr.mxu0 0.0
    %793 = vmatpush1.xpose.msra.mxu0 0.0
    %794 = vmatprep.subr.mxu0 0.0
    %795 = vmatpush1.xpose.msra.mxu0 0.0
    %796 = vmatprep.subr.mxu0 0.0
    %797 = vmatpush1.xpose.msra.mxu0 0.0
    %798 = vmatprep.subr.mxu0 0.0
    %799 = vmatpush1.xpose.msra.mxu0 0.0
    %800 = vmatprep.subr.mxu0 0.0
    %801 = vmatpush1.xpose.msra.mxu0 0.0
    %802 = vmatprep.subr.mxu0 0.0
    %803 = vmatpush1.xpose.msra.mxu0 0.0
    %804 = vmatprep.subr.mxu0 0.0
    %805 = vmatpush1.xpose.msra.mxu0 0.0
    %806 = vmatprep.subr.mxu0 0.0
    %807 = vmatpush1.xpose.msra.mxu0 0.0
    %808 = vmatprep.subr.mxu0 0.0
    %809 = vmatpush1.xpose.msra.mxu0 0.0
    %810 = vmatprep.subr.mxu0 0.0
    %811 = vmatpush1.xpose.msra.mxu0 0.0
    %812 = vmatprep.subr.mxu0 0.0
    %813 = vmatpush1.xpose.msra.mxu0 0.0
    %814 = vmatprep.subr.mxu0 0.0
    %815 = vmatpush1.xpose.msra.mxu0 0.0
    %816 = vmatprep.subr.mxu0 0.0
    %817 = vmatpush1.xpose.msra.mxu0 0.0
    %818 = vmatprep.subr.mxu0 0.0
    %819 = vmatpush1.xpose.msra.mxu0 0.0
    %820 = vmatprep.subr.mxu0 0.0
    %821 = vmatpush1.xpose.msra.mxu0 0.0
    %822 = vmatprep.subr.mxu0 0.0
    %823 = vmatpush1.xpose.msra.mxu0 0.0
    %824 = vmatprep.subr.mxu0 0.0
    %825 = vmatpush1.xpose.msra.mxu0 0.0
    %826 = vmatprep.subr.mxu0 0.0
    %827 = vmatpush1.xpose.msra.mxu0 0.0
    %828 = vmatprep.subr.mxu0 0.0
    %829 = vmatpush1.xpose.msra.mxu0 0.0
    %830 = vmatprep.subr.mxu0 0.0
    %831 = vmatpush1.xpose.msra.mxu0 0.0
    %832 = vmatprep.subr.mxu0 0.0
    %833 = vmatpush1.xpose.msra.mxu0 0.0
    %834 = vmatprep.subr.mxu0 0.0
    %835 = vmatpush1.xpose.msra.mxu0 0.0
    %836 = vmatprep.subr.mxu0 0.0
    %837 = vmatpush1.xpose.msra.mxu0 0.0
    %838 = vmatprep.subr.mxu0 0.0
    %839 = vmatpush1.xpose.msra.mxu0 0.0
    %840 = vmatprep.subr.mxu0 0.0
    %841 = vmatpush1.xpose.msra.mxu0 0.0
    %842 = vmatprep.subr.mxu0 0.0
    %843 = vmatpush1.xpose.msra.mxu0 0.0
    %844 = vmatprep.subr.mxu0 0.0
    %845 = vmatpush1.xpose.msra.mxu0 0.0
    %846 = vmatprep.subr.mxu0 0.0
    %847 = vmatpush1.xpose.msra.mxu0 0.0
    %848 = vmatprep.subr.mxu0 0.0
    %849 = vmatpush1.xpose.msra.mxu0 0.0
    %850 = vmatprep.subr.mxu0 0.0
    %851 = vmatpush1.xpose.msra.mxu0 0.0
    %852 = vmatprep.mubr.f32.mxu0 0.0
    %853 = vmatmul.mubr.f32.gmra.mrb[0].mxu0 %v783
    %v854 = vpop.f32.mrb[0].mxu0
    %v855 = vadd.f32 %v781, %v854
    %v856 = vpop.f32.mrb[0].mxu0
    %857 = vdwg.mxu0
    %v859 = vsel %vm249, %v772, 0
    %861 = vmatprep.subr.mxu0 0.0
    %862 = vmatpush1.xpose.msra.mxu0 %v859
    %863 = vmatprep.subr.mxu0 0.0
    %864 = vmatpush1.xpose.msra.mxu0 0.0
    %865 = vmatprep.subr.mxu0 0.0
    %866 = vmatpush1.xpose.msra.mxu0 0.0
    %867 = vmatprep.subr.mxu0 0.0
    %868 = vmatpush1.xpose.msra.mxu0 0.0
    %869 = vmatprep.subr.mxu0 0.0
    %870 = vmatpush1.xpose.msra.mxu0 0.0
    %871 = vmatprep.subr.mxu0 0.0
    %872 = vmatpush1.xpose.msra.mxu0 0.0
    %873 = vmatprep.subr.mxu0 0.0
    %874 = vmatpush1.xpose.msra.mxu0 0.0
    %875 = vmatprep.subr.mxu0 0.0
    %876 = vmatpush1.xpose.msra.mxu0 0.0
    %877 = vmatprep.subr.mxu0 0.0
    %878 = vmatpush1.xpose.msra.mxu0 0.0
    %879 = vmatprep.subr.mxu0 0.0
    %880 = vmatpush1.xpose.msra.mxu0 0.0
    %881 = vmatprep.subr.mxu0 0.0
    %882 = vmatpush1.xpose.msra.mxu0 0.0
    %883 = vmatprep.subr.mxu0 0.0
    %884 = vmatpush1.xpose.msra.mxu0 0.0
    %885 = vmatprep.subr.mxu0 0.0
    %886 = vmatpush1.xpose.msra.mxu0 0.0
    %887 = vmatprep.subr.mxu0 0.0
    %888 = vmatpush1.xpose.msra.mxu0 0.0
    %889 = vmatprep.subr.mxu0 0.0
    %890 = vmatpush1.xpose.msra.mxu0 0.0
    %891 = vmatprep.subr.mxu0 0.0
    %892 = vmatpush1.xpose.msra.mxu0 0.0
    %893 = vmatprep.subr.mxu0 0.0
    %894 = vmatpush1.xpose.msra.mxu0 0.0
    %895 = vmatprep.subr.mxu0 0.0
    %896 = vmatpush1.xpose.msra.mxu0 0.0
    %897 = vmatprep.subr.mxu0 0.0
    %898 = vmatpush1.xpose.msra.mxu0 0.0
    %899 = vmatprep.subr.mxu0 0.0
    %900 = vmatpush1.xpose.msra.mxu0 0.0
    %901 = vmatprep.subr.mxu0 0.0
    %902 = vmatpush1.xpose.msra.mxu0 0.0
    %903 = vmatprep.subr.mxu0 0.0
    %904 = vmatpush1.xpose.msra.mxu0 0.0
    %905 = vmatprep.subr.mxu0 0.0
    %906 = vmatpush1.xpose.msra.mxu0 0.0
    %907 = vmatprep.subr.mxu0 0.0
    %908 = vmatpush1.xpose.msra.mxu0 0.0
    %909 = vmatprep.subr.mxu0 0.0
    %910 = vmatpush1.xpose.msra.mxu0 0.0
    %911 = vmatprep.subr.mxu0 0.0
    %912 = vmatpush1.xpose.msra.mxu0 0.0
    %913 = vmatprep.subr.mxu0 0.0
    %914 = vmatpush1.xpose.msra.mxu0 0.0
    %915 = vmatprep.subr.mxu0 0.0
    %916 = vmatpush1.xpose.msra.mxu0 0.0
    %917 = vmatprep.subr.mxu0 0.0
    %918 = vmatpush1.xpose.msra.mxu0 0.0
    %919 = vmatprep.subr.mxu0 0.0
    %920 = vmatpush1.xpose.msra.mxu0 0.0
    %921 = vmatprep.subr.mxu0 0.0
    %922 = vmatpush1.xpose.msra.mxu0 0.0
    %923 = vmatprep.subr.mxu0 0.0
    %924 = vmatpush1.xpose.msra.mxu0 0.0
    %925 = vmatprep.mubr.f32.mxu0 0.0
    %926 = vmatmul.mubr.f32.gmra.mrb[0].mxu0 %v783
    %v927 = vpop.f32.mrb[0].mxu0
    %v928 = vadd.f32 %v781, %v927
    %v929 = vpop.f32.mrb[0].mxu0
    %930 = vdwg.mxu0
    %v932 = vsel %vm249, %v773, 0
    %934 = vmatprep.subr.mxu0 0.0
    %935 = vmatpush1.xpose.msra.mxu0 %v932
    %936 = vmatprep.subr.mxu0 0.0
    %937 = vmatpush1.xpose.msra.mxu0 0.0
    %938 = vmatprep.subr.mxu0 0.0
    %939 = vmatpush1.xpose.msra.mxu0 0.0
    %940 = vmatprep.subr.mxu0 0.0
    %941 = vmatpush1.xpose.msra.mxu0 0.0
    %942 = vmatprep.subr.mxu0 0.0
    %943 = vmatpush1.xpose.msra.mxu0 0.0
    %944 = vmatprep.subr.mxu0 0.0
    %945 = vmatpush1.xpose.msra.mxu0 0.0
    %946 = vmatprep.subr.mxu0 0.0
    %947 = vmatpush1.xpose.msra.mxu0 0.0
    %948 = vmatprep.subr.mxu0 0.0
    %949 = vmatpush1.xpose.msra.mxu0 0.0
    %950 = vmatprep.subr.mxu0 0.0
    %951 = vmatpush1.xpose.msra.mxu0 0.0
    %952 = vmatprep.subr.mxu0 0.0
    %953 = vmatpush1.xpose.msra.mxu0 0.0
    %954 = vmatprep.subr.mxu0 0.0
    %955 = vmatpush1.xpose.msra.mxu0 0.0
    %956 = vmatprep.subr.mxu0 0.0
    %957 = vmatpush1.xpose.msra.mxu0 0.0
    %958 = vmatprep.subr.mxu0 0.0
    %959 = vmatpush1.xpose.msra.mxu0 0.0
    %960 = vmatprep.subr.mxu0 0.0
    %961 = vmatpush1.xpose.msra.mxu0 0.0
    %962 = vmatprep.subr.mxu0 0.0
    %963 = vmatpush1.xpose.msra.mxu0 0.0
    %964 = vmatprep.subr.mxu0 0.0
    %965 = vmatpush1.xpose.msra.mxu0 0.0
    %966 = vmatprep.subr.mxu0 0.0
    %967 = vmatpush1.xpose.msra.mxu0 0.0
    %968 = vmatprep.subr.mxu0 0.0
    %969 = vmatpush1.xpose.msra.mxu0 0.0
    %970 = vmatprep.subr.mxu0 0.0
    %971 = vmatpush1.xpose.msra.mxu0 0.0
    %972 = vmatprep.subr.mxu0 0.0
    %973 = vmatpush1.xpose.msra.mxu0 0.0
    %974 = vmatprep.subr.mxu0 0.0
    %975 = vmatpush1.xpose.msra.mxu0 0.0
    %976 = vmatprep.subr.mxu0 0.0
    %977 = vmatpush1.xpose.msra.mxu0 0.0
    %978 = vmatprep.subr.mxu0 0.0
    %979 = vmatpush1.xpose.msra.mxu0 0.0
    %980 = vmatprep.subr.mxu0 0.0
    %981 = vmatpush1.xpose.msra.mxu0 0.0
    %982 = vmatprep.subr.mxu0 0.0
    %983 = vmatpush1.xpose.msra.mxu0 0.0
    %984 = vmatprep.subr.mxu0 0.0
    %985 = vmatpush1.xpose.msra.mxu0 0.0
    %986 = vmatprep.subr.mxu0 0.0
    %987 = vmatpush1.xpose.msra.mxu0 0.0
    %988 = vmatprep.subr.mxu0 0.0
    %989 = vmatpush1.xpose.msra.mxu0 0.0
    %990 = vmatprep.subr.mxu0 0.0
    %991 = vmatpush1.xpose.msra.mxu0 0.0
    %992 = vmatprep.subr.mxu0 0.0
    %993 = vmatpush1.xpose.msra.mxu0 0.0
    %994 = vmatprep.subr.mxu0 0.0
    %995 = vmatpush1.xpose.msra.mxu0 0.0
    %996 = vmatprep.subr.mxu0 0.0
    %997 = vmatpush1.xpose.msra.mxu0 0.0
    %998 = vmatprep.mubr.f32.mxu0 0.0
    %999 = vmatmul.mubr.f32.gmra.mrb[0].mxu0 %v783
    %v1000 = vpop.f32.mrb[0].mxu0
    %v1001 = vadd.f32 %v781, %v1000
    %v1002 = vpop.f32.mrb[0].mxu0
    %1003 = vdwg.mxu0
    %v1005 = vsel %vm249, %v774, 0
    %1007 = vmatprep.subr.mxu0 0.0
    %1008 = vmatpush1.xpose.msra.mxu0 %v1005
    %1009 = vmatprep.subr.mxu0 0.0
    %1010 = vmatpush1.xpose.msra.mxu0 0.0
    %1011 = vmatprep.subr.mxu0 0.0
    %1012 = vmatpush1.xpose.msra.mxu0 0.0
    %1013 = vmatprep.subr.mxu0 0.0
    %1014 = vmatpush1.xpose.msra.mxu0 0.0
    %1015 = vmatprep.subr.mxu0 0.0
    %1016 = vmatpush1.xpose.msra.mxu0 0.0
    %1017 = vmatprep.subr.mxu0 0.0
    %1018 = vmatpush1.xpose.msra.mxu0 0.0
    %1019 = vmatprep.subr.mxu0 0.0
    %1020 = vmatpush1.xpose.msra.mxu0 0.0
    %1021 = vmatprep.subr.mxu0 0.0
    %1022 = vmatpush1.xpose.msra.mxu0 0.0
    %1023 = vmatprep.subr.mxu0 0.0
    %1024 = vmatpush1.xpose.msra.mxu0 0.0
    %1025 = vmatprep.subr.mxu0 0.0
    %1026 = vmatpush1.xpose.msra.mxu0 0.0
    %1027 = vmatprep.subr.mxu0 0.0
    %1028 = vmatpush1.xpose.msra.mxu0 0.0
    %1029 = vmatprep.subr.mxu0 0.0
    %1030 = vmatpush1.xpose.msra.mxu0 0.0
    %1031 = vmatprep.subr.mxu0 0.0
    %1032 = vmatpush1.xpose.msra.mxu0 0.0
    %1033 = vmatprep.subr.mxu0 0.0
    %1034 = vmatpush1.xpose.msra.mxu0 0.0
    %1035 = vmatprep.subr.mxu0 0.0
    %1036 = vmatpush1.xpose.msra.mxu0 0.0
    %1037 = vmatprep.subr.mxu0 0.0
    %1038 = vmatpush1.xpose.msra.mxu0 0.0
    %1039 = vmatprep.subr.mxu0 0.0
    %1040 = vmatpush1.xpose.msra.mxu0 0.0
    %1041 = vmatprep.subr.mxu0 0.0
    %1042 = vmatpush1.xpose.msra.mxu0 0.0
    %1043 = vmatprep.subr.mxu0 0.0
    %1044 = vmatpush1.xpose.msra.mxu0 0.0
    %1045 = vmatprep.subr.mxu0 0.0
    %1046 = vmatpush1.xpose.msra.mxu0 0.0
    %1047 = vmatprep.subr.mxu0 0.0
    %1048 = vmatpush1.xpose.msra.mxu0 0.0
    %1049 = vmatprep.subr.mxu0 0.0
    %1050 = vmatpush1.xpose.msra.mxu0 0.0
    %1051 = vmatprep.subr.mxu0 0.0
    %1052 = vmatpush1.xpose.msra.mxu0 0.0
    %1053 = vmatprep.subr.mxu0 0.0
    %1054 = vmatpush1.xpose.msra.mxu0 0.0
    %1055 = vmatprep.subr.mxu0 0.0
    %1056 = vmatpush1.xpose.msra.mxu0 0.0
    %1057 = vmatprep.subr.mxu0 0.0
    %1058 = vmatpush1.xpose.msra.mxu0 0.0
    %1059 = vmatprep.subr.mxu0 0.0
    %1060 = vmatpush1.xpose.msra.mxu0 0.0
    %1061 = vmatprep.subr.mxu0 0.0
    %1062 = vmatpush1.xpose.msra.mxu0 0.0
    %1063 = vmatprep.subr.mxu0 0.0
    %1064 = vmatpush1.xpose.msra.mxu0 0.0
    %1065 = vmatprep.subr.mxu0 0.0
    %1066 = vmatpush1.xpose.msra.mxu0 0.0
    %1067 = vmatprep.subr.mxu0 0.0
    %1068 = vmatpush1.xpose.msra.mxu0 0.0
    %1069 = vmatprep.subr.mxu0 0.0
    %1070 = vmatpush1.xpose.msra.mxu0 0.0
    %1071 = vmatprep.mubr.f32.mxu0 0.0
    %1072 = vmatmul.mubr.f32.gmra.mrb[0].mxu0 %v783
    %v1073 = vpop.f32.mrb[0].mxu0
    %v1074 = vadd.f32 %v781, %v1073
    %v1075 = vpop.f32.mrb[0].mxu0
    %1076 = vdwg.mxu0
    %v1078 = vsel %vm249, %v775, 0
    %1080 = vmatprep.subr.mxu0 0.0
    %1081 = vmatpush1.xpose.msra.mxu0 %v1078
    %1082 = vmatprep.subr.mxu0 0.0
    %1083 = vmatpush1.xpose.msra.mxu0 0.0
    %1084 = vmatprep.subr.mxu0 0.0
    %1085 = vmatpush1.xpose.msra.mxu0 0.0
    %1086 = vmatprep.subr.mxu0 0.0
    %1087 = vmatpush1.xpose.msra.mxu0 0.0
    %1088 = vmatprep.subr.mxu0 0.0
    %1089 = vmatpush1.xpose.msra.mxu0 0.0
    %1090 = vmatprep.subr.mxu0 0.0
    %1091 = vmatpush1.xpose.msra.mxu0 0.0
    %1092 = vmatprep.subr.mxu0 0.0
    %1093 = vmatpush1.xpose.msra.mxu0 0.0
    %1094 = vmatprep.subr.mxu0 0.0
    %1095 = vmatpush1.xpose.msra.mxu0 0.0
    %1096 = vmatprep.subr.mxu0 0.0
    %1097 = vmatpush1.xpose.msra.mxu0 0.0
    %1098 = vmatprep.subr.mxu0 0.0
    %1099 = vmatpush1.xpose.msra.mxu0 0.0
    %1100 = vmatprep.subr.mxu0 0.0
    %1101 = vmatpush1.xpose.msra.mxu0 0.0
    %1102 = vmatprep.subr.mxu0 0.0
    %1103 = vmatpush1.xpose.msra.mxu0 0.0
    %1104 = vmatprep.subr.mxu0 0.0
    %1105 = vmatpush1.xpose.msra.mxu0 0.0
    %1106 = vmatprep.subr.mxu0 0.0
    %1107 = vmatpush1.xpose.msra.mxu0 0.0
    %1108 = vmatprep.subr.mxu0 0.0
    %1109 = vmatpush1.xpose.msra.mxu0 0.0
    %1110 = vmatprep.subr.mxu0 0.0
    %1111 = vmatpush1.xpose.msra.mxu0 0.0
    %1112 = vmatprep.subr.mxu0 0.0
    %1113 = vmatpush1.xpose.msra.mxu0 0.0
    %1114 = vmatprep.subr.mxu0 0.0
    %1115 = vmatpush1.xpose.msra.mxu0 0.0
    %1116 = vmatprep.subr.mxu0 0.0
    %1117 = vmatpush1.xpose.msra.mxu0 0.0
    %1118 = vmatprep.subr.mxu0 0.0
    %1119 = vmatpush1.xpose.msra.mxu0 0.0
    %1120 = vmatprep.subr.mxu0 0.0
    %1121 = vmatpush1.xpose.msra.mxu0 0.0
    %1122 = vmatprep.subr.mxu0 0.0
    %1123 = vmatpush1.xpose.msra.mxu0 0.0
    %1124 = vmatprep.subr.mxu0 0.0
    %1125 = vmatpush1.xpose.msra.mxu0 0.0
    %1126 = vmatprep.subr.mxu0 0.0
    %1127 = vmatpush1.xpose.msra.mxu0 0.0
    %1128 = vmatprep.subr.mxu0 0.0
    %1129 = vmatpush1.xpose.msra.mxu0 0.0
    %1130 = vmatprep.subr.mxu0 0.0
    %1131 = vmatpush1.xpose.msra.mxu0 0.0
    %1132 = vmatprep.subr.mxu0 0.0
    %1133 = vmatpush1.xpose.msra.mxu0 0.0
    %1134 = vmatprep.subr.mxu0 0.0
    %1135 = vmatpush1.xpose.msra.mxu0 0.0
    %1136 = vmatprep.subr.mxu0 0.0
    %1137 = vmatpush1.xpose.msra.mxu0 0.0
    %1138 = vmatprep.subr.mxu0 0.0
    %1139 = vmatpush1.xpose.msra.mxu0 0.0
    %1140 = vmatprep.subr.mxu0 0.0
    %1141 = vmatpush1.xpose.msra.mxu0 0.0
    %1142 = vmatprep.subr.mxu0 0.0
    %1143 = vmatpush1.xpose.msra.mxu0 0.0
    %1144 = vmatprep.mubr.f32.mxu0 0.0
    %1145 = vmatmul.mubr.f32.gmra.mrb[0].mxu0 %v783
    %v1146 = vpop.f32.mrb[0].mxu0
    %v1147 = vadd.f32 %v781, %v1146
    %v1148 = vpop.f32.mrb[0].mxu0
    %1149 = vdwg.mxu0
    %v1151 = vsel %vm249, %v776, 0
    %1153 = vmatprep.subr.mxu0 0.0
    %1154 = vmatpush1.xpose.msra.mxu0 %v1151
    %1155 = vmatprep.subr.mxu0 0.0
    %1156 = vmatpush1.xpose.msra.mxu0 0.0
    %1157 = vmatprep.subr.mxu0 0.0
    %1158 = vmatpush1.xpose.msra.mxu0 0.0
    %1159 = vmatprep.subr.mxu0 0.0
    %1160 = vmatpush1.xpose.msra.mxu0 0.0
    %1161 = vmatprep.subr.mxu0 0.0
    %1162 = vmatpush1.xpose.msra.mxu0 0.0
    %1163 = vmatprep.subr.mxu0 0.0
    %1164 = vmatpush1.xpose.msra.mxu0 0.0
    %1165 = vmatprep.subr.mxu0 0.0
    %1166 = vmatpush1.xpose.msra.mxu0 0.0
    %1167 = vmatprep.subr.mxu0 0.0
    %1168 = vmatpush1.xpose.msra.mxu0 0.0
    %1169 = vmatprep.subr.mxu0 0.0
    %1170 = vmatpush1.xpose.msra.mxu0 0.0
    %1171 = vmatprep.subr.mxu0 0.0
    %1172 = vmatpush1.xpose.msra.mxu0 0.0
    %1173 = vmatprep.subr.mxu0 0.0
    %1174 = vmatpush1.xpose.msra.mxu0 0.0
    %1175 = vmatprep.subr.mxu0 0.0
    %1176 = vmatpush1.xpose.msra.mxu0 0.0
    %1177 = vmatprep.subr.mxu0 0.0
    %1178 = vmatpush1.xpose.msra.mxu0 0.0
    %1179 = vmatprep.subr.mxu0 0.0
    %1180 = vmatpush1.xpose.msra.mxu0 0.0
    %1181 = vmatprep.subr.mxu0 0.0
    %1182 = vmatpush1.xpose.msra.mxu0 0.0
    %1183 = vmatprep.subr.mxu0 0.0
    %1184 = vmatpush1.xpose.msra.mxu0 0.0
    %1185 = vmatprep.subr.mxu0 0.0
    %1186 = vmatpush1.xpose.msra.mxu0 0.0
    %1187 = vmatprep.subr.mxu0 0.0
    %1188 = vmatpush1.xpose.msra.mxu0 0.0
    %1189 = vmatprep.subr.mxu0 0.0
    %1190 = vmatpush1.xpose.msra.mxu0 0.0
    %1191 = vmatprep.subr.mxu0 0.0
    %1192 = vmatpush1.xpose.msra.mxu0 0.0
    %1193 = vmatprep.subr.mxu0 0.0
    %1194 = vmatpush1.xpose.msra.mxu0 0.0
    %1195 = vmatprep.subr.mxu0 0.0
    %1196 = vmatpush1.xpose.msra.mxu0 0.0
    %1197 = vmatprep.subr.mxu0 0.0
    %1198 = vmatpush1.xpose.msra.mxu0 0.0
    %1199 = vmatprep.subr.mxu0 0.0
    %1200 = vmatpush1.xpose.msra.mxu0 0.0
    %1201 = vmatprep.subr.mxu0 0.0
    %1202 = vmatpush1.xpose.msra.mxu0 0.0
    %1203 = vmatprep.subr.mxu0 0.0
    %1204 = vmatpush1.xpose.msra.mxu0 0.0
    %1205 = vmatprep.subr.mxu0 0.0
    %1206 = vmatpush1.xpose.msra.mxu0 0.0
    %1207 = vmatprep.subr.mxu0 0.0
    %1208 = vmatpush1.xpose.msra.mxu0 0.0
    %1209 = vmatprep.subr.mxu0 0.0
    %1210 = vmatpush1.xpose.msra.mxu0 0.0
    %1211 = vmatprep.subr.mxu0 0.0
    %1212 = vmatpush1.xpose.msra.mxu0 0.0
    %1213 = vmatprep.subr.mxu0 0.0
    %1214 = vmatpush1.xpose.msra.mxu0 0.0
    %1215 = vmatprep.subr.mxu0 0.0
    %1216 = vmatpush1.xpose.msra.mxu0 0.0
    %1217 = vmatprep.mubr.f32.mxu0 0.0
    %1218 = vmatmul.mubr.f32.gmra.mrb[0].mxu0 %v783
    %v1219 = vpop.f32.mrb[0].mxu0
    %v1220 = vadd.f32 %v781, %v1219
    %v1221 = vpop.f32.mrb[0].mxu0
    %1222 = vdwg.mxu0
    %v1224 = vsel %vm249, %v777, 0
    %1226 = vmatprep.subr.mxu0 0.0
    %1227 = vmatpush1.xpose.msra.mxu0 %v1224
    %1228 = vmatprep.subr.mxu0 0.0
    %1229 = vmatpush1.xpose.msra.mxu0 0.0
    %1230 = vmatprep.subr.mxu0 0.0
    %1231 = vmatpush1.xpose.msra.mxu0 0.0
    %1232 = vmatprep.subr.mxu0 0.0
    %1233 = vmatpush1.xpose.msra.mxu0 0.0
    %1234 = vmatprep.subr.mxu0 0.0
    %1235 = vmatpush1.xpose.msra.mxu0 0.0
    %1236 = vmatprep.subr.mxu0 0.0
    %1237 = vmatpush1.xpose.msra.mxu0 0.0
    %1238 = vmatprep.subr.mxu0 0.0
    %1239 = vmatpush1.xpose.msra.mxu0 0.0
    %1240 = vmatprep.subr.mxu0 0.0
    %1241 = vmatpush1.xpose.msra.mxu0 0.0
    %1242 = vmatprep.subr.mxu0 0.0
    %1243 = vmatpush1.xpose.msra.mxu0 0.0
    %1244 = vmatprep.subr.mxu0 0.0
    %1245 = vmatpush1.xpose.msra.mxu0 0.0
    %1246 = vmatprep.subr.mxu0 0.0
    %1247 = vmatpush1.xpose.msra.mxu0 0.0
    %1248 = vmatprep.subr.mxu0 0.0
    %1249 = vmatpush1.xpose.msra.mxu0 0.0
    %1250 = vmatprep.subr.mxu0 0.0
    %1251 = vmatpush1.xpose.msra.mxu0 0.0
    %1252 = vmatprep.subr.mxu0 0.0
    %1253 = vmatpush1.xpose.msra.mxu0 0.0
    %1254 = vmatprep.subr.mxu0 0.0
    %1255 = vmatpush1.xpose.msra.mxu0 0.0
    %1256 = vmatprep.subr.mxu0 0.0
    %1257 = vmatpush1.xpose.msra.mxu0 0.0
    %1258 = vmatprep.subr.mxu0 0.0
    %1259 = vmatpush1.xpose.msra.mxu0 0.0
    %1260 = vmatprep.subr.mxu0 0.0
    %1261 = vmatpush1.xpose.msra.mxu0 0.0
    %1262 = vmatprep.subr.mxu0 0.0
    %1263 = vmatpush1.xpose.msra.mxu0 0.0
    %1264 = vmatprep.subr.mxu0 0.0
    %1265 = vmatpush1.xpose.msra.mxu0 0.0
    %1266 = vmatprep.subr.mxu0 0.0
    %1267 = vmatpush1.xpose.msra.mxu0 0.0
    %1268 = vmatprep.subr.mxu0 0.0
    %1269 = vmatpush1.xpose.msra.mxu0 0.0
    %1270 = vmatprep.subr.mxu0 0.0
    %1271 = vmatpush1.xpose.msra.mxu0 0.0
    %1272 = vmatprep.subr.mxu0 0.0
    %1273 = vmatpush1.xpose.msra.mxu0 0.0
    %1274 = vmatprep.subr.mxu0 0.0
    %1275 = vmatpush1.xpose.msra.mxu0 0.0
    %1276 = vmatprep.subr.mxu0 0.0
    %1277 = vmatpush1.xpose.msra.mxu0 0.0
    %1278 = vmatprep.subr.mxu0 0.0
    %1279 = vmatpush1.xpose.msra.mxu0 0.0
    %1280 = vmatprep.subr.mxu0 0.0
    %1281 = vmatpush1.xpose.msra.mxu0 0.0
    %1282 = vmatprep.subr.mxu0 0.0
    %1283 = vmatpush1.xpose.msra.mxu0 0.0
    %1284 = vmatprep.subr.mxu0 0.0
    %1285 = vmatpush1.xpose.msra.mxu0 0.0
    %1286 = vmatprep.subr.mxu0 0.0
    %1287 = vmatpush1.xpose.msra.mxu0 0.0
    %1288 = vmatprep.subr.mxu0 0.0
    %1289 = vmatpush1.xpose.msra.mxu0 0.0
    %1290 = vmatprep.mubr.f32.mxu0 0.0
    %1291 = vmatmul.mubr.f32.gmra.mrb[0].mxu0 %v783
    %v1292 = vpop.f32.mrb[0].mxu0
    %v1293 = vadd.f32 %v781, %v1292
    %v1294 = vpop.f32.mrb[0].mxu0
    %1295 = vdwg.mxu0
    %v1297 = vsel %vm249, %v778, 0
    %1299 = vmatprep.subr.mxu0 0.0
    %1300 = vmatpush1.xpose.msra.mxu0 %v1297
    %1301 = vmatprep.subr.mxu0 0.0
    %1302 = vmatpush1.xpose.msra.mxu0 0.0
    %1303 = vmatprep.subr.mxu0 0.0
    %1304 = vmatpush1.xpose.msra.mxu0 0.0
    %1305 = vmatprep.subr.mxu0 0.0
    %1306 = vmatpush1.xpose.msra.mxu0 0.0
    %1307 = vmatprep.subr.mxu0 0.0
    %1308 = vmatpush1.xpose.msra.mxu0 0.0
    %1309 = vmatprep.subr.mxu0 0.0
    %1310 = vmatpush1.xpose.msra.mxu0 0.0
    %1311 = vmatprep.subr.mxu0 0.0
    %1312 = vmatpush1.xpose.msra.mxu0 0.0
    %1313 = vmatprep.subr.mxu0 0.0
    %1314 = vmatpush1.xpose.msra.mxu0 0.0
    %1315 = vmatprep.subr.mxu0 0.0
    %1316 = vmatpush1.xpose.msra.mxu0 0.0
    %1317 = vmatprep.subr.mxu0 0.0
    %1318 = vmatpush1.xpose.msra.mxu0 0.0
    %1319 = vmatprep.subr.mxu0 0.0
    %1320 = vmatpush1.xpose.msra.mxu0 0.0
    %1321 = vmatprep.subr.mxu0 0.0
    %1322 = vmatpush1.xpose.msra.mxu0 0.0
    %1323 = vmatprep.subr.mxu0 0.0
    %1324 = vmatpush1.xpose.msra.mxu0 0.0
    %1325 = vmatprep.subr.mxu0 0.0
    %1326 = vmatpush1.xpose.msra.mxu0 0.0
    %1327 = vmatprep.subr.mxu0 0.0
    %1328 = vmatpush1.xpose.msra.mxu0 0.0
    %1329 = vmatprep.subr.mxu0 0.0
    %1330 = vmatpush1.xpose.msra.mxu0 0.0
    %1331 = vmatprep.subr.mxu0 0.0
    %1332 = vmatpush1.xpose.msra.mxu0 0.0
    %1333 = vmatprep.subr.mxu0 0.0
    %1334 = vmatpush1.xpose.msra.mxu0 0.0
    %1335 = vmatprep.subr.mxu0 0.0
    %1336 = vmatpush1.xpose.msra.mxu0 0.0
    %1337 = vmatprep.subr.mxu0 0.0
    %1338 = vmatpush1.xpose.msra.mxu0 0.0
    %1339 = vmatprep.subr.mxu0 0.0
    %1340 = vmatpush1.xpose.msra.mxu0 0.0
    %1341 = vmatprep.subr.mxu0 0.0
    %1342 = vmatpush1.xpose.msra.mxu0 0.0
    %1343 = vmatprep.subr.mxu0 0.0
    %1344 = vmatpush1.xpose.msra.mxu0 0.0
    %1345 = vmatprep.subr.mxu0 0.0
    %1346 = vmatpush1.xpose.msra.mxu0 0.0
    %1347 = vmatprep.subr.mxu0 0.0
    %1348 = vmatpush1.xpose.msra.mxu0 0.0
    %1349 = vmatprep.subr.mxu0 0.0
    %1350 = vmatpush1.xpose.msra.mxu0 0.0
    %1351 = vmatprep.subr.mxu0 0.0
    %1352 = vmatpush1.xpose.msra.mxu0 0.0
    %1353 = vmatprep.subr.mxu0 0.0
    %1354 = vmatpush1.xpose.msra.mxu0 0.0
    %1355 = vmatprep.subr.mxu0 0.0
    %1356 = vmatpush1.xpose.msra.mxu0 0.0
    %1357 = vmatprep.subr.mxu0 0.0
    %1358 = vmatpush1.xpose.msra.mxu0 0.0
    %1359 = vmatprep.subr.mxu0 0.0
    %1360 = vmatpush1.xpose.msra.mxu0 0.0
    %1361 = vmatprep.subr.mxu0 0.0
    %1362 = vmatpush1.xpose.msra.mxu0 0.0
    %1363 = vmatprep.mubr.f32.mxu0 0.0
    %1364 = vmatmul.mubr.f32.gmra.mrb[0].mxu0 %v783
    %v1365 = vpop.f32.mrb[0].mxu0
    %v1366 = vadd.f32 %v781, %v1365
    %v1367 = vpop.f32.mrb[0].mxu0
    %1368 = vdwg.mxu0
    %v1369 = vld [vmem:[#allocation11] sm:$0x1]
    %v1370 = vld [vmem:[#allocation11 + $0x1] sm:$0x1]
    %v1371 = vld [vmem:[#allocation11 + $0x2] sm:$0x1]
    %v1372 = vld [vmem:[#allocation11 + $0x3] sm:$0x1]
    %v1373 = vld [vmem:[#allocation11 + $0x4] sm:$0x1]
    %v1374 = vld [vmem:[#allocation11 + $0x5] sm:$0x1]
    %v1375 = vld [vmem:[#allocation11 + $0x6] sm:$0x1]
    %v1376 = vld [vmem:[#allocation11 + $0x7] sm:$0x1]
    %vm1377 = vcmp.gt.f32.partialorder %v1369, 0.5
    %vm1378 = vcmp.gt.f32.partialorder %v1370, 0.5
    %vm1379 = vcmp.gt.f32.partialorder %v1371, 0.5
    %vm1380 = vcmp.gt.f32.partialorder %v1372, 0.5
    %vm1381 = vcmp.gt.f32.partialorder %v1373, 0.5
    %vm1382 = vcmp.gt.f32.partialorder %v1374, 0.5
    %vm1383 = vcmp.gt.f32.partialorder %v1375, 0.5
    %vm1384 = vcmp.gt.f32.partialorder %v1376, 0.5
    %v1385 = vsel %vm1377, -1e+20, %v855
    %v1386 = vsel %vm1378, -1e+20, %v928
    %v1387 = vsel %vm1379, -1e+20, %v1001
    %v1388 = vsel %vm1380, -1e+20, %v1074
    %v1389 = vsel %vm1381, -1e+20, %v1147
    %v1390 = vsel %vm1382, -1e+20, %v1220
    %v1391 = vsel %vm1383, -1e+20, %v1293
    %v1392 = vsel %vm1384, -1e+20, %v1366
    %vm1393 = vcmask 57344
    %v1394 = vsel %vm1393, %v1385, -inf
    %1395 = vmax.xlane.f32.xlu0 %v1394
    %v1396 = vpop.xlane.xlu0 %1395
    %v1397 = vsel %vm1393, %v1386, -inf
    %1398 = vmax.xlane.f32.xlu0 %v1397
    %v1399 = vpop.xlane.xlu0 %1398
    %v1400 = vsel %vm1393, %v1387, -inf
    %1401 = vmax.xlane.f32.xlu0 %v1400
    %v1402 = vpop.xlane.xlu0 %1401
    %v1403 = vsel %vm1393, %v1388, -inf
    %1404 = vmax.xlane.f32.xlu0 %v1403
    %v1405 = vpop.xlane.xlu0 %1404
    %v1406 = vsel %vm1393, %v1389, -inf
    %1407 = vmax.xlane.f32.xlu0 %v1406
    %v1408 = vpop.xlane.xlu0 %1407
    %v1409 = vsel %vm1393, %v1390, -inf
    %1410 = vmax.xlane.f32.xlu0 %v1409
    %v1411 = vpop.xlane.xlu0 %1410
    %v1412 = vsel %vm1393, %v1391, -inf
    %1413 = vmax.xlane.f32.xlu0 %v1412
    %v1414 = vpop.xlane.xlu0 %1413
    %v1415 = vsel %vm1393, %v1392, -inf
    %1416 = vmax.xlane.f32.xlu0 %v1415
    %v1417 = vpop.xlane.xlu0 %1416
    %v1418 = vsub.f32 %v1385, %v1396
    %v1419 = vsub.f32 %v1386, %v1399
    %v1420 = vsub.f32 %v1387, %v1402
    %v1421 = vsub.f32 %v1388, %v1405
    %v1422 = vsub.f32 %v1389, %v1408
    %v1423 = vsub.f32 %v1390, %v1411
    %v1424 = vsub.f32 %v1391, %v1414
    %v1425 = vsub.f32 %v1392, %v1417
    %v1426 = vmul.f32 %v1418, 1.442695
    %v1427 = vpow.pop %v1426
    %v1428 = vmul.f32 %v1419, 1.442695
    %v1429 = vpow.pop %v1428
    %v1430 = vmul.f32 %v1420, 1.442695
    %v1431 = vpow.pop %v1430
    %v1432 = vmul.f32 %v1421, 1.442695
    %v1433 = vpow.pop %v1432
    %v1434 = vmul.f32 %v1422, 1.442695
    %v1435 = vpow.pop %v1434
    %v1436 = vmul.f32 %v1423, 1.442695
    %v1437 = vpow.pop %v1436
    %v1438 = vmul.f32 %v1424, 1.442695
    %v1439 = vpow.pop %v1438
    %v1440 = vmul.f32 %v1425, 1.442695
    %v1441 = vpow.pop %v1440
    %v1442 = vsel %vm1393, %v1427, 0.0
    %1443 = vadd.xlane.f32.xlu0 %v1442
    %v1444 = vpop.xlane.xlu0 %1443
    %v1445 = vsel %vm1393, %v1429, 0.0
    %1446 = vadd.xlane.f32.xlu0 %v1445
    %v1447 = vpop.xlane.xlu0 %1446
    %v1448 = vsel %vm1393, %v1431, 0.0
    %1449 = vadd.xlane.f32.xlu0 %v1448
    %v1450 = vpop.xlane.xlu0 %1449
    %v1451 = vsel %vm1393, %v1433, 0.0
    %1452 = vadd.xlane.f32.xlu0 %v1451
    %v1453 = vpop.xlane.xlu0 %1452
    %v1454 = vsel %vm1393, %v1435, 0.0
    %1455 = vadd.xlane.f32.xlu0 %v1454
    %v1456 = vpop.xlane.xlu0 %1455
    %v1457 = vsel %vm1393, %v1437, 0.0
    %1458 = vadd.xlane.f32.xlu0 %v1457
    %v1459 = vpop.xlane.xlu0 %1458
    %v1460 = vsel %vm1393, %v1439, 0.0
    %1461 = vadd.xlane.f32.xlu0 %v1460
    %v1462 = vpop.xlane.xlu0 %1461
    %v1463 = vsel %vm1393, %v1441, 0.0
    %1464 = vadd.xlane.f32.xlu0 %v1463
    %v1465 = vpop.xlane.xlu0 %1464
    %v1466 = vrcp.pop %v1444
    %v1467 = vmul.f32 %v1427, %v1466
    %v1468 = vrcp.pop %v1447
    %v1469 = vmul.f32 %v1429, %v1468
    %v1470 = vrcp.pop %v1450
    %v1471 = vmul.f32 %v1431, %v1470
    %v1472 = vrcp.pop %v1453
    %v1473 = vmul.f32 %v1433, %v1472
    %v1474 = vrcp.pop %v1456
    %v1475 = vmul.f32 %v1435, %v1474
    %v1476 = vrcp.pop %v1459
    %v1477 = vmul.f32 %v1437, %v1476
    %v1478 = vrcp.pop %v1462
    %v1479 = vmul.f32 %v1439, %v1478
    %v1480 = vrcp.pop %v1465
    %v1481 = vmul.f32 %v1441, %v1480
    %v1482 = vlog2.pop %v1444
    %v1483 = vmul.f32 %v1482, 0.6931472
    %v1484 = vlog2.pop %v1447
    %v1485 = vmul.f32 %v1484, 0.6931472
    %v1486 = vlog2.pop %v1450
    %v1487 = vmul.f32 %v1486, 0.6931472
    %v1488 = vlog2.pop %v1453
    %v1489 = vmul.f32 %v1488, 0.6931472
    %v1490 = vlog2.pop %v1456
    %v1491 = vmul.f32 %v1490, 0.6931472
    %v1492 = vlog2.pop %v1459
    %v1493 = vmul.f32 %v1492, 0.6931472
    %v1494 = vlog2.pop %v1462
    %v1495 = vmul.f32 %v1494, 0.6931472
    %v1496 = vlog2.pop %v1465
    %v1497 = vmul.f32 %v1496, 0.6931472
    %v1498 = vsub.f32 %v1418, %v1483
    %v1499 = vsub.f32 %v1419, %v1485
    %v1500 = vsub.f32 %v1420, %v1487
    %v1501 = vsub.f32 %v1421, %v1489
    %v1502 = vsub.f32 %v1422, %v1491
    %v1503 = vsub.f32 %v1423, %v1493
    %v1504 = vsub.f32 %v1424, %v1495
    %v1505 = vsub.f32 %v1425, %v1497
    %vm1506 = vcmask 64512
    %v1508 = vsel %vm1506, %v1467, 0
    %1510 = vmatprep.subr.mxu0 0.0
    %1511 = vmatpush1.msra.mxu0 %v442
    %1512 = vmatprep.subr.mxu0 0.0
    %1513 = vmatpush1.msra.mxu0 0.0
    %1514 = vmatprep.subr.mxu0 0.0
    %1515 = vmatpush1.msra.mxu0 0.0
    %1516 = vmatprep.subr.mxu0 0.0
    %1517 = vmatpush1.msra.mxu0 0.0
    %1518 = vmatprep.subr.mxu0 0.0
    %1519 = vmatpush1.msra.mxu0 0.0
    %1520 = vmatprep.subr.mxu0 0.0
    %1521 = vmatpush1.msra.mxu0 0.0
    %1522 = vmatprep.subr.mxu0 0.0
    %1523 = vmatpush1.msra.mxu0 0.0
    %1524 = vmatprep.subr.mxu0 0.0
    %1525 = vmatpush1.msra.mxu0 0.0
    %1526 = vmatprep.subr.mxu0 0.0
    %1527 = vmatpush1.msra.mxu0 0.0
    %1528 = vmatprep.subr.mxu0 0.0
    %1529 = vmatpush1.msra.mxu0 0.0
    %1530 = vmatprep.subr.mxu0 0.0
    %1531 = vmatpush1.msra.mxu0 0.0
    %1532 = vmatprep.subr.mxu0 0.0
    %1533 = vmatpush1.msra.mxu0 0.0
    %1534 = vmatprep.subr.mxu0 0.0
    %1535 = vmatpush1.msra.mxu0 0.0
    %1536 = vmatprep.subr.mxu0 0.0
    %1537 = vmatpush1.msra.mxu0 0.0
    %1538 = vmatprep.subr.mxu0 0.0
    %1539 = vmatpush1.msra.mxu0 0.0
    %1540 = vmatprep.subr.mxu0 0.0
    %1541 = vmatpush1.msra.mxu0 0.0
    %1542 = vmatprep.subr.mxu0 0.0
    %1543 = vmatpush1.msra.mxu0 0.0
    %1544 = vmatprep.subr.mxu0 0.0
    %1545 = vmatpush1.msra.mxu0 0.0
    %1546 = vmatprep.subr.mxu0 0.0
    %1547 = vmatpush1.msra.mxu0 0.0
    %1548 = vmatprep.subr.mxu0 0.0
    %1549 = vmatpush1.msra.mxu0 0.0
    %1550 = vmatprep.subr.mxu0 0.0
    %1551 = vmatpush1.msra.mxu0 0.0
    %1552 = vmatprep.subr.mxu0 0.0
    %1553 = vmatpush1.msra.mxu0 0.0
    %1554 = vmatprep.subr.mxu0 0.0
    %1555 = vmatpush1.msra.mxu0 0.0
    %1556 = vmatprep.subr.mxu0 0.0
    %1557 = vmatpush1.msra.mxu0 0.0
    %1558 = vmatprep.subr.mxu0 0.0
    %1559 = vmatpush1.msra.mxu0 0.0
    %1560 = vmatprep.subr.mxu0 0.0
    %1561 = vmatpush1.msra.mxu0 0.0
    %1562 = vmatprep.subr.mxu0 0.0
    %1563 = vmatpush1.msra.mxu0 0.0
    %1564 = vmatprep.subr.mxu0 0.0
    %1565 = vmatpush1.msra.mxu0 0.0
    %1566 = vmatprep.subr.mxu0 0.0
    %1567 = vmatpush1.msra.mxu0 0.0
    %1568 = vmatprep.subr.mxu0 0.0
    %1569 = vmatpush1.msra.mxu0 0.0
    %1570 = vmatprep.subr.mxu0 0.0
    %1571 = vmatpush1.msra.mxu0 0.0
    %1572 = vmatprep.subr.mxu0 0.0
    %1573 = vmatpush1.msra.mxu0 0.0
    %1574 = vmatprep.mubr.f32.mxu0 0.0
    %1575 = vmatmul.mubr.f32.gmra.mrb[0].mxu0 %v1508
    %v1576 = vpop.f32.mrb[0].mxu0
    %v1577 = vadd.f32 0.0, %v1576
    %v1578 = vpop.f32.mrb[0].mxu0
    %1579 = vdwg.mxu0
    %v1581 = vsel %vm1506, %v1469, 0
    %1583 = vmatprep.subr.mxu0 0.0
    %1584 = vmatpush1.msra.mxu0 %v443
    %1585 = vmatprep.subr.mxu0 0.0
    %1586 = vmatpush1.msra.mxu0 0.0
    %1587 = vmatprep.subr.mxu0 0.0
    %1588 = vmatpush1.msra.mxu0 0.0
    %1589 = vmatprep.subr.mxu0 0.0
    %1590 = vmatpush1.msra.mxu0 0.0
    %1591 = vmatprep.subr.mxu0 0.0
    %1592 = vmatpush1.msra.mxu0 0.0
    %1593 = vmatprep.subr.mxu0 0.0
    %1594 = vmatpush1.msra.mxu0 0.0
    %1595 = vmatprep.subr.mxu0 0.0
    %1596 = vmatpush1.msra.mxu0 0.0
    %1597 = vmatprep.subr.mxu0 0.0
    %1598 = vmatpush1.msra.mxu0 0.0
    %1599 = vmatprep.subr.mxu0 0.0
    %1600 = vmatpush1.msra.mxu0 0.0
    %1601 = vmatprep.subr.mxu0 0.0
    %1602 = vmatpush1.msra.mxu0 0.0
    %1603 = vmatprep.subr.mxu0 0.0
    %1604 = vmatpush1.msra.mxu0 0.0
    %1605 = vmatprep.subr.mxu0 0.0
    %1606 = vmatpush1.msra.mxu0 0.0
    %1607 = vmatprep.subr.mxu0 0.0
    %1608 = vmatpush1.msra.mxu0 0.0
    %1609 = vmatprep.subr.mxu0 0.0
    %1610 = vmatpush1.msra.mxu0 0.0
    %1611 = vmatprep.subr.mxu0 0.0
    %1612 = vmatpush1.msra.mxu0 0.0
    %1613 = vmatprep.subr.mxu0 0.0
    %1614 = vmatpush1.msra.mxu0 0.0
    %1615 = vmatprep.subr.mxu0 0.0
    %1616 = vmatpush1.msra.mxu0 0.0
    %1617 = vmatprep.subr.mxu0 0.0
    %1618 = vmatpush1.msra.mxu0 0.0
    %1619 = vmatprep.subr.mxu0 0.0
    %1620 = vmatpush1.msra.mxu0 0.0
    %1621 = vmatprep.subr.mxu0 0.0
    %1622 = vmatpush1.msra.mxu0 0.0
    %1623 = vmatprep.subr.mxu0 0.0
    %1624 = vmatpush1.msra.mxu0 0.0
    %1625 = vmatprep.subr.mxu0 0.0
    %1626 = vmatpush1.msra.mxu0 0.0
    %1627 = vmatprep.subr.mxu0 0.0
    %1628 = vmatpush1.msra.mxu0 0.0
    %1629 = vmatprep.subr.mxu0 0.0
    %1630 = vmatpush1.msra.mxu0 0.0
    %1631 = vmatprep.subr.mxu0 0.0
    %1632 = vmatpush1.msra.mxu0 0.0
    %1633 = vmatprep.subr.mxu0 0.0
    %1634 = vmatpush1.msra.mxu0 0.0
    %1635 = vmatprep.subr.mxu0 0.0
    %1636 = vmatpush1.msra.mxu0 0.0
    %1637 = vmatprep.subr.mxu0 0.0
    %1638 = vmatpush1.msra.mxu0 0.0
    %1639 = vmatprep.subr.mxu0 0.0
    %1640 = vmatpush1.msra.mxu0 0.0
    %1641 = vmatprep.subr.mxu0 0.0
    %1642 = vmatpush1.msra.mxu0 0.0
    %1643 = vmatprep.subr.mxu0 0.0
    %1644 = vmatpush1.msra.mxu0 0.0
    %1645 = vmatprep.subr.mxu0 0.0
    %1646 = vmatpush1.msra.mxu0 0.0
    %1647 = vmatprep.mubr.f32.mxu0 0.0
    %1648 = vmatmul.mubr.f32.gmra.mrb[0].mxu0 %v1581
    %v1649 = vpop.f32.mrb[0].mxu0
    %v1650 = vadd.f32 0.0, %v1649
    %v1651 = vpop.f32.mrb[0].mxu0
    %1652 = vdwg.mxu0
    %v1654 = vsel %vm1506, %v1471, 0
    %1656 = vmatprep.subr.mxu0 0.0
    %1657 = vmatpush1.msra.mxu0 %v444
    %1658 = vmatprep.subr.mxu0 0.0
    %1659 = vmatpush1.msra.mxu0 0.0
    %1660 = vmatprep.subr.mxu0 0.0
    %1661 = vmatpush1.msra.mxu0 0.0
    %1662 = vmatprep.subr.mxu0 0.0
    %1663 = vmatpush1.msra.mxu0 0.0
    %1664 = vmatprep.subr.mxu0 0.0
    %1665 = vmatpush1.msra.mxu0 0.0
    %1666 = vmatprep.subr.mxu0 0.0
    %1667 = vmatpush1.msra.mxu0 0.0
    %1668 = vmatprep.subr.mxu0 0.0
    %1669 = vmatpush1.msra.mxu0 0.0
    %1670 = vmatprep.subr.mxu0 0.0
    %1671 = vmatpush1.msra.mxu0 0.0
    %1672 = vmatprep.subr.mxu0 0.0
    %1673 = vmatpush1.msra.mxu0 0.0
    %1674 = vmatprep.subr.mxu0 0.0
    %1675 = vmatpush1.msra.mxu0 0.0
    %1676 = vmatprep.subr.mxu0 0.0
    %1677 = vmatpush1.msra.mxu0 0.0
    %1678 = vmatprep.subr.mxu0 0.0
    %1679 = vmatpush1.msra.mxu0 0.0
    %1680 = vmatprep.subr.mxu0 0.0
    %1681 = vmatpush1.msra.mxu0 0.0
    %1682 = vmatprep.subr.mxu0 0.0
    %1683 = vmatpush1.msra.mxu0 0.0
    %1684 = vmatprep.subr.mxu0 0.0
    %1685 = vmatpush1.msra.mxu0 0.0
    %1686 = vmatprep.subr.mxu0 0.0
    %1687 = vmatpush1.msra.mxu0 0.0
    %1688 = vmatprep.subr.mxu0 0.0
    %1689 = vmatpush1.msra.mxu0 0.0
    %1690 = vmatprep.subr.mxu0 0.0
    %1691 = vmatpush1.msra.mxu0 0.0
    %1692 = vmatprep.subr.mxu0 0.0
    %1693 = vmatpush1.msra.mxu0 0.0
    %1694 = vmatprep.subr.mxu0 0.0
    %1695 = vmatpush1.msra.mxu0 0.0
    %1696 = vmatprep.subr.mxu0 0.0
    %1697 = vmatpush1.msra.mxu0 0.0
    %1698 = vmatprep.subr.mxu0 0.0
    %1699 = vmatpush1.msra.mxu0 0.0
    %1700 = vmatprep.subr.mxu0 0.0
    %1701 = vmatpush1.msra.mxu0 0.0
    %1702 = vmatprep.subr.mxu0 0.0
    %1703 = vmatpush1.msra.mxu0 0.0
    %1704 = vmatprep.subr.mxu0 0.0
    %1705 = vmatpush1.msra.mxu0 0.0
    %1706 = vmatprep.subr.mxu0 0.0
    %1707 = vmatpush1.msra.mxu0 0.0
    %1708 = vmatprep.subr.mxu0 0.0
    %1709 = vmatpush1.msra.mxu0 0.0
    %1710 = vmatprep.subr.mxu0 0.0
    %1711 = vmatpush1.msra.mxu0 0.0
    %1712 = vmatprep.subr.mxu0 0.0
    %1713 = vmatpush1.msra.mxu0 0.0
    %1714 = vmatprep.subr.mxu0 0.0
    %1715 = vmatpush1.msra.mxu0 0.0
    %1716 = vmatprep.subr.mxu0 0.0
    %1717 = vmatpush1.msra.mxu0 0.0
    %1718 = vmatprep.subr.mxu0 0.0
    %1719 = vmatpush1.msra.mxu0 0.0
    %1720 = vmatprep.mubr.f32.mxu0 0.0
    %1721 = vmatmul.mubr.f32.gmra.mrb[0].mxu0 %v1654
    %v1722 = vpop.f32.mrb[0].mxu0
    %v1723 = vadd.f32 0.0, %v1722
    %v1724 = vpop.f32.mrb[0].mxu0
    %1725 = vdwg.mxu0
    %v1727 = vsel %vm1506, %v1473, 0
    %1729 = vmatprep.subr.mxu0 0.0
    %1730 = vmatpush1.msra.mxu0 %v445
    %1731 = vmatprep.subr.mxu0 0.0
    %1732 = vmatpush1.msra.mxu0 0.0
    %1733 = vmatprep.subr.mxu0 0.0
    %1734 = vmatpush1.msra.mxu0 0.0
    %1735 = vmatprep.subr.mxu0 0.0
    %1736 = vmatpush1.msra.mxu0 0.0
    %1737 = vmatprep.subr.mxu0 0.0
    %1738 = vmatpush1.msra.mxu0 0.0
    %1739 = vmatprep.subr.mxu0 0.0
    %1740 = vmatpush1.msra.mxu0 0.0
    %1741 = vmatprep.subr.mxu0 0.0
    %1742 = vmatpush1.msra.mxu0 0.0
    %1743 = vmatprep.subr.mxu0 0.0
    %1744 = vmatpush1.msra.mxu0 0.0
    %1745 = vmatprep.subr.mxu0 0.0
    %1746 = vmatpush1.msra.mxu0 0.0
    %1747 = vmatprep.subr.mxu0 0.0
    %1748 = vmatpush1.msra.mxu0 0.0
    %1749 = vmatprep.subr.mxu0 0.0
    %1750 = vmatpush1.msra.mxu0 0.0
    %1751 = vmatprep.subr.mxu0 0.0
    %1752 = vmatpush1.msra.mxu0 0.0
    %1753 = vmatprep.subr.mxu0 0.0
    %1754 = vmatpush1.msra.mxu0 0.0
    %1755 = vmatprep.subr.mxu0 0.0
    %1756 = vmatpush1.msra.mxu0 0.0
    %1757 = vmatprep.subr.mxu0 0.0
    %1758 = vmatpush1.msra.mxu0 0.0
    %1759 = vmatprep.subr.mxu0 0.0
    %1760 = vmatpush1.msra.mxu0 0.0
    %1761 = vmatprep.subr.mxu0 0.0
    %1762 = vmatpush1.msra.mxu0 0.0
    %1763 = vmatprep.subr.mxu0 0.0
    %1764 = vmatpush1.msra.mxu0 0.0
    %1765 = vmatprep.subr.mxu0 0.0
    %1766 = vmatpush1.msra.mxu0 0.0
    %1767 = vmatprep.subr.mxu0 0.0
    %1768 = vmatpush1.msra.mxu0 0.0
    %1769 = vmatprep.subr.mxu0 0.0
    %1770 = vmatpush1.msra.mxu0 0.0
    %1771 = vmatprep.subr.mxu0 0.0
    %1772 = vmatpush1.msra.mxu0 0.0
    %1773 = vmatprep.subr.mxu0 0.0
    %1774 = vmatpush1.msra.mxu0 0.0
    %1775 = vmatprep.subr.mxu0 0.0
    %1776 = vmatpush1.msra.mxu0 0.0
    %1777 = vmatprep.subr.mxu0 0.0
    %1778 = vmatpush1.msra.mxu0 0.0
    %1779 = vmatprep.subr.mxu0 0.0
    %1780 = vmatpush1.msra.mxu0 0.0
    %1781 = vmatprep.subr.mxu0 0.0
    %1782 = vmatpush1.msra.mxu0 0.0
    %1783 = vmatprep.subr.mxu0 0.0
    %1784 = vmatpush1.msra.mxu0 0.0
    %1785 = vmatprep.subr.mxu0 0.0
    %1786 = vmatpush1.msra.mxu0 0.0
    %1787 = vmatprep.subr.mxu0 0.0
    %1788 = vmatpush1.msra.mxu0 0.0
    %1789 = vmatprep.subr.mxu0 0.0
    %1790 = vmatpush1.msra.mxu0 0.0
    %1791 = vmatprep.subr.mxu0 0.0
    %1792 = vmatpush1.msra.mxu0 0.0
    %1793 = vmatprep.mubr.f32.mxu0 0.0
    %1794 = vmatmul.mubr.f32.gmra.mrb[0].mxu0 %v1727
    %v1795 = vpop.f32.mrb[0].mxu0
    %v1796 = vadd.f32 0.0, %v1795
    %v1797 = vpop.f32.mrb[0].mxu0
    %1798 = vdwg.mxu0
    %v1800 = vsel %vm1506, %v1475, 0
    %1802 = vmatprep.subr.mxu0 0.0
    %1803 = vmatpush1.msra.mxu0 %v446
    %1804 = vmatprep.subr.mxu0 0.0
    %1805 = vmatpush1.msra.mxu0 0.0
    %1806 = vmatprep.subr.mxu0 0.0
    %1807 = vmatpush1.msra.mxu0 0.0
    %1808 = vmatprep.subr.mxu0 0.0
    %1809 = vmatpush1.msra.mxu0 0.0
    %1810 = vmatprep.subr.mxu0 0.0
    %1811 = vmatpush1.msra.mxu0 0.0
    %1812 = vmatprep.subr.mxu0 0.0
    %1813 = vmatpush1.msra.mxu0 0.0
    %1814 = vmatprep.subr.mxu0 0.0
    %1815 = vmatpush1.msra.mxu0 0.0
    %1816 = vmatprep.subr.mxu0 0.0
    %1817 = vmatpush1.msra.mxu0 0.0
    %1818 = vmatprep.subr.mxu0 0.0
    %1819 = vmatpush1.msra.mxu0 0.0
    %1820 = vmatprep.subr.mxu0 0.0
    %1821 = vmatpush1.msra.mxu0 0.0
    %1822 = vmatprep.subr.mxu0 0.0
    %1823 = vmatpush1.msra.mxu0 0.0
    %1824 = vmatprep.subr.mxu0 0.0
    %1825 = vmatpush1.msra.mxu0 0.0
    %1826 = vmatprep.subr.mxu0 0.0
    %1827 = vmatpush1.msra.mxu0 0.0
    %1828 = vmatprep.subr.mxu0 0.0
    %1829 = vmatpush1.msra.mxu0 0.0
    %1830 = vmatprep.subr.mxu0 0.0
    %1831 = vmatpush1.msra.mxu0 0.0
    %1832 = vmatprep.subr.mxu0 0.0
    %1833 = vmatpush1.msra.mxu0 0.0
    %1834 = vmatprep.subr.mxu0 0.0
    %1835 = vmatpush1.msra.mxu0 0.0
    %1836 = vmatprep.subr.mxu0 0.0
    %1837 = vmatpush1.msra.mxu0 0.0
    %1838 = vmatprep.subr.mxu0 0.0
    %1839 = vmatpush1.msra.mxu0 0.0
    %1840 = vmatprep.subr.mxu0 0.0
    %1841 = vmatpush1.msra.mxu0 0.0
    %1842 = vmatprep.subr.mxu0 0.0
    %1843 = vmatpush1.msra.mxu0 0.0
    %1844 = vmatprep.subr.mxu0 0.0
    %1845 = vmatpush1.msra.mxu0 0.0
    %1846 = vmatprep.subr.mxu0 0.0
    %1847 = vmatpush1.msra.mxu0 0.0
    %1848 = vmatprep.subr.mxu0 0.0
    %1849 = vmatpush1.msra.mxu0 0.0
    %1850 = vmatprep.subr.mxu0 0.0
    %1851 = vmatpush1.msra.mxu0 0.0
    %1852 = vmatprep.subr.mxu0 0.0
    %1853 = vmatpush1.msra.mxu0 0.0
    %1854 = vmatprep.subr.mxu0 0.0
    %1855 = vmatpush1.msra.mxu0 0.0
    %1856 = vmatprep.subr.mxu0 0.0
    %1857 = vmatpush1.msra.mxu0 0.0
    %1858 = vmatprep.subr.mxu0 0.0
    %1859 = vmatpush1.msra.mxu0 0.0
    %1860 = vmatprep.subr.mxu0 0.0
    %1861 = vmatpush1.msra.mxu0 0.0
    %1862 = vmatprep.subr.mxu0 0.0
    %1863 = vmatpush1.msra.mxu0 0.0
    %1864 = vmatprep.subr.mxu0 0.0
    %1865 = vmatpush1.msra.mxu0 0.0
    %1866 = vmatprep.mubr.f32.mxu0 0.0
    %1867 = vmatmul.mubr.f32.gmra.mrb[0].mxu0 %v1800
    %v1868 = vpop.f32.mrb[0].mxu0
    %v1869 = vadd.f32 0.0, %v1868
    %v1870 = vpop.f32.mrb[0].mxu0
    %1871 = vdwg.mxu0
    %v1873 = vsel %vm1506, %v1477, 0
    %1875 = vmatprep.subr.mxu0 0.0
    %1876 = vmatpush1.msra.mxu0 %v447
    %1877 = vmatprep.subr.mxu0 0.0
    %1878 = vmatpush1.msra.mxu0 0.0
    %1879 = vmatprep.subr.mxu0 0.0
    %1880 = vmatpush1.msra.mxu0 0.0
    %1881 = vmatprep.subr.mxu0 0.0
    %1882 = vmatpush1.msra.mxu0 0.0
    %1883 = vmatprep.subr.mxu0 0.0
    %1884 = vmatpush1.msra.mxu0 0.0
    %1885 = vmatprep.subr.mxu0 0.0
    %1886 = vmatpush1.msra.mxu0 0.0
    %1887 = vmatprep.subr.mxu0 0.0
    %1888 = vmatpush1.msra.mxu0 0.0
    %1889 = vmatprep.subr.mxu0 0.0
    %1890 = vmatpush1.msra.mxu0 0.0
    %1891 = vmatprep.subr.mxu0 0.0
    %1892 = vmatpush1.msra.mxu0 0.0
    %1893 = vmatprep.subr.mxu0 0.0
    %1894 = vmatpush1.msra.mxu0 0.0
    %1895 = vmatprep.subr.mxu0 0.0
    %1896 = vmatpush1.msra.mxu0 0.0
    %1897 = vmatprep.subr.mxu0 0.0
    %1898 = vmatpush1.msra.mxu0 0.0
    %1899 = vmatprep.subr.mxu0 0.0
    %1900 = vmatpush1.msra.mxu0 0.0
    %1901 = vmatprep.subr.mxu0 0.0
    %1902 = vmatpush1.msra.mxu0 0.0
    %1903 = vmatprep.subr.mxu0 0.0
    %1904 = vmatpush1.msra.mxu0 0.0
    %1905 = vmatprep.subr.mxu0 0.0
    %1906 = vmatpush1.msra.mxu0 0.0
    %1907 = vmatprep.subr.mxu0 0.0
    %1908 = vmatpush1.msra.mxu0 0.0
    %1909 = vmatprep.subr.mxu0 0.0
    %1910 = vmatpush1.msra.mxu0 0.0
    %1911 = vmatprep.subr.mxu0 0.0
    %1912 = vmatpush1.msra.mxu0 0.0
    %1913 = vmatprep.subr.mxu0 0.0
    %1914 = vmatpush1.msra.mxu0 0.0
    %1915 = vmatprep.subr.mxu0 0.0
    %1916 = vmatpush1.msra.mxu0 0.0
    %1917 = vmatprep.subr.mxu0 0.0
    %1918 = vmatpush1.msra.mxu0 0.0
    %1919 = vmatprep.subr.mxu0 0.0
    %1920 = vmatpush1.msra.mxu0 0.0
    %1921 = vmatprep.subr.mxu0 0.0
    %1922 = vmatpush1.msra.mxu0 0.0
    %1923 = vmatprep.subr.mxu0 0.0
    %1924 = vmatpush1.msra.mxu0 0.0
    %1925 = vmatprep.subr.mxu0 0.0
    %1926 = vmatpush1.msra.mxu0 0.0
    %1927 = vmatprep.subr.mxu0 0.0
    %1928 = vmatpush1.msra.mxu0 0.0
    %1929 = vmatprep.subr.mxu0 0.0
    %1930 = vmatpush1.msra.mxu0 0.0
    %1931 = vmatprep.subr.mxu0 0.0
    %1932 = vmatpush1.msra.mxu0 0.0
    %1933 = vmatprep.subr.mxu0 0.0
    %1934 = vmatpush1.msra.mxu0 0.0
    %1935 = vmatprep.subr.mxu0 0.0
    %1936 = vmatpush1.msra.mxu0 0.0
    %1937 = vmatprep.subr.mxu0 0.0
    %1938 = vmatpush1.msra.mxu0 0.0
    %1939 = vmatprep.mubr.f32.mxu0 0.0
    %1940 = vmatmul.mubr.f32.gmra.mrb[0].mxu0 %v1873
    %v1941 = vpop.f32.mrb[0].mxu0
    %v1942 = vadd.f32 0.0, %v1941
    %v1943 = vpop.f32.mrb[0].mxu0
    %1944 = vdwg.mxu0
    %v1946 = vsel %vm1506, %v1479, 0
    %1948 = vmatprep.subr.mxu0 0.0
    %1949 = vmatpush1.msra.mxu0 %v448
    %1950 = vmatprep.subr.mxu0 0.0
    %1951 = vmatpush1.msra.mxu0 0.0
    %1952 = vmatprep.subr.mxu0 0.0
    %1953 = vmatpush1.msra.mxu0 0.0
    %1954 = vmatprep.subr.mxu0 0.0
    %1955 = vmatpush1.msra.mxu0 0.0
    %1956 = vmatprep.subr.mxu0 0.0
    %1957 = vmatpush1.msra.mxu0 0.0
    %1958 = vmatprep.subr.mxu0 0.0
    %1959 = vmatpush1.msra.mxu0 0.0
    %1960 = vmatprep.subr.mxu0 0.0
    %1961 = vmatpush1.msra.mxu0 0.0
    %1962 = vmatprep.subr.mxu0 0.0
    %1963 = vmatpush1.msra.mxu0 0.0
    %1964 = vmatprep.subr.mxu0 0.0
    %1965 = vmatpush1.msra.mxu0 0.0
    %1966 = vmatprep.subr.mxu0 0.0
    %1967 = vmatpush1.msra.mxu0 0.0
    %1968 = vmatprep.subr.mxu0 0.0
    %1969 = vmatpush1.msra.mxu0 0.0
    %1970 = vmatprep.subr.mxu0 0.0
    %1971 = vmatpush1.msra.mxu0 0.0
    %1972 = vmatprep.subr.mxu0 0.0
    %1973 = vmatpush1.msra.mxu0 0.0
    %1974 = vmatprep.subr.mxu0 0.0
    %1975 = vmatpush1.msra.mxu0 0.0
    %1976 = vmatprep.subr.mxu0 0.0
    %1977 = vmatpush1.msra.mxu0 0.0
    %1978 = vmatprep.subr.mxu0 0.0
    %1979 = vmatpush1.msra.mxu0 0.0
    %1980 = vmatprep.subr.mxu0 0.0
    %1981 = vmatpush1.msra.mxu0 0.0
    %1982 = vmatprep.subr.mxu0 0.0
    %1983 = vmatpush1.msra.mxu0 0.0
    %1984 = vmatprep.subr.mxu0 0.0
    %1985 = vmatpush1.msra.mxu0 0.0
    %1986 = vmatprep.subr.mxu0 0.0
    %1987 = vmatpush1.msra.mxu0 0.0
    %1988 = vmatprep.subr.mxu0 0.0
    %1989 = vmatpush1.msra.mxu0 0.0
    %1990 = vmatprep.subr.mxu0 0.0
    %1991 = vmatpush1.msra.mxu0 0.0
    %1992 = vmatprep.subr.mxu0 0.0
    %1993 = vmatpush1.msra.mxu0 0.0
    %1994 = vmatprep.subr.mxu0 0.0
    %1995 = vmatpush1.msra.mxu0 0.0
    %1996 = vmatprep.subr.mxu0 0.0
    %1997 = vmatpush1.msra.mxu0 0.0
    %1998 = vmatprep.subr.mxu0 0.0
    %1999 = vmatpush1.msra.mxu0 0.0
    %2000 = vmatprep.subr.mxu0 0.0
    %2001 = vmatpush1.msra.mxu0 0.0
    %2002 = vmatprep.subr.mxu0 0.0
    %2003 = vmatpush1.msra.mxu0 0.0
    %2004 = vmatprep.subr.mxu0 0.0
    %2005 = vmatpush1.msra.mxu0 0.0
    %2006 = vmatprep.subr.mxu0 0.0
    %2007 = vmatpush1.msra.mxu0 0.0
    %2008 = vmatprep.subr.mxu0 0.0
    %2009 = vmatpush1.msra.mxu0 0.0
    %2010 = vmatprep.subr.mxu0 0.0
    %2011 = vmatpush1.msra.mxu0 0.0
    %2012 = vmatprep.mubr.f32.mxu0 0.0
    %2013 = vmatmul.mubr.f32.gmra.mrb[0].mxu0 %v1946
    %v2014 = vpop.f32.mrb[0].mxu0
    %v2015 = vadd.f32 0.0, %v2014
    %v2016 = vpop.f32.mrb[0].mxu0
    %2017 = vdwg.mxu0
    %v2019 = vsel %vm1506, %v1481, 0
    %2021 = vmatprep.subr.mxu0 0.0
    %2022 = vmatpush1.msra.mxu0 %v449
    %2023 = vmatprep.subr.mxu0 0.0
    %2024 = vmatpush1.msra.mxu0 0.0
    %2025 = vmatprep.subr.mxu0 0.0
    %2026 = vmatpush1.msra.mxu0 0.0
    %2027 = vmatprep.subr.mxu0 0.0
    %2028 = vmatpush1.msra.mxu0 0.0
    %2029 = vmatprep.subr.mxu0 0.0
    %2030 = vmatpush1.msra.mxu0 0.0
    %2031 = vmatprep.subr.mxu0 0.0
    %2032 = vmatpush1.msra.mxu0 0.0
    %2033 = vmatprep.subr.mxu0 0.0
    %2034 = vmatpush1.msra.mxu0 0.0
    %2035 = vmatprep.subr.mxu0 0.0
    %2036 = vmatpush1.msra.mxu0 0.0
    %2037 = vmatprep.subr.mxu0 0.0
    %2038 = vmatpush1.msra.mxu0 0.0
    %2039 = vmatprep.subr.mxu0 0.0
    %2040 = vmatpush1.msra.mxu0 0.0
    %2041 = vmatprep.subr.mxu0 0.0
    %2042 = vmatpush1.msra.mxu0 0.0
    %2043 = vmatprep.subr.mxu0 0.0
    %2044 = vmatpush1.msra.mxu0 0.0
    %2045 = vmatprep.subr.mxu0 0.0
    %2046 = vmatpush1.msra.mxu0 0.0
    %2047 = vmatprep.subr.mxu0 0.0
    %2048 = vmatpush1.msra.mxu0 0.0
    %2049 = vmatprep.subr.mxu0 0.0
    %2050 = vmatpush1.msra.mxu0 0.0
    %2051 = vmatprep.subr.mxu0 0.0
    %2052 = vmatpush1.msra.mxu0 0.0
    %2053 = vmatprep.subr.mxu0 0.0
    %2054 = vmatpush1.msra.mxu0 0.0
    %2055 = vmatprep.subr.mxu0 0.0
    %2056 = vmatpush1.msra.mxu0 0.0
    %2057 = vmatprep.subr.mxu0 0.0
    %2058 = vmatpush1.msra.mxu0 0.0
    %2059 = vmatprep.subr.mxu0 0.0
    %2060 = vmatpush1.msra.mxu0 0.0
    %2061 = vmatprep.subr.mxu0 0.0
    %2062 = vmatpush1.msra.mxu0 0.0
    %2063 = vmatprep.subr.mxu0 0.0
    %2064 = vmatpush1.msra.mxu0 0.0
    %2065 = vmatprep.subr.mxu0 0.0
    %2066 = vmatpush1.msra.mxu0 0.0
    %2067 = vmatprep.subr.mxu0 0.0
    %2068 = vmatpush1.msra.mxu0 0.0
    %2069 = vmatprep.subr.mxu0 0.0
    %2070 = vmatpush1.msra.mxu0 0.0
    %2071 = vmatprep.subr.mxu0 0.0
    %2072 = vmatpush1.msra.mxu0 0.0
    %2073 = vmatprep.subr.mxu0 0.0
    %2074 = vmatpush1.msra.mxu0 0.0
    %2075 = vmatprep.subr.mxu0 0.0
    %2076 = vmatpush1.msra.mxu0 0.0
    %2077 = vmatprep.subr.mxu0 0.0
    %2078 = vmatpush1.msra.mxu0 0.0
    %2079 = vmatprep.subr.mxu0 0.0
    %2080 = vmatpush1.msra.mxu0 0.0
    %2081 = vmatprep.subr.mxu0 0.0
    %2082 = vmatpush1.msra.mxu0 0.0
    %2083 = vmatprep.subr.mxu0 0.0
    %2084 = vmatpush1.msra.mxu0 0.0
    %2085 = vmatprep.mubr.f32.mxu0 0.0
    %2086 = vmatmul.mubr.f32.gmra.mrb[0].mxu0 %v2019
    %v2087 = vpop.f32.mrb[0].mxu0
    %v2088 = vadd.f32 0.0, %v2087
    %v2089 = vpop.f32.mrb[0].mxu0
    %2090 = vdwg.mxu0
    %v2091 = vld [vmem:[#allocation12] sm:$0xff]
    %v2092 = vld [vmem:[#allocation20] sm:$0xff]
    %v2093 = vld [vmem:[#allocation20 + $0x8] sm:$0xff]
    %v2094 = vld [vmem:[#allocation20 + $0x10] sm:$0xff]
    %v2095 = vld [vmem:[#allocation20 + $0x18] sm:$0xff]
    %s2096 = scalar_lea.vmem [#allocation20], 32
    %v2097 = vld [vmem:[%s2096] sm:$0xff]
    %v2098 = vld [vmem:[%s2096 + $0x8] sm:$0xff]
    %v2099 = vld [vmem:[%s2096 + $0x10] sm:$0xff]
    %v2100 = vld [vmem:[%s2096 + $0x18] sm:$0xff]
    %2101 = vmatprep.subr.mxu0 0.0
    %2102 = vmatpush1.msra.mxu0 %v2097
    %2103 = vmatprep.subr.mxu0 0.0
    %2104 = vmatpush1.msra.mxu0 %v2098
    %2105 = vmatprep.subr.mxu0 0.0
    %2106 = vmatpush1.msra.mxu0 %v2099
    %2107 = vmatprep.subr.mxu0 0.0
    %2108 = vmatpush1.msra.mxu0 %v2100
    %2109 = vmatprep.subr.mxu0 0.0
    %2110 = vmatpush1.msra.mxu0 0.0
    %2111 = vmatprep.subr.mxu0 0.0
    %2112 = vmatpush1.msra.mxu0 0.0
    %2113 = vmatprep.subr.mxu0 0.0
    %2114 = vmatpush1.msra.mxu0 0.0
    %2115 = vmatprep.subr.mxu0 0.0
    %2116 = vmatpush1.msra.mxu0 0.0
    %2117 = vmatprep.subr.mxu0 0.0
    %2118 = vmatpush1.msra.mxu0 0.0
    %2119 = vmatprep.subr.mxu0 0.0
    %2120 = vmatpush1.msra.mxu0 0.0
    %2121 = vmatprep.subr.mxu0 0.0
    %2122 = vmatpush1.msra.mxu0 0.0
    %2123 = vmatprep.subr.mxu0 0.0
    %2124 = vmatpush1.msra.mxu0 0.0
    %2125 = vmatprep.subr.mxu0 0.0
    %2126 = vmatpush1.msra.mxu0 0.0
    %2127 = vmatprep.subr.mxu0 0.0
    %2128 = vmatpush1.msra.mxu0 0.0
    %2129 = vmatprep.subr.mxu0 0.0
    %2130 = vmatpush1.msra.mxu0 0.0
    %2131 = vmatprep.subr.mxu0 0.0
    %2132 = vmatpush1.msra.mxu0 0.0
    %2133 = vmatprep.subr.mxu0 0.0
    %2134 = vmatpush1.msra.mxu0 0.0
    %2135 = vmatprep.subr.mxu0 0.0
    %2136 = vmatpush1.msra.mxu0 0.0
    %2137 = vmatprep.subr.mxu0 0.0
    %2138 = vmatpush1.msra.mxu0 0.0
    %2139 = vmatprep.subr.mxu0 0.0
    %2140 = vmatpush1.msra.mxu0 0.0
    %2141 = vmatprep.subr.mxu0 0.0
    %2142 = vmatpush1.msra.mxu0 0.0
    %2143 = vmatprep.subr.mxu0 0.0
    %2144 = vmatpush1.msra.mxu0 0.0
    %2145 = vmatprep.subr.mxu0 0.0
    %2146 = vmatpush1.msra.mxu0 0.0
    %2147 = vmatprep.subr.mxu0 0.0
    %2148 = vmatpush1.msra.mxu0 0.0
    %2149 = vmatprep.subr.mxu0 0.0
    %2150 = vmatpush1.msra.mxu0 0.0
    %2151 = vmatprep.subr.mxu0 0.0
    %2152 = vmatpush1.msra.mxu0 0.0
    %2153 = vmatprep.subr.mxu0 0.0
    %2154 = vmatpush1.msra.mxu0 0.0
    %2155 = vmatprep.subr.mxu0 0.0
    %2156 = vmatpush1.msra.mxu0 0.0
    %2157 = vmatprep.subr.mxu0 0.0
    %2158 = vmatpush1.msra.mxu0 0.0
    %2159 = vmatprep.subr.mxu0 0.0
    %2160 = vmatpush1.msra.mxu0 0.0
    %2161 = vmatprep.subr.mxu0 0.0
    %2162 = vmatpush1.msra.mxu0 0.0
    %2163 = vmatprep.subr.mxu0 0.0
    %2164 = vmatpush1.msra.mxu0 0.0
    %2165 = vmatprep.mubr.f32.mxu0 0.0
    %2166 = vmatmul.mubr.f32.gmra.mrb[0].mxu0 %v461
    %v2167 = vpop.f32.mrb[0].mxu0
    %v2168 = vadd.f32 0.0, %v2167
    %v2169 = vpop.f32.mrb[0].mxu0
    %2170 = vdwg.mxu0
    %v2179 = vrot.slane %v1650, 7
    %vm2180 = vcmask 1041409
    %v2181 = vsel %vm2180, %v2179, %v1577
    %v2182 = vrot.slane %v1723, 6
    %vm2183 = vcmask 1042434
    %v2184 = vsel %vm2183, %v2182, %v2181
    %v2185 = vrot.slane %v1796, 5
    %vm2186 = vcmask 1043459
    %v2187 = vsel %vm2186, %v2185, %v2184
    %v2188 = vrot.slane %v1869, 4
    %vm2189 = vcmask 1044484
    %v2190 = vsel %vm2189, %v2188, %v2187
    %v2191 = vrot.slane %v1942, 3
    %vm2192 = vcmask 1045509
    %v2193 = vsel %vm2192, %v2191, %v2190
    %v2194 = vrot.slane %v2015, 2
    %vm2195 = vcmask 1046534
    %v2196 = vsel %vm2195, %v2194, %v2193
    %v2197 = vrot.slane %v2088, 1
    %vm2198 = vcmask 1047559
    %v2199 = vsel %vm2198, %v2197, %v2196
    %v2200 = vsel %vm249, %v2199, 0
    %2202 = vmatprep.subr.mxu0 0.0
    %2203 = vmatpush1.msra.mxu0 %v2092
    %2204 = vmatprep.subr.mxu0 0.0
    %2205 = vmatpush1.msra.mxu0 %v2093
    %2206 = vmatprep.subr.mxu0 0.0
    %2207 = vmatpush1.msra.mxu0 %v2094
    %2208 = vmatprep.subr.mxu0 0.0
    %2209 = vmatpush1.msra.mxu0 %v2095
    %2210 = vmatprep.subr.mxu0 0.0
    %2211 = vmatpush1.msra.mxu0 0.0
    %2212 = vmatprep.subr.mxu0 0.0
    %2213 = vmatpush1.msra.mxu0 0.0
    %2214 = vmatprep.subr.mxu0 0.0
    %2215 = vmatpush1.msra.mxu0 0.0
    %2216 = vmatprep.subr.mxu0 0.0
    %2217 = vmatpush1.msra.mxu0 0.0
    %2218 = vmatprep.subr.mxu0 0.0
    %2219 = vmatpush1.msra.mxu0 0.0
    %2220 = vmatprep.subr.mxu0 0.0
    %2221 = vmatpush1.msra.mxu0 0.0
    %2222 = vmatprep.subr.mxu0 0.0
    %2223 = vmatpush1.msra.mxu0 0.0
    %2224 = vmatprep.subr.mxu0 0.0
    %2225 = vmatpush1.msra.mxu0 0.0
    %2226 = vmatprep.subr.mxu0 0.0
    %2227 = vmatpush1.msra.mxu0 0.0
    %2228 = vmatprep.subr.mxu0 0.0
    %2229 = vmatpush1.msra.mxu0 0.0
    %2230 = vmatprep.subr.mxu0 0.0
    %2231 = vmatpush1.msra.mxu0 0.0
    %2232 = vmatprep.subr.mxu0 0.0
    %2233 = vmatpush1.msra.mxu0 0.0
    %2234 = vmatprep.subr.mxu0 0.0
    %2235 = vmatpush1.msra.mxu0 0.0
    %2236 = vmatprep.subr.mxu0 0.0
    %2237 = vmatpush1.msra.mxu0 0.0
    %2238 = vmatprep.subr.mxu0 0.0
    %2239 = vmatpush1.msra.mxu0 0.0
    %2240 = vmatprep.subr.mxu0 0.0
    %2241 = vmatpush1.msra.mxu0 0.0
    %2242 = vmatprep.subr.mxu0 0.0
    %2243 = vmatpush1.msra.mxu0 0.0
    %2244 = vmatprep.subr.mxu0 0.0
    %2245 = vmatpush1.msra.mxu0 0.0
    %2246 = vmatprep.subr.mxu0 0.0
    %2247 = vmatpush1.msra.mxu0 0.0
    %2248 = vmatprep.subr.mxu0 0.0
    %2249 = vmatpush1.msra.mxu0 0.0
    %2250 = vmatprep.subr.mxu0 0.0
    %2251 = vmatpush1.msra.mxu0 0.0
    %2252 = vmatprep.subr.mxu0 0.0
    %2253 = vmatpush1.msra.mxu0 0.0
    %2254 = vmatprep.subr.mxu0 0.0
    %2255 = vmatpush1.msra.mxu0 0.0
    %2256 = vmatprep.subr.mxu0 0.0
    %2257 = vmatpush1.msra.mxu0 0.0
    %2258 = vmatprep.subr.mxu0 0.0
    %2259 = vmatpush1.msra.mxu0 0.0
    %2260 = vmatprep.subr.mxu0 0.0
    %2261 = vmatpush1.msra.mxu0 0.0
    %2262 = vmatprep.subr.mxu0 0.0
    %2263 = vmatpush1.msra.mxu0 0.0
    %2264 = vmatprep.subr.mxu0 0.0
    %2265 = vmatpush1.msra.mxu0 0.0
    %2266 = vmatprep.mubr.f32.mxu0 0.0
    %2267 = vmatmul.mubr.f32.gmra.mrb[0].mxu0 %v2200
    %v2268 = vpop.f32.mrb[0].mxu0
    %v2269 = vadd.f32 %v2168, %v2268
    %v2270 = vpop.f32.mrb[0].mxu0
    %2271 = vdwg.mxu0
    %s2272 = scalar_lea.vmem [#allocation20], 64
    %v2273 = vld [vmem:[%s2272] sm:$0xff]
    %v2274 = vld [vmem:[%s2272 + $0x8] sm:$0xff]
    %v2275 = vld [vmem:[%s2272 + $0x10] sm:$0xff]
    %v2276 = vld [vmem:[%s2272 + $0x18] sm:$0xff]
    %v2278 = vsel %vm249, %v2091, 0
    %2280 = vmatprep.subr.mxu0 0.0
    %2281 = vmatpush1.msra.mxu0 %v2273
    %2282 = vmatprep.subr.mxu0 0.0
    %2283 = vmatpush1.msra.mxu0 %v2274
    %2284 = vmatprep.subr.mxu0 0.0
    %2285 = vmatpush1.msra.mxu0 %v2275
    %2286 = vmatprep.subr.mxu0 0.0
    %2287 = vmatpush1.msra.mxu0 %v2276
    %2288 = vmatprep.subr.mxu0 0.0
    %2289 = vmatpush1.msra.mxu0 0.0
    %2290 = vmatprep.subr.mxu0 0.0
    %2291 = vmatpush1.msra.mxu0 0.0
    %2292 = vmatprep.subr.mxu0 0.0
    %2293 = vmatpush1.msra.mxu0 0.0
    %2294 = vmatprep.subr.mxu0 0.0
    %2295 = vmatpush1.msra.mxu0 0.0
    %2296 = vmatprep.subr.mxu0 0.0
    %2297 = vmatpush1.msra.mxu0 0.0
    %2298 = vmatprep.subr.mxu0 0.0
    %2299 = vmatpush1.msra.mxu0 0.0
    %2300 = vmatprep.subr.mxu0 0.0
    %2301 = vmatpush1.msra.mxu0 0.0
    %2302 = vmatprep.subr.mxu0 0.0
    %2303 = vmatpush1.msra.mxu0 0.0
    %2304 = vmatprep.subr.mxu0 0.0
    %2305 = vmatpush1.msra.mxu0 0.0
    %2306 = vmatprep.subr.mxu0 0.0
    %2307 = vmatpush1.msra.mxu0 0.0
    %2308 = vmatprep.subr.mxu0 0.0
    %2309 = vmatpush1.msra.mxu0 0.0
    %2310 = vmatprep.subr.mxu0 0.0
    %2311 = vmatpush1.msra.mxu0 0.0
    %2312 = vmatprep.subr.mxu0 0.0
    %2313 = vmatpush1.msra.mxu0 0.0
    %2314 = vmatprep.subr.mxu0 0.0
    %2315 = vmatpush1.msra.mxu0 0.0
    %2316 = vmatprep.subr.mxu0 0.0
    %2317 = vmatpush1.msra.mxu0 0.0
    %2318 = vmatprep.subr.mxu0 0.0
    %2319 = vmatpush1.msra.mxu0 0.0
    %2320 = vmatprep.subr.mxu0 0.0
    %2321 = vmatpush1.msra.mxu0 0.0
    %2322 = vmatprep.subr.mxu0 0.0
    %2323 = vmatpush1.msra.mxu0 0.0
    %2324 = vmatprep.subr.mxu0 0.0
    %2325 = vmatpush1.msra.mxu0 0.0
    %2326 = vmatprep.subr.mxu0 0.0
    %2327 = vmatpush1.msra.mxu0 0.0
    %2328 = vmatprep.subr.mxu0 0.0
    %2329 = vmatpush1.msra.mxu0 0.0
    %2330 = vmatprep.subr.mxu0 0.0
    %2331 = vmatpush1.msra.mxu0 0.0
    %2332 = vmatprep.subr.mxu0 0.0
    %2333 = vmatpush1.msra.mxu0 0.0
    %2334 = vmatprep.subr.mxu0 0.0
    %2335 = vmatpush1.msra.mxu0 0.0
    %2336 = vmatprep.subr.mxu0 0.0
    %2337 = vmatpush1.msra.mxu0 0.0
    %2338 = vmatprep.subr.mxu0 0.0
    %2339 = vmatpush1.msra.mxu0 0.0
    %2340 = vmatprep.subr.mxu0 0.0
    %2341 = vmatpush1.msra.mxu0 0.0
    %2342 = vmatprep.subr.mxu0 0.0
    %2343 = vmatpush1.msra.mxu0 0.0
    %2344 = vmatprep.mubr.f32.mxu0 0.0
    %2345 = vmatmul.mubr.f32.gmra.mrb[0].mxu0 %v2278
    %v2346 = vpop.f32.mrb[0].mxu0
    %v2347 = vadd.f32 0.0, %v2346
    %v2348 = vpop.f32.mrb[0].mxu0
    %2349 = vdwg.mxu0
    %v2350 = vadd.f32 %v2269, %v2347
    %v2351 = vld [vmem:[%s15] sm:$0x1]
    %v2353 = vlaneseq
    %v2354 = vshrl.u32 %v2353, 7
    %v2355 = vsub.s32 0, %v2354
    %v2356 = vrot.slane %v2351, %v2355
    %v2358 = vadd.f32 %v2350, %v2356
    %v2359 = vtanh.pop %v2358
    %v2360 = vld [vmem:[#allocation21] sm:$0xff]
    %v2361 = vld [vmem:[#allocation21 + $0x8] sm:$0xff]
    %v2362 = vld [vmem:[#allocation21 + $0x10] sm:$0xff]
    %v2363 = vld [vmem:[#allocation21 + $0x18] sm:$0xff]
    %v2364 = vld [vmem:[%s17] sm:$0x1]
    %v2366 = vlaneseq
    %v2367 = vshrl.u32 %v2366, 7
    %v2368 = vsub.s32 0, %v2367
    %v2369 = vrot.slane %v2364, %v2368
    %v2372 = vsel %vm249, %v2359, 0
    %2374 = vmatprep.subr.mxu0 0.0
    %2375 = vmatpush1.msra.mxu0 %v2360
    %2376 = vmatprep.subr.mxu0 0.0
    %2377 = vmatpush1.msra.mxu0 %v2361
    %2378 = vmatprep.subr.mxu0 0.0
    %2379 = vmatpush1.msra.mxu0 %v2362
    %2380 = vmatprep.subr.mxu0 0.0
    %2381 = vmatpush1.msra.mxu0 %v2363
    %2382 = vmatprep.subr.mxu0 0.0
    %2383 = vmatpush1.msra.mxu0 0.0
    %2384 = vmatprep.subr.mxu0 0.0
    %2385 = vmatpush1.msra.mxu0 0.0
    %2386 = vmatprep.subr.mxu0 0.0
    %2387 = vmatpush1.msra.mxu0 0.0
    %2388 = vmatprep.subr.mxu0 0.0
    %2389 = vmatpush1.msra.mxu0 0.0
    %2390 = vmatprep.subr.mxu0 0.0
    %2391 = vmatpush1.msra.mxu0 0.0
    %2392 = vmatprep.subr.mxu0 0.0
    %2393 = vmatpush1.msra.mxu0 0.0
    %2394 = vmatprep.subr.mxu0 0.0
    %2395 = vmatpush1.msra.mxu0 0.0
    %2396 = vmatprep.subr.mxu0 0.0
    %2397 = vmatpush1.msra.mxu0 0.0
    %2398 = vmatprep.subr.mxu0 0.0
    %2399 = vmatpush1.msra.mxu0 0.0
    %2400 = vmatprep.subr.mxu0 0.0
    %2401 = vmatpush1.msra.mxu0 0.0
    %2402 = vmatprep.subr.mxu0 0.0
    %2403 = vmatpush1.msra.mxu0 0.0
    %2404 = vmatprep.subr.mxu0 0.0
    %2405 = vmatpush1.msra.mxu0 0.0
    %2406 = vmatprep.subr.mxu0 0.0
    %2407 = vmatpush1.msra.mxu0 0.0
    %2408 = vmatprep.subr.mxu0 0.0
    %2409 = vmatpush1.msra.mxu0 0.0
    %2410 = vmatprep.subr.mxu0 0.0
    %2411 = vmatpush1.msra.mxu0 0.0
    %2412 = vmatprep.subr.mxu0 0.0
    %2413 = vmatpush1.msra.mxu0 0.0
    %2414 = vmatprep.subr.mxu0 0.0
    %2415 = vmatpush1.msra.mxu0 0.0
    %2416 = vmatprep.subr.mxu0 0.0
    %2417 = vmatpush1.msra.mxu0 0.0
    %2418 = vmatprep.subr.mxu0 0.0
    %2419 = vmatpush1.msra.mxu0 0.0
    %2420 = vmatprep.subr.mxu0 0.0
    %2421 = vmatpush1.msra.mxu0 0.0
    %2422 = vmatprep.subr.mxu0 0.0
    %2423 = vmatpush1.msra.mxu0 0.0
    %2424 = vmatprep.subr.mxu0 0.0
    %2425 = vmatpush1.msra.mxu0 0.0
    %2426 = vmatprep.subr.mxu0 0.0
    %2427 = vmatpush1.msra.mxu0 0.0
    %2428 = vmatprep.subr.mxu0 0.0
    %2429 = vmatpush1.msra.mxu0 0.0
    %2430 = vmatprep.subr.mxu0 0.0
    %2431 = vmatpush1.msra.mxu0 0.0
    %2432 = vmatprep.subr.mxu0 0.0
    %2433 = vmatpush1.msra.mxu0 0.0
    %2434 = vmatprep.subr.mxu0 0.0
    %2435 = vmatpush1.msra.mxu0 0.0
    %2436 = vmatprep.subr.mxu0 0.0
    %2437 = vmatpush1.msra.mxu0 0.0
    %2438 = vmatprep.mubr.f32.mxu0 0.0
    %2439 = vmatmul.mubr.f32.gmra.mrb[0].mxu0 %v2372
    %v2440 = vpop.f32.mrb[0].mxu0
    %v2441 = vadd.f32 %v2369, %v2440
    %v2442 = vpop.f32.mrb[0].mxu0
    %2443 = vdwg.mxu0
    %vm2444 = vcmask 326656
    %v2445 = vsel %vm2444, %v2441, -inf
    %2446 = vmax.xlane.f32.xlu0 %v2445
    %v2447 = vpop.xlane.xlu0 %2446
    %v2448 = vsub.f32 %v2441, %v2447
    %v2449 = vmul.f32 %v2448, 1.442695
    %v2450 = vpow.pop %v2449
    %v2451 = vsel %vm2444, %v2450, 0.0
    %2452 = vadd.xlane.f32.xlu0 %v2451
    %v2453 = vpop.xlane.xlu0 %2452
    %v2454 = vlog2.pop %v2453
    %v2455 = vmul.f32 %v2454, 0.6931472
    %v2456 = vsub.f32 %v2448, %v2455
    %v2457 = vld [vmem:[%s18] sm:$0x1]
    %v2458 = vlaneseq
    %v2459 = vshrl.u32 %v2458, 7
    %v2460 = vsub.s32 0, %v2459
    %v2461 = vrot.slane %v2457, %v2460
    %v2462 = vmul.f32 %v1577, %v2461
    %v2463 = vmul.f32 %v1650, %v2461
    %v2464 = vmul.f32 %v1723, %v2461
    %v2465 = vmul.f32 %v1796, %v2461
    %v2466 = vmul.f32 %v1869, %v2461
    %v2467 = vmul.f32 %v1942, %v2461
    %v2468 = vmul.f32 %v2015, %v2461
    %v2469 = vmul.f32 %v2088, %v2461
    %v2478 = vrot.slane %v2463, 7
    %v2479 = vsel %vm2180, %v2478, %v2462
    %v2480 = vrot.slane %v2464, 6
    %v2481 = vsel %vm2183, %v2480, %v2479
    %v2482 = vrot.slane %v2465, 5
    %v2483 = vsel %vm2186, %v2482, %v2481
    %v2484 = vrot.slane %v2466, 4
    %v2485 = vsel %vm2189, %v2484, %v2483
    %v2486 = vrot.slane %v2467, 3
    %v2487 = vsel %vm2192, %v2486, %v2485
    %v2488 = vrot.slane %v2468, 2
    %v2489 = vsel %vm2195, %v2488, %v2487
    %v2490 = vrot.slane %v2469, 1
    %v2491 = vsel %vm2198, %v2490, %v2489
    %v2493 = vsel %vm249, %v2491, 0.0
    %2494 = vadd.xlane.f32.xlu0 %v2493
    %v2495 = vpop.xlane.xlu0 %2494
    %v2496 = vld [vmem:[%s18 + $0x1] sm:$0x1]
    %v2497 = vlaneseq
    %v2498 = vshrl.u32 %v2497, 7
    %v2499 = vsub.s32 0, %v2498
    %v2500 = vrot.slane %v2496, %v2499
    %2502 = vrot.lane.b32.xlu0 %v2500, 96
    %v2503 = vpop.permute.xlu0 %2502
    %v2505 = vmul.f32 %v431, %v2503
    %2507 = vrot.lane.b32.xlu0 %v2505, 32
    %v2508 = vpop.permute.xlu0 %2507
    %v2510 = vsel %vm249, %v2508, 0.0
    %2511 = vadd.xlane.f32.xlu0 %v2510
    %v2512 = vpop.xlane.xlu0 %2511
    %v2513 = vadd.f32 %v2495, %v2512
    %s2514 = sld [smem:[#allocation23 + $0x1]]
    %v2515 = vstv %s2514
    %v2516 = vadd.f32 %v2513, %v2515
    %v2517 = vsub.f32 0.0, %v2516
    %v2518 = vmax.f32 %v2517, 0.0
    %vm2519 = vcmp.ne.f32.partialorder %v2517, %v2517
    %v2520 = vadd.f32 %v2517, 0.0
    %v2521 = vand.u32 2147483647, %v2517
    %v2522 = vsub.f32 0.0, %v2521
    %v2523 = vmul.f32 %v2522, 1.442695
    %v2524 = vpow.pop %v2523
    %v2525 = vadd.f32 %v2524, 1.0
    %v2526 = vlog2.pop %v2525
    %v2527 = vmul.f32 %v2526, 0.6931472
    %v2528 = vmul.f32 -0.5, %v2524
    %v2529 = vadd.f32 %v2528, 1.0
    %v2530 = vmul.f32 %v2529, %v2524
    %v2531 = vand.u32 2147483647, %v2524
    %vm2532 = vcmp.lt.f32.partialorder %v2531, 0.0004427343
    %v2533 = vsel %vm2532, %v2530, %v2527
    %v2534 = vadd.f32 %v2518, %v2533
    %v2535 = vsel %vm2519, %v2520, %v2534
    %v2536 = vsub.f32 0.0, %v2535
    %v2537 = vadd.f32 %v2536, %v2456
    %2538 = vst.msk [vmem:[#allocation24] sm:$0xff] %vm2444, %v2537
    %v2539 = vsub.f32 0.0, %v2517
    %v2540 = vmax.f32 %v2539, 0.0
    %vm2541 = vcmp.ne.f32.partialorder %v2539, %v2539
    %v2542 = vadd.f32 %v2539, 0.0
    %v2543 = vand.u32 2147483647, %v2539
    %v2544 = vsub.f32 0.0, %v2543
    %v2545 = vmul.f32 %v2544, 1.442695
    %v2546 = vpow.pop %v2545
    %v2547 = vadd.f32 %v2546, 1.0
    %v2548 = vlog2.pop %v2547
    %v2549 = vmul.f32 %v2548, 0.6931472
    %v2550 = vmul.f32 -0.5, %v2546
    %v2551 = vadd.f32 %v2550, 1.0
    %v2552 = vmul.f32 %v2551, %v2546
    %v2553 = vand.u32 2147483647, %v2546
    %vm2554 = vcmp.lt.f32.partialorder %v2553, 0.0004427343
    %v2555 = vsel %vm2554, %v2552, %v2549
    %v2556 = vadd.f32 %v2540, %v2555
    %v2557 = vsel %vm2541, %v2542, %v2556
    %v2558 = vsub.f32 0.0, %v2557
    %v2560 = vlaneseq
    %v2561 = vshrl.u32 %v2560, 7
    %v2562 = vsub.s32 0, %v2561
    %v2563 = vrot.slane %v2558, %v2562
    %v2564 = vlaneseq
    %v2565 = vshrl.u32 %v2564, 7
    %v2566 = vsub.s32 1, %v2565
    %v2567 = vrot.slane %v2558, %v2566
    %v2568 = vlaneseq
    %v2569 = vshrl.u32 %v2568, 7
    %v2570 = vsub.s32 2, %v2569
    %v2571 = vrot.slane %v2558, %v2570
    %v2572 = vlaneseq
    %v2573 = vshrl.u32 %v2572, 7
    %v2574 = vsub.s32 3, %v2573
    %v2575 = vrot.slane %v2558, %v2574
    %v2576 = vlaneseq
    %v2577 = vshrl.u32 %v2576, 7
    %v2578 = vsub.s32 4, %v2577
    %v2579 = vrot.slane %v2558, %v2578
    %v2580 = vlaneseq
    %v2581 = vshrl.u32 %v2580, 7
    %v2582 = vsub.s32 5, %v2581
    %v2583 = vrot.slane %v2558, %v2582
    %v2584 = vlaneseq
    %v2585 = vshrl.u32 %v2584, 7
    %v2586 = vsub.s32 6, %v2585
    %v2587 = vrot.slane %v2558, %v2586
    %v2588 = vlaneseq
    %v2589 = vshrl.u32 %v2588, 7
    %v2590 = vsub.s32 7, %v2589
    %v2591 = vrot.slane %v2558, %v2590
    %v2600 = vadd.f32 %v2563, %v1498
    %v2601 = vadd.f32 %v2567, %v1499
    %v2602 = vadd.f32 %v2571, %v1500
    %v2603 = vadd.f32 %v2575, %v1501
    %v2604 = vadd.f32 %v2579, %v1502
    %v2605 = vadd.f32 %v2583, %v1503
    %v2606 = vadd.f32 %v2587, %v1504
    %v2607 = vadd.f32 %v2591, %v1505
    %2608 = vst.msk [vmem:[#allocation25] sm:$0x1] %vm1393, %v2600
    %2609 = vst.msk [vmem:[#allocation25 + $0x1] sm:$0x1] %vm1393, %v2601
    %2610 = vst.msk [vmem:[#allocation25 + $0x2] sm:$0x1] %vm1393, %v2602
    %2611 = vst.msk [vmem:[#allocation25 + $0x3] sm:$0x1] %vm1393, %v2603
    %2612 = vst.msk [vmem:[#allocation25 + $0x4] sm:$0x1] %vm1393, %v2604
    %2613 = vst.msk [vmem:[#allocation25 + $0x5] sm:$0x1] %vm1393, %v2605
    %2614 = vst.msk [vmem:[#allocation25 + $0x6] sm:$0x1] %vm1393, %v2606
    %2615 = vst.msk [vmem:[#allocation25 + $0x7] sm:$0x1] %vm1393, %v2607
    // Predicated region
    $region134: #{tpu_custom_call.1} parent=1 // pred_check
      _
    $region135: #{tpu_custom_call.1} parent=1 // pred_check_branch
      %2617 = sbr.rel (0) target = $region137
    $region136: #{tpu_custom_call.1} parent=1 // pred_region
      %s2619 = ssub.s32 128, 128
      %2620 = vsyncadd [#allocation4], %s2619
      %s2622 = sshll.u32 [#allocation24], 4
      %s2623 = int_to_ptr.vmem [resolvable:$true] %s2622
      %2625 = dma.vmem_to_hbm [thread:$0]  %s2623, 128, %s20, [#allocation4]
    $region137: #{tpu_custom_call.1} parent=1 // pred_fallthru
      _
    // Predicated region
    $region138: #{tpu_custom_call.1} parent=1 // pred_check
      _
    $region139: #{tpu_custom_call.1} parent=1 // pred_check_branch
      %2627 = sbr.rel (0) target = $region141
    $region140: #{tpu_custom_call.1} parent=1 // pred_region
      %s2629 = ssub.s32 128, 128
      %2630 = vsyncadd [#allocation26], %s2629
      %s2631 = sshll.u32 [#allocation25], 4
      %s2632 = int_to_ptr.vmem [resolvable:$true] %s2631
      %2637 = dma.vmem_to_hbm [thread:$0]  %s2632, 128, %s21, [#allocation26], 16, 16, 1
    $region141: #{tpu_custom_call.1} parent=1 // pred_fallthru
      _
    // Predicated region
    $region142: #{tpu_custom_call.1} parent=1 // pred_check
      _
    $region143: #{tpu_custom_call.1} parent=1 // pred_check_branch
      %2639 = sbr.rel (0) target = $region145
    $region144: #{tpu_custom_call.1} parent=1 // pred_region
      %s2641 = ssub.s32 128, 128
      %2642 = vsyncadd [#allocation26], %s2641
      %s2644 = sshll.u32 [#allocation27], 4
      %s2645 = int_to_ptr.vmem [resolvable:$true] %s2644
      %2647 = dma.vmem_to_hbm [thread:$0]  %s2645, 128, %s22, [#allocation26]
    $region145: #{tpu_custom_call.1} parent=1 // pred_fallthru
      _
    // Predicated region
    $region146: #{tpu_custom_call.1} parent=1 // pred_check
      _
    $region147: #{tpu_custom_call.1} parent=1 // pred_check_branch
      %2649 = sbr.rel (0) target = $region149
    $region148: #{tpu_custom_call.1} parent=1 // pred_region
      %s2651 = ssub.s32 128, 128
      %2652 = vsyncadd [#allocation29], %s2651
      %s2654 = sshll.u32 [#allocation28], 4
      %s2655 = int_to_ptr.vmem [resolvable:$true] %s2654
      %2657 = dma.vmem_to_hbm [thread:$0]  %s2655, 128, %s23, [#allocation29]
    $region149: #{tpu_custom_call.1} parent=1 // pred_fallthru
      _
    // Predicated region
    $region150: #{tpu_custom_call.1} parent=1 // pred_check
      _
    $region151: #{tpu_custom_call.1} parent=1 // pred_check_branch
      %2659 = sbr.rel (0) target = $region153
    $region152: #{tpu_custom_call.1} parent=1 // pred_region
      %2660 = dma.done [#allocation4], 128
    $region153: #{tpu_custom_call.1} parent=1 // pred_fallthru
      _
    // Predicated region
    $region154: #{tpu_custom_call.1} parent=1 // pred_check
      _
    $region155: #{tpu_custom_call.1} parent=1 // pred_check_branch
      %2662 = sbr.rel (0) target = $region157
    $region156: #{tpu_custom_call.1} parent=1 // pred_region
      %2663 = dma.done [#allocation26], 128
    $region157: #{tpu_custom_call.1} parent=1 // pred_fallthru
      _
    // Predicated region
    $region158: #{tpu_custom_call.1} parent=1 // pred_check
      _
    $region159: #{tpu_custom_call.1} parent=1 // pred_check_branch
      %2665 = sbr.rel (0) target = $region161
    $region160: #{tpu_custom_call.1} parent=1 // pred_region
      %2666 = dma.done [#allocation26], 128
    $region161: #{tpu_custom_call.1} parent=1 // pred_fallthru
      _
    // Predicated region
    $region162: #{tpu_custom_call.1} parent=1 // pred_check
      _
    $region163: #{tpu_custom_call.1} parent=1 // pred_check_branch
      %2668 = sbr.rel (0) target = $region165
    $region164: #{tpu_custom_call.1} parent=1 // pred_region
      %2669 = dma.done [#allocation29], 128
    $region165: #{tpu_custom_call.1} parent=1 // pred_fallthru
      _
    %2670 = vsyncpa [#allocation3], 1
    %2671 = vsyncpa [#allocation7], 1
    %2672 = vsyncpa [#allocation10], 1
    %2673 = vsyncpa [#allocation13], 1
    %2674 = vsyncpa [#allocation16], 1
    %2675 = vsyncpa [#allocation19], 1
    %2676 = vsyncpa [#allocation22], 1
    %2677 = vsyncpa [#allocation4], 1
    %2678 = vsyncpa [#allocation26], 1
    %2679 = vsyncpa [#allocation29], 1
    %2680 = vsyncpa [#allocation5], 1

</llo_original>
